<compile_context>
chip_gen: v6e
topology: v6e:2x2x1
jax: 0.10.0
libtpu: 0.0.40
codegen_flags: <defaults>
</compile_context>

<pallas_src>
import math

import jax
import jax.numpy as jnp
from jax.experimental import pallas as pl
from jax.experimental.pallas import tpu as pltpu

_VMEM_LIMIT = 48 * 1024 * 1024  # stays under v7x's 64 MiB physical VMEM


def _row_tile(h):
    """Row-tile height that divides H (bounds vreg pressure per inner step)."""
    for t in (8, 4, 2, 1):
        if h % t == 0:
            return t
    return h


# ----------------------------------------------------------------------------
# In-kernel 3x3 conv helpers (im2col single matmul per row tile).
# ----------------------------------------------------------------------------
def _conv3x3_rows(src_ref, w_bf, r0, th, W, cin):
    """Output rows [r0, r0+th) of a 3x3 'same' conv.

    src_ref : (H+2, W+2, cin) zero-padded activation (f32, VMEM ref).
    w_bf    : (9*cin, cout) bf16 weight, im2col layout (ky, kx, cin) -> rows.
    Returns (th, W, cout) f32.
    """
    taps = []
    for dy in range(3):
        rows = src_ref[pl.ds(r0 + dy, th), :, :]          # (th, W+2, cin)
        for dx in range(3):
            taps.append(rows[:, dx:dx + W, :])            # (th, W, cin)
    # (th, W, 9*cin) patch; channel order matches weight.reshape(9*cin, cout).
    patch = jnp.concatenate(taps, axis=-1).astype(jnp.bfloat16)
    return jnp.einsum("hwk,ko->hwo", patch, w_bf,
                      preferred_element_type=jnp.float32)


def _conv3x3_padded(src_ref, w_bf, write_fn, *, H, W, cin, th,
                    relu=False, skip_fn=None):
    """Row-tiled 3x3 conv over a zero-padded VMEM ref.

    write_fn(r0, y): stores y ((th, W, cout) f32) at output-row offset r0.
    skip_fn(r0):     optional (th, W, cout) f32 residual added before write.
    """
    @pl.loop(0, H // th)
    def _(i):
        r0 = pl.multiple_of(i * th, th)
        y = _conv3x3_rows(src_ref, w_bf, r0, th, W, cin)
        if skip_fn is not None:
            y = y + skip_fn(r0)
        if relu:
            y = jnp.maximum(y, 0.0)
        write_fn(r0, y)


# ----------------------------------------------------------------------------
# Standalone conv kernel (input conv and upscale convs).
# ----------------------------------------------------------------------------
def _make_conv_kernel(relu, H, W, cin, cout, th):
    def kernel(x_ref, w_ref, o_ref, xpad_ref):
        # Build the halo in VMEM (replaces an HBM-side jnp.pad copy).
        xpad_ref[...] = jnp.zeros_like(xpad_ref)
        xpad_ref[1:H + 1, 1:W + 1, :] = x_ref[0]

        w_bf = w_ref[...]                                 # (9*cin, cout) bf16

        def write(r0, y):
            o_ref[0, pl.ds(r0, th), :, :] = y.astype(o_ref.dtype)

        _conv3x3_padded(xpad_ref, w_bf, write, H=H, W=W, cin=cin, th=th,
                        relu=relu)

    return kernel


def conv3x3(x, w_flat, *, relu=False):
    """3x3 same-padding conv (no bias), optional fused ReLU.

    x: (N, H, W, cin) f32 NHWC.  w_flat: (9*cin, cout) bf16.
    """
    N, H, W, cin = x.shape
    cout = w_flat.shape[-1]
    th = _row_tile(H)

    flops = 2 * 9 * N * H * W * cin * cout
    bytes_accessed = (x.size * x.dtype.itemsize
                      + w_flat.size * w_flat.dtype.itemsize
                      + N * H * W * cout * 4)

    return pl.pallas_call(
        _make_conv_kernel(relu, H, W, cin, cout, th),
        out_shape=jax.ShapeDtypeStruct((N, H, W, cout), jnp.float32),
        grid=(N,),
        in_specs=[
            pl.BlockSpec((1, H, W, cin), lambda b: (b, 0, 0, 0)),
            pl.BlockSpec((9 * cin, cout), lambda b: (0, 0)),
        ],
        out_specs=pl.BlockSpec((1, H, W, cout), lambda b: (b, 0, 0, 0)),
        scratch_shapes=[pltpu.VMEM((H + 2, W + 2, cin), jnp.float32)],
        compiler_params=pltpu.CompilerParams(
            dimension_semantics=("parallel",),
            vmem_limit_bytes=_VMEM_LIMIT),
        cost_estimate=pl.CostEstimate(flops=int(flops), transcendentals=0,
                                      bytes_accessed=int(bytes_accessed)),
    )(x, w_flat)


# ----------------------------------------------------------------------------
# Fused residual stack: all L ResidualBlocks in ONE pallas_call.
# Activation stays resident in a padded VMEM scratch across the layer axis.
# ----------------------------------------------------------------------------
def _make_residual_kernel(H, W, n, th):
    def kernel(h_ref, w_ref, o_ref, act_ref, tmp_ref):
        li = pl.program_id(1)

        # First layer for this batch element: build the padded resident
        # activation (borders are zeroed once and never overwritten).
        @pl.when(li == 0)
        def _():
            act_ref[...] = jnp.zeros_like(act_ref)
            tmp_ref[...] = jnp.zeros_like(tmp_ref)
            act_ref[1:H + 1, 1:W + 1, :] = h_ref[0]

        w1 = w_ref[0, 0]                                  # (9n, n) bf16
        w2 = w_ref[0, 1]

        # conv1 + ReLU : act -> tmp (interior).
        def write_tmp(r0, y):
            tmp_ref[pl.ds(r0 + 1, th), 1:W + 1, :] = y

        _conv3x3_padded(act_ref, w1, write_tmp, H=H, W=W, cin=n, th=th,
                        relu=True)

        # conv2 + residual add : tmp -> act (in place; conv2 only reads tmp,
        # so reading/writing the same act rows per row tile is hazard-free).
        def read_skip(r0):
            return act_ref[pl.ds(r0 + 1, th), 1:W + 1, :]

        def write_act(r0, y):
            act_ref[pl.ds(r0 + 1, th), 1:W + 1, :] = y

        _conv3x3_padded(tmp_ref, w2, write_act, H=H, W=W, cin=n, th=th,
                        relu=False, skip_fn=read_skip)

        # Last layer: flush the resident activation to the output block.
        @pl.when(li == pl.num_programs(1) - 1)
        def _():
            o_ref[0] = act_ref[1:H + 1, 1:W + 1, :].astype(o_ref.dtype)

    return kernel


def residual_stack(h, w_res):
    """h: (N, H, W, n) f32.  w_res: (L, 2, 9n, n) bf16 (stacked block weights)."""
    N, H, W, n = h.shape
    L = w_res.shape[0]
    th = _row_tile(H)

    flops = 2 * 9 * N * H * W * n * n * 2 * L
    bytes_accessed = 2 * h.size * 4 + w_res.size * 2

    return pl.pallas_call(
        _make_residual_kernel(H, W, n, th),
        out_shape=jax.ShapeDtypeStruct((N, H, W, n), jnp.float32),
        grid=(N, L),
        in_specs=[
            pl.BlockSpec((1, H, W, n), lambda b, li: (b, 0, 0, 0)),
            pl.BlockSpec((1, 2, 9 * n, n), lambda b, li: (li, 0, 0, 0)),
        ],
        out_specs=pl.BlockSpec((1, H, W, n), lambda b, li: (b, 0, 0, 0)),
        scratch_shapes=[pltpu.VMEM((H + 2, W + 2, n), jnp.float32),
                        pltpu.VMEM((H + 2, W + 2, n), jnp.float32)],
        compiler_params=pltpu.CompilerParams(
            dimension_semantics=("parallel", "arbitrary"),
            vmem_limit_bytes=_VMEM_LIMIT),
        cost_estimate=pl.CostEstimate(flops=int(flops), transcendentals=0,
                                      bytes_accessed=int(bytes_accessed)),
    )(h, w_res)


# ----------------------------------------------------------------------------
# Fused output stage: conv(n->n) + ReLU + conv(n->c) + bicubic-skip add,
# all in ONE pallas_call (removes an HBM round trip at full resolution).
# ----------------------------------------------------------------------------
def _make_output_kernel(H, W, n, c, th):
    def kernel(x_ref, w1_ref, w2_ref, s_ref, o_ref, xpad_ref, mpad_ref):
        # Build the halos in VMEM.
        xpad_ref[...] = jnp.zeros_like(xpad_ref)
        mpad_ref[...] = jnp.zeros_like(mpad_ref)
        xpad_ref[1:H + 1, 1:W + 1, :] = x_ref[0]

        w1 = w1_ref[...]                                  # (9n, n) bf16
        w2 = w2_ref[...]                                  # (9n, c) bf16

        # conv1 + ReLU : xpad -> mpad interior (stays in VMEM).
        def write_mid(r0, y):
            mpad_ref[pl.ds(r0 + 1, th), 1:W + 1, :] = y

        _conv3x3_padded(xpad_ref, w1, write_mid, H=H, W=W, cin=n, th=th,
                        relu=True)

        # conv2 + bicubic skip : mpad -> output.
        def skip_fn(r0):
            return s_ref[0, pl.ds(r0, th), :, :].astype(jnp.float32)

        def write_out(r0, y):
            o_ref[0, pl.ds(r0, th), :, :] = y.astype(o_ref.dtype)

        _conv3x3_padded(mpad_ref, w2, write_out, H=H, W=W, cin=n, th=th,
                        relu=False, skip_fn=skip_fn)

    return kernel


def output_stage(h, w1_flat, w2_flat, skip):
    """h: (N, H, W, n) f32; w1: (9n, n); w2: (9n, c) bf16; skip: (N, H, W, c)."""
    N, H, W, n = h.shape
    c = w2_flat.shape[-1]
    th = _row_tile(H)

    flops = 2 * 9 * N * H * W * (n * n + n * c)
    bytes_accessed = (h.size * 4 + skip.size * 4 + N * H * W * c * 4
                      + w1_flat.size * 2 + w2_flat.size * 2)

    return pl.pallas_call(
        _make_output_kernel(H, W, n, c, th),
        out_shape=jax.ShapeDtypeStruct((N, H, W, c), jnp.float32),
        grid=(N,),
        in_specs=[
            pl.BlockSpec((1, H, W, n), lambda b: (b, 0, 0, 0)),
            pl.BlockSpec((9 * n, n), lambda b: (0, 0)),
            pl.BlockSpec((9 * n, c), lambda b: (0, 0)),
            pl.BlockSpec((1, H, W, c), lambda b: (b, 0, 0, 0)),
        ],
        out_specs=pl.BlockSpec((1, H, W, c), lambda b: (b, 0, 0, 0)),
        scratch_shapes=[pltpu.VMEM((H + 2, W + 2, n), jnp.float32),
                        pltpu.VMEM((H + 2, W + 2, n), jnp.float32)],
        compiler_params=pltpu.CompilerParams(
            dimension_semantics=("parallel",),
            vmem_limit_bytes=_VMEM_LIMIT),
        cost_estimate=pl.CostEstimate(flops=int(flops), transcendentals=0,
                                      bytes_accessed=int(bytes_accessed)),
    )(h, w1_flat, w2_flat, skip)


# ----------------------------------------------------------------------------
# Plain-JAX glue (pure permutation / gather only).
# ----------------------------------------------------------------------------
def pixel_shuffle2(x):
    """PixelShuffle(2) in NHWC, PyTorch channel order (c*4 + i*2 + j)."""
    # TODO(synk): could be folded into the upscale conv as a strided write.
    N, H, W, C4 = x.shape
    C = C4 // 4
    x = x.reshape(N, H, W, C, 2, 2)
    x = x.transpose(0, 1, 4, 2, 5, 3)  # (N, H, i, W, j, C)
    return x.reshape(N, 2 * H, 2 * W, C)


def bicubic_upsample(x, scale):
    """PyTorch F.interpolate(mode='bicubic', align_corners=False), a=-0.75."""
    A = -0.75

    def cubic1(t):  # |t| <= 1
        return ((A + 2.0) * t - (A + 3.0)) * t * t + 1.0

    def cubic2(t):  # 1 < |t| < 2
        return ((A * t - 5.0 * A) * t + 8.0 * A) * t - 4.0 * A

    def axis_coeffs(in_size, out_size):
        out = jnp.arange(out_size, dtype=jnp.float32)
        src = (out + 0.5) / float(scale) - 0.5
        fl = jnp.floor(src)
        t = src - fl
        w = jnp.stack(
            [cubic2(t + 1.0), cubic1(t), cubic1(1.0 - t), cubic2(2.0 - t)],
            axis=-1)  # (out, 4)
        idx = fl[:, None].astype(jnp.int32) + jnp.arange(-1, 3)[None, :]
        idx = jnp.clip(idx, 0, in_size - 1)  # border replication
        return idx, w

    N, H, W, C = x.shape
    idx_h, w_h = axis_coeffs(H, H * scale)
    idx_w, w_w = axis_coeffs(W, W * scale)

    xh = x[:, idx_h, :, :]                                  # (N, Ho, 4, W, C)
    xh = jnp.einsum("nhkwc,hk->nhwc", xh, w_h)
    xw = xh[:, :, idx_w, :]                                 # (N, Ho, Wo, 4, C)
    return jnp.einsum("nhwkc,wk->nhwc", xw, w_w)


# ----------------------------------------------------------------------------
# Parameter init (matches TSRN.__init__ std choices).  Weights are stored
# pre-reshaped for the im2col kernel: (3,3,cin,cout) -> (9*cin, cout), bf16.
# ----------------------------------------------------------------------------
def init_tsrn_params(key, c, n, l, scale):
    n_up = int(round(math.log(scale, 2)))
    keys = jax.random.split(key, 1 + 2 * l + n_up + 2)
    ki = iter(keys)

    def w(k, cin, cout, std):
        v = std * jax.random.normal(k, (3, 3, cin, cout), jnp.float32)
        return v.reshape(9 * cin, cout).astype(jnp.bfloat16)

    params = {}
    params["input_w"] = w(next(ki), c, n, math.sqrt(2.0 / (9 * n)))
    res_std = math.sqrt(2.0 / (9 * n)) / l
    res = [jnp.stack([w(next(ki), n, n, res_std), w(next(ki), n, n, res_std)])
           for _ in range(l)]
    params["res_w"] = jnp.stack(res)                      # (L, 2, 9n, n) bf16
    params["up_w"] = [w(next(ki), n, 4 * n, math.sqrt(2.0 / (9 * 4 * n)))
                      for _ in range(n_up)]
    params["out_w1"] = w(next(ki), n, n, math.sqrt(2.0 / (9 * n)))
    params["out_w2"] = w(next(ki), n, c, math.sqrt(2.0 / (9 * c)))
    return params


# ----------------------------------------------------------------------------
# Full TSRN forward.
# ----------------------------------------------------------------------------
def tsrn_forward(x_nchw, params, scale):
    # NCHW (PyTorch) -> NHWC (channel on the TPU lane axis).
    x = jnp.transpose(x_nchw, (0, 2, 3, 1)).astype(jnp.float32)

    # self.input : conv + ReLU
    h = conv3x3(x, params["input_w"], relu=True)

    # self.residual : all L ResidualBlocks fused in one pallas_call.
    h = residual_stack(h, params["res_w"])

    # self.upscale : [conv -> PixelShuffle(2) -> ReLU] x log2(scale)
    for wu in params["up_w"]:
        u = conv3x3(h, wu, relu=True)        # ReLU commutes with the shuffle
        h = pixel_shuffle2(u)

    # self.output : conv + ReLU + conv, with the bicubic skip fused in,
    # all inside a single pallas_call at the upscaled resolution.
    o = output_stage(h, params["out_w1"], params["out_w2"],
                     bicubic_upsample(x, scale))

    # back to NCHW
    return jnp.transpose(o, (0, 3, 1, 2))


if __name__ == "__main__":
    # Small, module-consistent shapes: scale=2, c=3 image channels,
    # n=16 feature maps, l=2 residual blocks, batch=2, 8x8 spatial.
    scale, c, n, l = 2, 3, 16, 2
    N, H, W = 2, 8, 8

    key = jax.random.PRNGKey(0)
    k_param, k_x = jax.random.split(key)
    params = init_tsrn_params(k_param, c, n, l, scale)
    x = jax.random.normal(k_x, (N, c, H, W), jnp.float32)   # NCHW like PyTorch

    fwd = jax.jit(lambda xx, pp: tsrn_forward(xx, pp, scale))
    y = jax.block_until_ready(fwd(x, params))
    assert y.shape == (N, c, H * scale, W * scale), y.shape
    assert bool(jnp.all(jnp.isfinite(y)))
    print("KERNEL_OK")
</pallas_src>

<mosaic_0001>
module attributes {stable_mosaic.version = 11 : i64} {
  func.func @kernel(%arg0: i32, %arg1: i32, %arg2: memref<1x8x8x16xf32, #tpu.memory_space<vmem>>, %arg3: memref<1x2x144x16xbf16, #tpu.memory_space<vmem>>, %arg4: memref<1x8x8x16xf32, #tpu.memory_space<vmem>>, %arg5: memref<10x10x16xf32, #tpu.memory_space<vmem>>, %arg6: memref<10x10x16xf32, #tpu.memory_space<vmem>>) attributes {dimension_semantics = [#tpu.dimension_semantics<parallel>, #tpu.dimension_semantics<arbitrary>], iteration_bounds = array<i64: 2, 2>, scalar_prefetch = 0 : i64, scratch_operands = 2 : i64, tpu.core_type = #tpu.core_type<tc>, window_params = [{transform_indices = @transform_0, window_bounds = array<i64: 1, 8, 8, 16>}, {transform_indices = @transform_1, window_bounds = array<i64: 1, 2, 144, 16>}, {transform_indices = @transform_2, window_bounds = array<i64: 1, 8, 8, 16>}]} {
    %c0_i32 = arith.constant 0 : i32
    %0 = arith.cmpi eq, %arg1, %c0_i32 : i32
    %1 = arith.extui %0 : i1 to i32
    %c0_i32_0 = arith.constant 0 : i32
    %2 = arith.cmpi ne, %1, %c0_i32_0 : i32
    scf.if %2 {
      %cst_45 = arith.constant 0.000000e+00 : f32
      %72 = vector.broadcast %cst_45 : f32 to vector<10x10x16xf32>
      %c0_46 = arith.constant 0 : index
      %c0_47 = arith.constant 0 : index
      %c0_48 = arith.constant 0 : index
      %73 = vector.load %arg5[%c0_46, %c0_47, %c0_48] : memref<10x10x16xf32, #tpu.memory_space<vmem>>, vector<10x10x16xf32>
      tpu.vector_store %arg5[%c0_46, %c0_47, %c0_48], %72 {strides = array<i32>} : memref<10x10x16xf32, #tpu.memory_space<vmem>>, vector<10x10x16xf32>,
      %cst_49 = arith.constant 0.000000e+00 : f32
      %74 = vector.broadcast %cst_49 : f32 to vector<10x10x16xf32>
      %c0_50 = arith.constant 0 : index
      %c0_51 = arith.constant 0 : index
      %c0_52 = arith.constant 0 : index
      %75 = vector.load %arg6[%c0_50, %c0_51, %c0_52] : memref<10x10x16xf32, #tpu.memory_space<vmem>>, vector<10x10x16xf32>
      tpu.vector_store %arg6[%c0_50, %c0_51, %c0_52], %74 {strides = array<i32>} : memref<10x10x16xf32, #tpu.memory_space<vmem>>, vector<10x10x16xf32>,
      %c0_53 = arith.constant 0 : index
      %c0_54 = arith.constant 0 : index
      %c0_55 = arith.constant 0 : index
      %c0_56 = arith.constant 0 : index
      %76 = vector.load %arg2[%c0_53, %c0_54, %c0_55, %c0_56] : memref<1x8x8x16xf32, #tpu.memory_space<vmem>>, vector<1x8x8x16xf32>
      %77 = vector.shape_cast %76 : vector<1x8x8x16xf32> to vector<8x8x16xf32>
      %c1_57 = arith.constant 1 : index
      %c1_58 = arith.constant 1 : index
      %c0_59 = arith.constant 0 : index
      %78 = vector.load %arg5[%c1_57, %c1_58, %c0_59] : memref<10x10x16xf32, #tpu.memory_space<vmem>>, vector<8x8x16xf32>
      tpu.vector_store %arg5[%c1_57, %c1_58, %c0_59], %77 {strides = array<i32>} : memref<10x10x16xf32, #tpu.memory_space<vmem>>, vector<8x8x16xf32>,
    } else {
    }
    %c0 = arith.constant 0 : index
    %c0_1 = arith.constant 0 : index
    %c0_2 = arith.constant 0 : index
    %c0_3 = arith.constant 0 : index
    %3 = vector.load %arg3[%c0, %c0_1, %c0_2, %c0_3] : memref<1x2x144x16xbf16, #tpu.memory_space<vmem>>, vector<1x1x144x16xbf16>
    %4 = vector.shape_cast %3 : vector<1x1x144x16xbf16> to vector<144x16xbf16>
    %c0_4 = arith.constant 0 : index
    %c1 = arith.constant 1 : index
    %c0_5 = arith.constant 0 : index
    %c0_6 = arith.constant 0 : index
    %5 = vector.load %arg3[%c0_4, %c1, %c0_5, %c0_6] : memref<1x2x144x16xbf16, #tpu.memory_space<vmem>>, vector<1x1x144x16xbf16>
    %6 = vector.shape_cast %5 : vector<1x1x144x16xbf16> to vector<144x16xbf16>
    %c0_i32_7 = arith.constant 0 : i32
    %c1_i32 = arith.constant 1 : i32
    %7 = arith.muli %c0_i32_7, %c1_i32 : i32
    %c0_i32_8 = arith.constant 0 : i32
    %8 = arith.addi %c0_i32_8, %7 : i32
    %c8_i32 = arith.constant 8 : i32
    %9 = arith.muli %8, %c8_i32 : i32
    %10 = tpu.assume_multiple %9, 8 : i32
    %c0_i32_9 = arith.constant 0 : i32
    %11 = arith.addi %10, %c0_i32_9 : i32
    %12 = arith.index_cast %11 : i32 to index
    %c0_10 = arith.constant 0 : index
    %c0_11 = arith.constant 0 : index
    %13 = vector.load %arg5[%12, %c0_10, %c0_11] : memref<10x10x16xf32, #tpu.memory_space<vmem>>, vector<8x10x16xf32>
    %14 = vector.extract_strided_slice %13 {offsets = [0, 0, 0], sizes = [8, 8, 16], strides = [1, 1, 1]} : vector<8x10x16xf32> to vector<8x8x16xf32>
    %15 = vector.extract_strided_slice %13 {offsets = [0, 1, 0], sizes = [8, 8, 16], strides = [1, 1, 1]} : vector<8x10x16xf32> to vector<8x8x16xf32>
    %16 = vector.extract_strided_slice %13 {offsets = [0, 2, 0], sizes = [8, 8, 16], strides = [1, 1, 1]} : vector<8x10x16xf32> to vector<8x8x16xf32>
    %c1_i32_12 = arith.constant 1 : i32
    %17 = arith.addi %10, %c1_i32_12 : i32
    %18 = arith.index_cast %17 : i32 to index
    %c0_13 = arith.constant 0 : index
    %c0_14 = arith.constant 0 : index
    %19 = vector.load %arg5[%18, %c0_13, %c0_14] : memref<10x10x16xf32, #tpu.memory_space<vmem>>, vector<8x10x16xf32>
    %20 = vector.extract_strided_slice %19 {offsets = [0, 0, 0], sizes = [8, 8, 16], strides = [1, 1, 1]} : vector<8x10x16xf32> to vector<8x8x16xf32>
    %21 = vector.extract_strided_slice %19 {offsets = [0, 1, 0], sizes = [8, 8, 16], strides = [1, 1, 1]} : vector<8x10x16xf32> to vector<8x8x16xf32>
    %22 = vector.extract_strided_slice %19 {offsets = [0, 2, 0], sizes = [8, 8, 16], strides = [1, 1, 1]} : vector<8x10x16xf32> to vector<8x8x16xf32>
    %c2_i32 = arith.constant 2 : i32
    %23 = arith.addi %10, %c2_i32 : i32
    %24 = arith.index_cast %23 : i32 to index
    %c0_15 = arith.constant 0 : index
    %c0_16 = arith.constant 0 : index
    %25 = vector.load %arg5[%24, %c0_15, %c0_16] : memref<10x10x16xf32, #tpu.memory_space<vmem>>, vector<8x10x16xf32>
    %26 = vector.extract_strided_slice %25 {offsets = [0, 0, 0], sizes = [8, 8, 16], strides = [1, 1, 1]} : vector<8x10x16xf32> to vector<8x8x16xf32>
    %27 = vector.extract_strided_slice %25 {offsets = [0, 1, 0], sizes = [8, 8, 16], strides = [1, 1, 1]} : vector<8x10x16xf32> to vector<8x8x16xf32>
    %28 = vector.extract_strided_slice %25 {offsets = [0, 2, 0], sizes = [8, 8, 16], strides = [1, 1, 1]} : vector<8x10x16xf32> to vector<8x8x16xf32>
    %29 = tpu.concatenate %14, %15, %16, %20, %21, %22, %26, %27, %28 in 2 : vector<8x8x16xf32>, vector<8x8x16xf32>, vector<8x8x16xf32>, vector<8x8x16xf32>, vector<8x8x16xf32>, vector<8x8x16xf32>, vector<8x8x16xf32>, vector<8x8x16xf32>, vector<8x8x16xf32> -> vector<8x8x144xf32>
    %30 = arith.truncf %29 : vector<8x8x144xf32> to vector<8x8x144xbf16>
    "tpu.trace_start"() <{level = 10 : i32, message = "hwk,ko->hwo"}> : () -> ()
    %cst = arith.constant dense<0.000000e+00> : vector<8x8x16xf32>
    %31 = tpu.matmul %30, %4, %cst {dimension_numbers = #tpu.dot_dimension_numbers<[2], [0], [0, 1], [1], [0, 0, 0, 1, 1, 1], [], []>} : vector<8x8x144xbf16>, vector<144x16xbf16>, vector<8x8x16xf32> -> vector<8x8x16xf32>
    "tpu.trace_stop"() : () -> ()
    %cst_17 = arith.constant 0.000000e+00 : f32
    %32 = vector.broadcast %cst_17 : f32 to vector<8x8x16xf32>
    %33 = arith.maximumf %31, %32 : vector<8x8x16xf32>
    %c1_i32_18 = arith.constant 1 : i32
    %34 = arith.addi %10, %c1_i32_18 : i32
    %35 = arith.index_cast %34 : i32 to index
    %c1_19 = arith.constant 1 : index
    %c0_20 = arith.constant 0 : index
    %36 = vector.load %arg6[%35, %c1_19, %c0_20] : memref<10x10x16xf32, #tpu.memory_space<vmem>>, vector<8x8x16xf32>
    tpu.vector_store %arg6[%35, %c1_19, %c0_20], %33 {strides = array<i32>} : memref<10x10x16xf32, #tpu.memory_space<vmem>>, vector<8x8x16xf32>,
    %c1_i32_21 = arith.constant 1 : i32
    %c0_i32_22 = arith.constant 0 : i32
    %c1_i32_23 = arith.constant 1 : i32
    %37 = arith.muli %c0_i32_22, %c1_i32_23 : i32
    %c0_i32_24 = arith.constant 0 : i32
    %38 = arith.addi %c0_i32_24, %37 : i32
    %c8_i32_25 = arith.constant 8 : i32
    %39 = arith.muli %38, %c8_i32_25 : i32
    %40 = tpu.assume_multiple %39, 8 : i32
    %c0_i32_26 = arith.constant 0 : i32
    %41 = arith.addi %40, %c0_i32_26 : i32
    %42 = arith.index_cast %41 : i32 to index
    %c0_27 = arith.constant 0 : index
    %c0_28 = arith.constant 0 : index
    %43 = vector.load %arg6[%42, %c0_27, %c0_28] : memref<10x10x16xf32, #tpu.memory_space<vmem>>, vector<8x10x16xf32>
    %44 = vector.extract_strided_slice %43 {offsets = [0, 0, 0], sizes = [8, 8, 16], strides = [1, 1, 1]} : vector<8x10x16xf32> to vector<8x8x16xf32>
    %45 = vector.extract_strided_slice %43 {offsets = [0, 1, 0], sizes = [8, 8, 16], strides = [1, 1, 1]} : vector<8x10x16xf32> to vector<8x8x16xf32>
    %46 = vector.extract_strided_slice %43 {offsets = [0, 2, 0], sizes = [8, 8, 16], strides = [1, 1, 1]} : vector<8x10x16xf32> to vector<8x8x16xf32>
    %c1_i32_29 = arith.constant 1 : i32
    %47 = arith.addi %40, %c1_i32_29 : i32
    %48 = arith.index_cast %47 : i32 to index
    %c0_30 = arith.constant 0 : index
    %c0_31 = arith.constant 0 : index
    %49 = vector.load %arg6[%48, %c0_30, %c0_31] : memref<10x10x16xf32, #tpu.memory_space<vmem>>, vector<8x10x16xf32>
    %50 = vector.extract_strided_slice %49 {offsets = [0, 0, 0], sizes = [8, 8, 16], strides = [1, 1, 1]} : vector<8x10x16xf32> to vector<8x8x16xf32>
    %51 = vector.extract_strided_slice %49 {offsets = [0, 1, 0], sizes = [8, 8, 16], strides = [1, 1, 1]} : vector<8x10x16xf32> to vector<8x8x16xf32>
    %52 = vector.extract_strided_slice %49 {offsets = [0, 2, 0], sizes = [8, 8, 16], strides = [1, 1, 1]} : vector<8x10x16xf32> to vector<8x8x16xf32>
    %c2_i32_32 = arith.constant 2 : i32
    %53 = arith.addi %40, %c2_i32_32 : i32
    %54 = arith.index_cast %53 : i32 to index
    %c0_33 = arith.constant 0 : index
    %c0_34 = arith.constant 0 : index
    %55 = vector.load %arg6[%54, %c0_33, %c0_34] : memref<10x10x16xf32, #tpu.memory_space<vmem>>, vector<8x10x16xf32>
    %56 = vector.extract_strided_slice %55 {offsets = [0, 0, 0], sizes = [8, 8, 16], strides = [1, 1, 1]} : vector<8x10x16xf32> to vector<8x8x16xf32>
    %57 = vector.extract_strided_slice %55 {offsets = [0, 1, 0], sizes = [8, 8, 16], strides = [1, 1, 1]} : vector<8x10x16xf32> to vector<8x8x16xf32>
    %58 = vector.extract_strided_slice %55 {offsets = [0, 2, 0], sizes = [8, 8, 16], strides = [1, 1, 1]} : vector<8x10x16xf32> to vector<8x8x16xf32>
    %59 = tpu.concatenate %44, %45, %46, %50, %51, %52, %56, %57, %58 in 2 : vector<8x8x16xf32>, vector<8x8x16xf32>, vector<8x8x16xf32>, vector<8x8x16xf32>, vector<8x8x16xf32>, vector<8x8x16xf32>, vector<8x8x16xf32>, vector<8x8x16xf32>, vector<8x8x16xf32> -> vector<8x8x144xf32>
    %60 = arith.truncf %59 : vector<8x8x144xf32> to vector<8x8x144xbf16>
    "tpu.trace_start"() <{level = 10 : i32, message = "hwk,ko->hwo"}> : () -> ()
    %cst_35 = arith.constant dense<0.000000e+00> : vector<8x8x16xf32>
    %61 = tpu.matmul %60, %6, %cst_35 {dimension_numbers = #tpu.dot_dimension_numbers<[2], [0], [0, 1], [1], [0, 0, 0, 1, 1, 1], [], []>} : vector<8x8x144xbf16>, vector<144x16xbf16>, vector<8x8x16xf32> -> vector<8x8x16xf32>
    "tpu.trace_stop"() : () -> ()
    %c1_i32_36 = arith.constant 1 : i32
    %62 = arith.addi %40, %c1_i32_36 : i32
    %63 = arith.index_cast %62 : i32 to index
    %c1_37 = arith.constant 1 : index
    %c0_38 = arith.constant 0 : index
    %64 = vector.load %arg5[%63, %c1_37, %c0_38] : memref<10x10x16xf32, #tpu.memory_space<vmem>>, vector<8x8x16xf32>
    %65 = arith.addf %61, %64 : vector<8x8x16xf32>
    %c1_i32_39 = arith.constant 1 : i32
    %66 = arith.addi %40, %c1_i32_39 : i32
    %67 = arith.index_cast %66 : i32 to index
    %c1_40 = arith.constant 1 : index
    %c0_41 = arith.constant 0 : index
    %68 = vector.load %arg5[%67, %c1_40, %c0_41] : memref<10x10x16xf32, #tpu.memory_space<vmem>>, vector<8x8x16xf32>
    tpu.vector_store %arg5[%67, %c1_40, %c0_41], %65 {strides = array<i32>} : memref<10x10x16xf32, #tpu.memory_space<vmem>>, vector<8x8x16xf32>,
    %c1_i32_42 = arith.constant 1 : i32
    %c1_i32_43 = arith.constant 1 : i32
    %69 = arith.cmpi eq, %arg1, %c1_i32_43 : i32
    %70 = arith.extui %69 : i1 to i32
    %c0_i32_44 = arith.constant 0 : i32
    %71 = arith.cmpi ne, %70, %c0_i32_44 : i32
    scf.if %71 {
      %c1_45 = arith.constant 1 : index
      %c1_46 = arith.constant 1 : index
      %c0_47 = arith.constant 0 : index
      %72 = vector.load %arg5[%c1_45, %c1_46, %c0_47] : memref<10x10x16xf32, #tpu.memory_space<vmem>>, vector<8x8x16xf32>
      %c0_48 = arith.constant 0 : index
      %c0_49 = arith.constant 0 : index
      %c0_50 = arith.constant 0 : index
      %c0_51 = arith.constant 0 : index
      %73 = vector.load %arg4[%c0_48, %c0_49, %c0_50, %c0_51] : memref<1x8x8x16xf32, #tpu.memory_space<vmem>>, vector<1x8x8x16xf32>
      %74 = vector.shape_cast %73 : vector<1x8x8x16xf32> to vector<8x8x16xf32>
      %75 = vector.shape_cast %72 : vector<8x8x16xf32> to vector<1x8x8x16xf32>
      tpu.vector_store %arg4[%c0_48, %c0_49, %c0_50, %c0_51], %75 {strides = array<i32>} : memref<1x8x8x16xf32, #tpu.memory_space<vmem>>, vector<1x8x8x16xf32>,
    } else {
    }
    return
  }
  func.func @transform_0(%arg0: i32, %arg1: i32) -> (i32, i32, i32, i32) {
    %c0_i32 = arith.constant 0 : i32
    %c0_i32_0 = arith.constant 0 : i32
    %c0_i32_1 = arith.constant 0 : i32
    %c0_i32_2 = arith.constant 0 : i32
    return %arg0, %c0_i32, %c0_i32_0, %c0_i32_1 : i32, i32, i32, i32
  }
  func.func @transform_1(%arg0: i32, %arg1: i32) -> (i32, i32, i32, i32) {
    %c0_i32 = arith.constant 0 : i32
    %c0_i32_0 = arith.constant 0 : i32
    %c0_i32_1 = arith.constant 0 : i32
    %c0_i32_2 = arith.constant 0 : i32
    return %arg1, %c0_i32, %c0_i32_0, %c0_i32_1 : i32, i32, i32, i32
  }
  func.func @transform_2(%arg0: i32, %arg1: i32) -> (i32, i32, i32, i32) {
    %c0_i32 = arith.constant 0 : i32
    %c0_i32_0 = arith.constant 0 : i32
    %c0_i32_1 = arith.constant 0 : i32
    %c0_i32_2 = arith.constant 0 : i32
    return %arg0, %c0_i32, %c0_i32_0, %c0_i32_1 : i32, i32, i32, i32
  }
}

module attributes {stable_mosaic.version = 11 : i64} {
  func.func @kernel(%arg0: i32, %arg1: memref<1x8x8x3xf32, #tpu.memory_space<vmem>>, %arg2: memref<27x16xbf16, #tpu.memory_space<vmem>>, %arg3: memref<1x8x8x16xf32, #tpu.memory_space<vmem>>, %arg4: memref<10x10x3xf32, #tpu.memory_space<vmem>>) attributes {dimension_semantics = [#tpu.dimension_semantics<parallel>], iteration_bounds = array<i64: 2>, scalar_prefetch = 0 : i64, scratch_operands = 1 : i64, tpu.core_type = #tpu.core_type<tc>, window_params = [{transform_indices = @transform_0, window_bounds = array<i64: 1, 8, 8, 3>}, {pipeline_mode = #tpu.pipeline_mode<synchronous>, transform_indices = @transform_1, window_bounds = array<i64: 27, 16>}, {transform_indices = @transform_2, window_bounds = array<i64: 1, 8, 8, 16>}]} {
    %cst = arith.constant 0.000000e+00 : f32
    %0 = vector.broadcast %cst : f32 to vector<10x10x3xf32>
    %c0 = arith.constant 0 : index
    %c0_0 = arith.constant 0 : index
    %c0_1 = arith.constant 0 : index
    %1 = vector.load %arg4[%c0, %c0_0, %c0_1] : memref<10x10x3xf32, #tpu.memory_space<vmem>>, vector<10x10x3xf32>
    tpu.vector_store %arg4[%c0, %c0_0, %c0_1], %0 {strides = array<i32>} : memref<10x10x3xf32, #tpu.memory_space<vmem>>, vector<10x10x3xf32>,
    %c0_2 = arith.constant 0 : index
    %c0_3 = arith.constant 0 : index
    %c0_4 = arith.constant 0 : index
    %c0_5 = arith.constant 0 : index
    %2 = vector.load %arg1[%c0_2, %c0_3, %c0_4, %c0_5] : memref<1x8x8x3xf32, #tpu.memory_space<vmem>>, vector<1x8x8x3xf32>
    %3 = vector.shape_cast %2 : vector<1x8x8x3xf32> to vector<8x8x3xf32>
    %c1 = arith.constant 1 : index
    %c1_6 = arith.constant 1 : index
    %c0_7 = arith.constant 0 : index
    %4 = vector.load %arg4[%c1, %c1_6, %c0_7] : memref<10x10x3xf32, #tpu.memory_space<vmem>>, vector<8x8x3xf32>
    tpu.vector_store %arg4[%c1, %c1_6, %c0_7], %3 {strides = array<i32>} : memref<10x10x3xf32, #tpu.memory_space<vmem>>, vector<8x8x3xf32>,
    %c0_8 = arith.constant 0 : index
    %c0_9 = arith.constant 0 : index
    %5 = vector.load %arg2[%c0_8, %c0_9] : memref<27x16xbf16, #tpu.memory_space<vmem>>, vector<27x16xbf16>
    %c0_i32 = arith.constant 0 : i32
    %c1_i32 = arith.constant 1 : i32
    %6 = arith.muli %c0_i32, %c1_i32 : i32
    %c0_i32_10 = arith.constant 0 : i32
    %7 = arith.addi %c0_i32_10, %6 : i32
    %c8_i32 = arith.constant 8 : i32
    %8 = arith.muli %7, %c8_i32 : i32
    %9 = tpu.assume_multiple %8, 8 : i32
    %c0_i32_11 = arith.constant 0 : i32
    %10 = arith.addi %9, %c0_i32_11 : i32
    %11 = arith.index_cast %10 : i32 to index
    %c0_12 = arith.constant 0 : index
    %c0_13 = arith.constant 0 : index
    %12 = vector.load %arg4[%11, %c0_12, %c0_13] : memref<10x10x3xf32, #tpu.memory_space<vmem>>, vector<8x10x3xf32>
    %13 = vector.extract_strided_slice %12 {offsets = [0, 0, 0], sizes = [8, 8, 3], strides = [1, 1, 1]} : vector<8x10x3xf32> to vector<8x8x3xf32>
    %14 = vector.extract_strided_slice %12 {offsets = [0, 1, 0], sizes = [8, 8, 3], strides = [1, 1, 1]} : vector<8x10x3xf32> to vector<8x8x3xf32>
    %15 = vector.extract_strided_slice %12 {offsets = [0, 2, 0], sizes = [8, 8, 3], strides = [1, 1, 1]} : vector<8x10x3xf32> to vector<8x8x3xf32>
    %c1_i32_14 = arith.constant 1 : i32
    %16 = arith.addi %9, %c1_i32_14 : i32
    %17 = arith.index_cast %16 : i32 to index
    %c0_15 = arith.constant 0 : index
    %c0_16 = arith.constant 0 : index
    %18 = vector.load %arg4[%17, %c0_15, %c0_16] : memref<10x10x3xf32, #tpu.memory_space<vmem>>, vector<8x10x3xf32>
    %19 = vector.extract_strided_slice %18 {offsets = [0, 0, 0], sizes = [8, 8, 3], strides = [1, 1, 1]} : vector<8x10x3xf32> to vector<8x8x3xf32>
    %20 = vector.extract_strided_slice %18 {offsets = [0, 1, 0], sizes = [8, 8, 3], strides = [1, 1, 1]} : vector<8x10x3xf32> to vector<8x8x3xf32>
    %21 = vector.extract_strided_slice %18 {offsets = [0, 2, 0], sizes = [8, 8, 3], strides = [1, 1, 1]} : vector<8x10x3xf32> to vector<8x8x3xf32>
    %c2_i32 = arith.constant 2 : i32
    %22 = arith.addi %9, %c2_i32 : i32
    %23 = arith.index_cast %22 : i32 to index
    %c0_17 = arith.constant 0 : index
    %c0_18 = arith.constant 0 : index
    %24 = vector.load %arg4[%23, %c0_17, %c0_18] : memref<10x10x3xf32, #tpu.memory_space<vmem>>, vector<8x10x3xf32>
    %25 = vector.extract_strided_slice %24 {offsets = [0, 0, 0], sizes = [8, 8, 3], strides = [1, 1, 1]} : vector<8x10x3xf32> to vector<8x8x3xf32>
    %26 = vector.extract_strided_slice %24 {offsets = [0, 1, 0], sizes = [8, 8, 3], strides = [1, 1, 1]} : vector<8x10x3xf32> to vector<8x8x3xf32>
    %27 = vector.extract_strided_slice %24 {offsets = [0, 2, 0], sizes = [8, 8, 3], strides = [1, 1, 1]} : vector<8x10x3xf32> to vector<8x8x3xf32>
    %28 = tpu.concatenate %13, %14, %15, %19, %20, %21, %25, %26, %27 in 2 : vector<8x8x3xf32>, vector<8x8x3xf32>, vector<8x8x3xf32>, vector<8x8x3xf32>, vector<8x8x3xf32>, vector<8x8x3xf32>, vector<8x8x3xf32>, vector<8x8x3xf32>, vector<8x8x3xf32> -> vector<8x8x27xf32>
    %29 = arith.truncf %28 : vector<8x8x27xf32> to vector<8x8x27xbf16>
    "tpu.trace_start"() <{level = 10 : i32, message = "hwk,ko->hwo"}> : () -> ()
    %cst_19 = arith.constant dense<0.000000e+00> : vector<8x8x16xf32>
    %30 = tpu.matmul %29, %5, %cst_19 {dimension_numbers = #tpu.dot_dimension_numbers<[2], [0], [0, 1], [1], [0, 0, 0, 1, 1, 1], [], []>} : vector<8x8x27xbf16>, vector<27x16xbf16>, vector<8x8x16xf32> -> vector<8x8x16xf32>
    "tpu.trace_stop"() : () -> ()
    %cst_20 = arith.constant 0.000000e+00 : f32
    %31 = vector.broadcast %cst_20 : f32 to vector<8x8x16xf32>
    %32 = arith.maximumf %30, %31 : vector<8x8x16xf32>
    %c0_21 = arith.constant 0 : index
    %33 = arith.index_cast %9 : i32 to index
    %c0_22 = arith.constant 0 : index
    %c0_23 = arith.constant 0 : index
    %34 = vector.load %arg3[%c0_21, %33, %c0_22, %c0_23] : memref<1x8x8x16xf32, #tpu.memory_space<vmem>>, vector<1x8x8x16xf32>
    %35 = vector.shape_cast %34 : vector<1x8x8x16xf32> to vector<8x8x16xf32>
    %36 = vector.shape_cast %32 : vector<8x8x16xf32> to vector<1x8x8x16xf32>
    tpu.vector_store %arg3[%c0_21, %33, %c0_22, %c0_23], %36 {strides = array<i32>} : memref<1x8x8x16xf32, #tpu.memory_space<vmem>>, vector<1x8x8x16xf32>,
    %c1_i32_24 = arith.constant 1 : i32
    return
  }
  func.func @transform_0(%arg0: i32) -> (i32, i32, i32, i32) {
    %c0_i32 = arith.constant 0 : i32
    %c0_i32_0 = arith.constant 0 : i32
    %c0_i32_1 = arith.constant 0 : i32
    %c0_i32_2 = arith.constant 0 : i32
    return %arg0, %c0_i32, %c0_i32_0, %c0_i32_1 : i32, i32, i32, i32
  }
  func.func @transform_1(%arg0: i32) -> (i32, i32) {
    %c0_i32 = arith.constant 0 : i32
    %c0_i32_0 = arith.constant 0 : i32
    %c0_i32_1 = arith.constant 0 : i32
    return %c0_i32, %c0_i32_0 : i32, i32
  }
  func.func @transform_2(%arg0: i32) -> (i32, i32, i32, i32) {
    %c0_i32 = arith.constant 0 : i32
    %c0_i32_0 = arith.constant 0 : i32
    %c0_i32_1 = arith.constant 0 : i32
    %c0_i32_2 = arith.constant 0 : i32
    return %arg0, %c0_i32, %c0_i32_0, %c0_i32_1 : i32, i32, i32, i32
  }
}

module attributes {stable_mosaic.version = 11 : i64} {
  func.func @kernel(%arg0: i32, %arg1: memref<1x8x8x16xf32, #tpu.memory_space<vmem>>, %arg2: memref<144x64xbf16, #tpu.memory_space<vmem>>, %arg3: memref<1x8x8x64xf32, #tpu.memory_space<vmem>>, %arg4: memref<10x10x16xf32, #tpu.memory_space<vmem>>) attributes {dimension_semantics = [#tpu.dimension_semantics<parallel>], iteration_bounds = array<i64: 2>, scalar_prefetch = 0 : i64, scratch_operands = 1 : i64, tpu.core_type = #tpu.core_type<tc>, window_params = [{transform_indices = @transform_0, window_bounds = array<i64: 1, 8, 8, 16>}, {pipeline_mode = #tpu.pipeline_mode<synchronous>, transform_indices = @transform_1, window_bounds = array<i64: 144, 64>}, {transform_indices = @transform_2, window_bounds = array<i64: 1, 8, 8, 64>}]} {
    %cst = arith.constant 0.000000e+00 : f32
    %0 = vector.broadcast %cst : f32 to vector<10x10x16xf32>
    %c0 = arith.constant 0 : index
    %c0_0 = arith.constant 0 : index
    %c0_1 = arith.constant 0 : index
    %1 = vector.load %arg4[%c0, %c0_0, %c0_1] : memref<10x10x16xf32, #tpu.memory_space<vmem>>, vector<10x10x16xf32>
    tpu.vector_store %arg4[%c0, %c0_0, %c0_1], %0 {strides = array<i32>} : memref<10x10x16xf32, #tpu.memory_space<vmem>>, vector<10x10x16xf32>,
    %c0_2 = arith.constant 0 : index
    %c0_3 = arith.constant 0 : index
    %c0_4 = arith.constant 0 : index
    %c0_5 = arith.constant 0 : index
    %2 = vector.load %arg1[%c0_2, %c0_3, %c0_4, %c0_5] : memref<1x8x8x16xf32, #tpu.memory_space<vmem>>, vector<1x8x8x16xf32>
    %3 = vector.shape_cast %2 : vector<1x8x8x16xf32> to vector<8x8x16xf32>
    %c1 = arith.constant 1 : index
    %c1_6 = arith.constant 1 : index
    %c0_7 = arith.constant 0 : index
    %4 = vector.load %arg4[%c1, %c1_6, %c0_7] : memref<10x10x16xf32, #tpu.memory_space<vmem>>, vector<8x8x16xf32>
    tpu.vector_store %arg4[%c1, %c1_6, %c0_7], %3 {strides = array<i32>} : memref<10x10x16xf32, #tpu.memory_space<vmem>>, vector<8x8x16xf32>,
    %c0_8 = arith.constant 0 : index
    %c0_9 = arith.constant 0 : index
    %5 = vector.load %arg2[%c0_8, %c0_9] : memref<144x64xbf16, #tpu.memory_space<vmem>>, vector<144x64xbf16>
    %c0_i32 = arith.constant 0 : i32
    %c1_i32 = arith.constant 1 : i32
    %6 = arith.muli %c0_i32, %c1_i32 : i32
    %c0_i32_10 = arith.constant 0 : i32
    %7 = arith.addi %c0_i32_10, %6 : i32
    %c8_i32 = arith.constant 8 : i32
    %8 = arith.muli %7, %c8_i32 : i32
    %9 = tpu.assume_multiple %8, 8 : i32
    %c0_i32_11 = arith.constant 0 : i32
    %10 = arith.addi %9, %c0_i32_11 : i32
    %11 = arith.index_cast %10 : i32 to index
    %c0_12 = arith.constant 0 : index
    %c0_13 = arith.constant 0 : index
    %12 = vector.load %arg4[%11, %c0_12, %c0_13] : memref<10x10x16xf32, #tpu.memory_space<vmem>>, vector<8x10x16xf32>
    %13 = vector.extract_strided_slice %12 {offsets = [0, 0, 0], sizes = [8, 8, 16], strides = [1, 1, 1]} : vector<8x10x16xf32> to vector<8x8x16xf32>
    %14 = vector.extract_strided_slice %12 {offsets = [0, 1, 0], sizes = [8, 8, 16], strides = [1, 1, 1]} : vector<8x10x16xf32> to vector<8x8x16xf32>
    %15 = vector.extract_strided_slice %12 {offsets = [0, 2, 0], sizes = [8, 8, 16], strides = [1, 1, 1]} : vector<8x10x16xf32> to vector<8x8x16xf32>
    %c1_i32_14 = arith.constant 1 : i32
    %16 = arith.addi %9, %c1_i32_14 : i32
    %17 = arith.index_cast %16 : i32 to index
    %c0_15 = arith.constant 0 : index
    %c0_16 = arith.constant 0 : index
    %18 = vector.load %arg4[%17, %c0_15, %c0_16] : memref<10x10x16xf32, #tpu.memory_space<vmem>>, vector<8x10x16xf32>
    %19 = vector.extract_strided_slice %18 {offsets = [0, 0, 0], sizes = [8, 8, 16], strides = [1, 1, 1]} : vector<8x10x16xf32> to vector<8x8x16xf32>
    %20 = vector.extract_strided_slice %18 {offsets = [0, 1, 0], sizes = [8, 8, 16], strides = [1, 1, 1]} : vector<8x10x16xf32> to vector<8x8x16xf32>
    %21 = vector.extract_strided_slice %18 {offsets = [0, 2, 0], sizes = [8, 8, 16], strides = [1, 1, 1]} : vector<8x10x16xf32> to vector<8x8x16xf32>
    %c2_i32 = arith.constant 2 : i32
    %22 = arith.addi %9, %c2_i32 : i32
    %23 = arith.index_cast %22 : i32 to index
    %c0_17 = arith.constant 0 : index
    %c0_18 = arith.constant 0 : index
    %24 = vector.load %arg4[%23, %c0_17, %c0_18] : memref<10x10x16xf32, #tpu.memory_space<vmem>>, vector<8x10x16xf32>
    %25 = vector.extract_strided_slice %24 {offsets = [0, 0, 0], sizes = [8, 8, 16], strides = [1, 1, 1]} : vector<8x10x16xf32> to vector<8x8x16xf32>
    %26 = vector.extract_strided_slice %24 {offsets = [0, 1, 0], sizes = [8, 8, 16], strides = [1, 1, 1]} : vector<8x10x16xf32> to vector<8x8x16xf32>
    %27 = vector.extract_strided_slice %24 {offsets = [0, 2, 0], sizes = [8, 8, 16], strides = [1, 1, 1]} : vector<8x10x16xf32> to vector<8x8x16xf32>
    %28 = tpu.concatenate %13, %14, %15, %19, %20, %21, %25, %26, %27 in 2 : vector<8x8x16xf32>, vector<8x8x16xf32>, vector<8x8x16xf32>, vector<8x8x16xf32>, vector<8x8x16xf32>, vector<8x8x16xf32>, vector<8x8x16xf32>, vector<8x8x16xf32>, vector<8x8x16xf32> -> vector<8x8x144xf32>
    %29 = arith.truncf %28 : vector<8x8x144xf32> to vector<8x8x144xbf16>
    "tpu.trace_start"() <{level = 10 : i32, message = "hwk,ko->hwo"}> : () -> ()
    %cst_19 = arith.constant dense<0.000000e+00> : vector<8x8x64xf32>
    %30 = tpu.matmul %29, %5, %cst_19 {dimension_numbers = #tpu.dot_dimension_numbers<[2], [0], [0, 1], [1], [0, 0, 0, 1, 1, 1], [], []>} : vector<8x8x144xbf16>, vector<144x64xbf16>, vector<8x8x64xf32> -> vector<8x8x64xf32>
    "tpu.trace_stop"() : () -> ()
    %cst_20 = arith.constant 0.000000e+00 : f32
    %31 = vector.broadcast %cst_20 : f32 to vector<8x8x64xf32>
    %32 = arith.maximumf %30, %31 : vector<8x8x64xf32>
    %c0_21 = arith.constant 0 : index
    %33 = arith.index_cast %9 : i32 to index
    %c0_22 = arith.constant 0 : index
    %c0_23 = arith.constant 0 : index
    %34 = vector.load %arg3[%c0_21, %33, %c0_22, %c0_23] : memref<1x8x8x64xf32, #tpu.memory_space<vmem>>, vector<1x8x8x64xf32>
    %35 = vector.shape_cast %34 : vector<1x8x8x64xf32> to vector<8x8x64xf32>
    %36 = vector.shape_cast %32 : vector<8x8x64xf32> to vector<1x8x8x64xf32>
    tpu.vector_store %arg3[%c0_21, %33, %c0_22, %c0_23], %36 {strides = array<i32>} : memref<1x8x8x64xf32, #tpu.memory_space<vmem>>, vector<1x8x8x64xf32>,
    %c1_i32_24 = arith.constant 1 : i32
    return
  }
  func.func @transform_0(%arg0: i32) -> (i32, i32, i32, i32) {
    %c0_i32 = arith.constant 0 : i32
    %c0_i32_0 = arith.constant 0 : i32
    %c0_i32_1 = arith.constant 0 : i32
    %c0_i32_2 = arith.constant 0 : i32
    return %arg0, %c0_i32, %c0_i32_0, %c0_i32_1 : i32, i32, i32, i32
  }
  func.func @transform_1(%arg0: i32) -> (i32, i32) {
    %c0_i32 = arith.constant 0 : i32
    %c0_i32_0 = arith.constant 0 : i32
    %c0_i32_1 = arith.constant 0 : i32
    return %c0_i32, %c0_i32_0 : i32, i32
  }
  func.func @transform_2(%arg0: i32) -> (i32, i32, i32, i32) {
    %c0_i32 = arith.constant 0 : i32
    %c0_i32_0 = arith.constant 0 : i32
    %c0_i32_1 = arith.constant 0 : i32
    %c0_i32_2 = arith.constant 0 : i32
    return %arg0, %c0_i32, %c0_i32_0, %c0_i32_1 : i32, i32, i32, i32
  }
}

module attributes {stable_mosaic.version = 11 : i64} {
  func.func @kernel(%arg0: i32, %arg1: memref<1x16x16x16xf32, #tpu.memory_space<vmem>>, %arg2: memref<144x16xbf16, #tpu.memory_space<vmem>>, %arg3: memref<144x3xbf16, #tpu.memory_space<vmem>>, %arg4: memref<1x16x16x3xf32, #tpu.memory_space<vmem>>, %arg5: memref<1x16x16x3xf32, #tpu.memory_space<vmem>>, %arg6: memref<18x18x16xf32, #tpu.memory_space<vmem>>, %arg7: memref<18x18x16xf32, #tpu.memory_space<vmem>>) attributes {dimension_semantics = [#tpu.dimension_semantics<parallel>], iteration_bounds = array<i64: 2>, scalar_prefetch = 0 : i64, scratch_operands = 2 : i64, tpu.core_type = #tpu.core_type<tc>, window_params = [{transform_indices = @transform_0, window_bounds = array<i64: 1, 16, 16, 16>}, {pipeline_mode = #tpu.pipeline_mode<synchronous>, transform_indices = @transform_1, window_bounds = array<i64: 144, 16>}, {pipeline_mode = #tpu.pipeline_mode<synchronous>, transform_indices = @transform_2, window_bounds = array<i64: 144, 3>}, {transform_indices = @transform_3, window_bounds = array<i64: 1, 16, 16, 3>}, {transform_indices = @transform_4, window_bounds = array<i64: 1, 16, 16, 3>}]} {
    %cst = arith.constant 0.000000e+00 : f32
    %0 = vector.broadcast %cst : f32 to vector<18x18x16xf32>
    %c0 = arith.constant 0 : index
    %c0_0 = arith.constant 0 : index
    %c0_1 = arith.constant 0 : index
    %1 = vector.load %arg6[%c0, %c0_0, %c0_1] : memref<18x18x16xf32, #tpu.memory_space<vmem>>, vector<18x18x16xf32>
    tpu.vector_store %arg6[%c0, %c0_0, %c0_1], %0 {strides = array<i32>} : memref<18x18x16xf32, #tpu.memory_space<vmem>>, vector<18x18x16xf32>,
    %cst_2 = arith.constant 0.000000e+00 : f32
    %2 = vector.broadcast %cst_2 : f32 to vector<18x18x16xf32>
    %c0_3 = arith.constant 0 : index
    %c0_4 = arith.constant 0 : index
    %c0_5 = arith.constant 0 : index
    %3 = vector.load %arg7[%c0_3, %c0_4, %c0_5] : memref<18x18x16xf32, #tpu.memory_space<vmem>>, vector<18x18x16xf32>
    tpu.vector_store %arg7[%c0_3, %c0_4, %c0_5], %2 {strides = array<i32>} : memref<18x18x16xf32, #tpu.memory_space<vmem>>, vector<18x18x16xf32>,
    %c0_6 = arith.constant 0 : index
    %c0_7 = arith.constant 0 : index
    %c0_8 = arith.constant 0 : index
    %c0_9 = arith.constant 0 : index
    %4 = vector.load %arg1[%c0_6, %c0_7, %c0_8, %c0_9] : memref<1x16x16x16xf32, #tpu.memory_space<vmem>>, vector<1x16x16x16xf32>
    %5 = vector.shape_cast %4 : vector<1x16x16x16xf32> to vector<16x16x16xf32>
    %c1 = arith.constant 1 : index
    %c1_10 = arith.constant 1 : index
    %c0_11 = arith.constant 0 : index
    %6 = vector.load %arg6[%c1, %c1_10, %c0_11] : memref<18x18x16xf32, #tpu.memory_space<vmem>>, vector<16x16x16xf32>
    tpu.vector_store %arg6[%c1, %c1_10, %c0_11], %5 {strides = array<i32>} : memref<18x18x16xf32, #tpu.memory_space<vmem>>, vector<16x16x16xf32>,
    %c0_12 = arith.constant 0 : index
    %c0_13 = arith.constant 0 : index
    %7 = vector.load %arg2[%c0_12, %c0_13] : memref<144x16xbf16, #tpu.memory_space<vmem>>, vector<144x16xbf16>
    %c0_14 = arith.constant 0 : index
    %c0_15 = arith.constant 0 : index
    %8 = vector.load %arg3[%c0_14, %c0_15] : memref<144x3xbf16, #tpu.memory_space<vmem>>, vector<144x3xbf16>
    %c0_i32 = arith.constant 0 : i32
    %c2_i32 = arith.constant 2 : i32
    %9 = arith.addi %c0_i32, %c2_i32 : i32
    %c1_i32 = arith.constant 1 : i32
    scf.for %arg8 = %c0_i32 to %9 step %c1_i32  : i32 {
      %c1_i32_21 = arith.constant 1 : i32
      %11 = arith.muli %arg8, %c1_i32_21 : i32
      %c0_i32_22 = arith.constant 0 : i32
      %12 = arith.addi %c0_i32_22, %11 : i32
      %c8_i32 = arith.constant 8 : i32
      %13 = arith.muli %12, %c8_i32 : i32
      %14 = tpu.assume_multiple %13, 8 : i32
      %c0_i32_23 = arith.constant 0 : i32
      %15 = arith.addi %14, %c0_i32_23 : i32
      %16 = arith.index_cast %15 : i32 to index
      %c0_24 = arith.constant 0 : index
      %c0_25 = arith.constant 0 : index
      %17 = vector.load %arg6[%16, %c0_24, %c0_25] : memref<18x18x16xf32, #tpu.memory_space<vmem>>, vector<8x18x16xf32>
      %18 = vector.extract_strided_slice %17 {offsets = [0, 0, 0], sizes = [8, 16, 16], strides = [1, 1, 1]} : vector<8x18x16xf32> to vector<8x16x16xf32>
      %19 = vector.extract_strided_slice %17 {offsets = [0, 1, 0], sizes = [8, 16, 16], strides = [1, 1, 1]} : vector<8x18x16xf32> to vector<8x16x16xf32>
      %20 = vector.extract_strided_slice %17 {offsets = [0, 2, 0], sizes = [8, 16, 16], strides = [1, 1, 1]} : vector<8x18x16xf32> to vector<8x16x16xf32>
      %c1_i32_26 = arith.constant 1 : i32
      %21 = arith.addi %14, %c1_i32_26 : i32
      %22 = arith.index_cast %21 : i32 to index
      %c0_27 = arith.constant 0 : index
      %c0_28 = arith.constant 0 : index
      %23 = vector.load %arg6[%22, %c0_27, %c0_28] : memref<18x18x16xf32, #tpu.memory_space<vmem>>, vector<8x18x16xf32>
      %24 = vector.extract_strided_slice %23 {offsets = [0, 0, 0], sizes = [8, 16, 16], strides = [1, 1, 1]} : vector<8x18x16xf32> to vector<8x16x16xf32>
      %25 = vector.extract_strided_slice %23 {offsets = [0, 1, 0], sizes = [8, 16, 16], strides = [1, 1, 1]} : vector<8x18x16xf32> to vector<8x16x16xf32>
      %26 = vector.extract_strided_slice %23 {offsets = [0, 2, 0], sizes = [8, 16, 16], strides = [1, 1, 1]} : vector<8x18x16xf32> to vector<8x16x16xf32>
      %c2_i32_29 = arith.constant 2 : i32
      %27 = arith.addi %14, %c2_i32_29 : i32
      %28 = arith.index_cast %27 : i32 to index
      %c0_30 = arith.constant 0 : index
      %c0_31 = arith.constant 0 : index
      %29 = vector.load %arg6[%28, %c0_30, %c0_31] : memref<18x18x16xf32, #tpu.memory_space<vmem>>, vector<8x18x16xf32>
      %30 = vector.extract_strided_slice %29 {offsets = [0, 0, 0], sizes = [8, 16, 16], strides = [1, 1, 1]} : vector<8x18x16xf32> to vector<8x16x16xf32>
      %31 = vector.extract_strided_slice %29 {offsets = [0, 1, 0], sizes = [8, 16, 16], strides = [1, 1, 1]} : vector<8x18x16xf32> to vector<8x16x16xf32>
      %32 = vector.extract_strided_slice %29 {offsets = [0, 2, 0], sizes = [8, 16, 16], strides = [1, 1, 1]} : vector<8x18x16xf32> to vector<8x16x16xf32>
      %33 = tpu.concatenate %18, %19, %20, %24, %25, %26, %30, %31, %32 in 2 : vector<8x16x16xf32>, vector<8x16x16xf32>, vector<8x16x16xf32>, vector<8x16x16xf32>, vector<8x16x16xf32>, vector<8x16x16xf32>, vector<8x16x16xf32>, vector<8x16x16xf32>, vector<8x16x16xf32> -> vector<8x16x144xf32>
      %34 = arith.truncf %33 : vector<8x16x144xf32> to vector<8x16x144xbf16>
      "tpu.trace_start"() <{level = 10 : i32, message = "hwk,ko->hwo"}> : () -> ()
      %cst_32 = arith.constant dense<0.000000e+00> : vector<8x16x16xf32>
      %35 = tpu.matmul %34, %7, %cst_32 {dimension_numbers = #tpu.dot_dimension_numbers<[2], [0], [0, 1], [1], [0, 0, 0, 1, 1, 1], [], []>} : vector<8x16x144xbf16>, vector<144x16xbf16>, vector<8x16x16xf32> -> vector<8x16x16xf32>
      "tpu.trace_stop"() : () -> ()
      %cst_33 = arith.constant 0.000000e+00 : f32
      %36 = vector.broadcast %cst_33 : f32 to vector<8x16x16xf32>
      %37 = arith.maximumf %35, %36 : vector<8x16x16xf32>
      %c1_i32_34 = arith.constant 1 : i32
      %38 = arith.addi %14, %c1_i32_34 : i32
      %39 = arith.index_cast %38 : i32 to index
      %c1_35 = arith.constant 1 : index
      %c0_36 = arith.constant 0 : index
      %40 = vector.load %arg7[%39, %c1_35, %c0_36] : memref<18x18x16xf32, #tpu.memory_space<vmem>>, vector<8x16x16xf32>
      tpu.vector_store %arg7[%39, %c1_35, %c0_36], %37 {strides = array<i32>} : memref<18x18x16xf32, #tpu.memory_space<vmem>>, vector<8x16x16xf32>,
    }
    %c2_i32_16 = arith.constant 2 : i32
    %c0_i32_17 = arith.constant 0 : i32
    %c2_i32_18 = arith.constant 2 : i32
    %10 = arith.addi %c0_i32_17, %c2_i32_18 : i32
    %c1_i32_19 = arith.constant 1 : i32
    scf.for %arg8 = %c0_i32_17 to %10 step %c1_i32_19  : i32 {
      %c1_i32_21 = arith.constant 1 : i32
      %11 = arith.muli %arg8, %c1_i32_21 : i32
      %c0_i32_22 = arith.constant 0 : i32
      %12 = arith.addi %c0_i32_22, %11 : i32
      %c8_i32 = arith.constant 8 : i32
      %13 = arith.muli %12, %c8_i32 : i32
      %14 = tpu.assume_multiple %13, 8 : i32
      %c0_i32_23 = arith.constant 0 : i32
      %15 = arith.addi %14, %c0_i32_23 : i32
      %16 = arith.index_cast %15 : i32 to index
      %c0_24 = arith.constant 0 : index
      %c0_25 = arith.constant 0 : index
      %17 = vector.load %arg7[%16, %c0_24, %c0_25] : memref<18x18x16xf32, #tpu.memory_space<vmem>>, vector<8x18x16xf32>
      %18 = vector.extract_strided_slice %17 {offsets = [0, 0, 0], sizes = [8, 16, 16], strides = [1, 1, 1]} : vector<8x18x16xf32> to vector<8x16x16xf32>
      %19 = vector.extract_strided_slice %17 {offsets = [0, 1, 0], sizes = [8, 16, 16], strides = [1, 1, 1]} : vector<8x18x16xf32> to vector<8x16x16xf32>
      %20 = vector.extract_strided_slice %17 {offsets = [0, 2, 0], sizes = [8, 16, 16], strides = [1, 1, 1]} : vector<8x18x16xf32> to vector<8x16x16xf32>
      %c1_i32_26 = arith.constant 1 : i32
      %21 = arith.addi %14, %c1_i32_26 : i32
      %22 = arith.index_cast %21 : i32 to index
      %c0_27 = arith.constant 0 : index
      %c0_28 = arith.constant 0 : index
      %23 = vector.load %arg7[%22, %c0_27, %c0_28] : memref<18x18x16xf32, #tpu.memory_space<vmem>>, vector<8x18x16xf32>
      %24 = vector.extract_strided_slice %23 {offsets = [0, 0, 0], sizes = [8, 16, 16], strides = [1, 1, 1]} : vector<8x18x16xf32> to vector<8x16x16xf32>
      %25 = vector.extract_strided_slice %23 {offsets = [0, 1, 0], sizes = [8, 16, 16], strides = [1, 1, 1]} : vector<8x18x16xf32> to vector<8x16x16xf32>
      %26 = vector.extract_strided_slice %23 {offsets = [0, 2, 0], sizes = [8, 16, 16], strides = [1, 1, 1]} : vector<8x18x16xf32> to vector<8x16x16xf32>
      %c2_i32_29 = arith.constant 2 : i32
      %27 = arith.addi %14, %c2_i32_29 : i32
      %28 = arith.index_cast %27 : i32 to index
      %c0_30 = arith.constant 0 : index
      %c0_31 = arith.constant 0 : index
      %29 = vector.load %arg7[%28, %c0_30, %c0_31] : memref<18x18x16xf32, #tpu.memory_space<vmem>>, vector<8x18x16xf32>
      %30 = vector.extract_strided_slice %29 {offsets = [0, 0, 0], sizes = [8, 16, 16], strides = [1, 1, 1]} : vector<8x18x16xf32> to vector<8x16x16xf32>
      %31 = vector.extract_strided_slice %29 {offsets = [0, 1, 0], sizes = [8, 16, 16], strides = [1, 1, 1]} : vector<8x18x16xf32> to vector<8x16x16xf32>
      %32 = vector.extract_strided_slice %29 {offsets = [0, 2, 0], sizes = [8, 16, 16], strides = [1, 1, 1]} : vector<8x18x16xf32> to vector<8x16x16xf32>
      %33 = tpu.concatenate %18, %19, %20, %24, %25, %26, %30, %31, %32 in 2 : vector<8x16x16xf32>, vector<8x16x16xf32>, vector<8x16x16xf32>, vector<8x16x16xf32>, vector<8x16x16xf32>, vector<8x16x16xf32>, vector<8x16x16xf32>, vector<8x16x16xf32>, vector<8x16x16xf32> -> vector<8x16x144xf32>
      %34 = arith.truncf %33 : vector<8x16x144xf32> to vector<8x16x144xbf16>
      "tpu.trace_start"() <{level = 10 : i32, message = "hwk,ko->hwo"}> : () -> ()
      %cst_32 = arith.constant dense<0.000000e+00> : vector<8x16x3xf32>
      %35 = tpu.matmul %34, %8, %cst_32 {dimension_numbers = #tpu.dot_dimension_numbers<[2], [0], [0, 1], [1], [0, 0, 0, 1, 1, 1], [], []>} : vector<8x16x144xbf16>, vector<144x3xbf16>, vector<8x16x3xf32> -> vector<8x16x3xf32>
      "tpu.trace_stop"() : () -> ()
      %c0_33 = arith.constant 0 : index
      %36 = arith.index_cast %14 : i32 to index
      %c0_34 = arith.constant 0 : index
      %c0_35 = arith.constant 0 : index
      %37 = vector.load %arg4[%c0_33, %36, %c0_34, %c0_35] : memref<1x16x16x3xf32, #tpu.memory_space<vmem>>, vector<1x8x16x3xf32>
      %38 = vector.shape_cast %37 : vector<1x8x16x3xf32> to vector<8x16x3xf32>
      %39 = arith.addf %35, %38 : vector<8x16x3xf32>
      %c0_36 = arith.constant 0 : index
      %40 = arith.index_cast %14 : i32 to index
      %c0_37 = arith.constant 0 : index
      %c0_38 = arith.constant 0 : index
      %41 = vector.load %arg5[%c0_36, %40, %c0_37, %c0_38] : memref<1x16x16x3xf32, #tpu.memory_space<vmem>>, vector<1x8x16x3xf32>
      %42 = vector.shape_cast %41 : vector<1x8x16x3xf32> to vector<8x16x3xf32>
      %43 = vector.shape_cast %39 : vector<8x16x3xf32> to vector<1x8x16x3xf32>
      tpu.vector_store %arg5[%c0_36, %40, %c0_37, %c0_38], %43 {strides = array<i32>} : memref<1x16x16x3xf32, #tpu.memory_space<vmem>>, vector<1x8x16x3xf32>,
    }
    %c2_i32_20 = arith.constant 2 : i32
    return
  }
  func.func @transform_0(%arg0: i32) -> (i32, i32, i32, i32) {
    %c0_i32 = arith.constant 0 : i32
    %c0_i32_0 = arith.constant 0 : i32
    %c0_i32_1 = arith.constant 0 : i32
    %c0_i32_2 = arith.constant 0 : i32
    return %arg0, %c0_i32, %c0_i32_0, %c0_i32_1 : i32, i32, i32, i32
  }
  func.func @transform_1(%arg0: i32) -> (i32, i32) {
    %c0_i32 = arith.constant 0 : i32
    %c0_i32_0 = arith.constant 0 : i32
    %c0_i32_1 = arith.constant 0 : i32
    return %c0_i32, %c0_i32_0 : i32, i32
  }
  func.func @transform_2(%arg0: i32) -> (i32, i32) {
    %c0_i32 = arith.constant 0 : i32
    %c0_i32_0 = arith.constant 0 : i32
    %c0_i32_1 = arith.constant 0 : i32
    return %c0_i32, %c0_i32_0 : i32, i32
  }
  func.func @transform_3(%arg0: i32) -> (i32, i32, i32, i32) {
    %c0_i32 = arith.constant 0 : i32
    %c0_i32_0 = arith.constant 0 : i32
    %c0_i32_1 = arith.constant 0 : i32
    %c0_i32_2 = arith.constant 0 : i32
    return %arg0, %c0_i32, %c0_i32_0, %c0_i32_1 : i32, i32, i32, i32
  }
  func.func @transform_4(%arg0: i32) -> (i32, i32, i32, i32) {
    %c0_i32 = arith.constant 0 : i32
    %c0_i32_0 = arith.constant 0 : i32
    %c0_i32_1 = arith.constant 0 : i32
    %c0_i32_2 = arith.constant 0 : i32
    return %arg0, %c0_i32, %c0_i32_0, %c0_i32_1 : i32, i32, i32, i32
  }
}

</mosaic_0001>

<llo_original>
// kernel: _lambda_.4
$region0: #{_lambda_.4}
  #allocation0 [shape = 'u32[]', space=smem, size = 0x4, offset = 0x4, fixed_abs, tag = 'smem constant byte address 0x4 - core index']
  #allocation1 [shape = 'u32[144,128]{1,0:T(1,128)}', space=vmem, size = 0x12000, scoped, tag = 'internal scratch']
  #allocation2 [shape = 'f32[10,10,3]{2,1,0:T(8,128)}', space=vmem, size = 0x14000, scoped, tag = 'scratch operand']
  %s0 = inlined_call_operand.vmem [shape: f32[2,8,8,3], index: 0, kind: input, shape index: {}]
  %s1 = inlined_call_operand.vmem [shape: bf16[27,16], index: 1, kind: input, shape index: {}]
  %s2 = inlined_call_operand.vmem [shape: f32[2,8,8,16], index: 2, kind: output, shape index: {}]
  %s3 = sld [smem:[#allocation0]]
  $region41: #{_lambda_.4} parent=0
    _
  %s5 = ssub.s32 1, %s3
  %s6 = scalar_select 0, %s5, %s3
  loop: start=0, step=1, limit=4
  $region2: #{_lambda_.4} parent=0 // loop_pre_header
    _
  $region3: #{_lambda_.4} parent=0 // loop_header
    %s8 = sphi 0, %s12
    %p9 = scmp.ge.s32.totalorder %s8, 4
    %s18 = sphi 0, %s20
    %s21 = sphi 0, %s18
    %s22 = sphi 0, %s21
    %s38 = sphi 0, %s22
    %s42 = sphi 0, %s42
    %s44 = sphi 0, %s42
    %s45 = sphi 0, %s44
    %s59 = sphi 0, %s45
    %s65 = sphi 0, %s67
    %s68 = sphi 0, %s65
    %s69 = sphi 0, %s68
    %s85 = sphi 0, %s69
  $region4: #{_lambda_.4} parent=0 // loop_header_branch
    %11 = sbr.rel (%p9) target = $region8
  $region5: #{_lambda_.4} parent=0 // loop_body
    %s13 = ssub.s32 %s8, 1
    %s14 = ssub.s32 %s8, 2
    %s15 = sadd.s32 %s8, 1
    %s16 = ssub.s32 %s8, %s15
    %p17 = scmp.eq.s32.totalorder %s16, 0
    %s19 = sadd.s32 %s18, 1
    %s20 = scalar_select %p17, %s18, %s19
    %p23 = pneg %p17
    %p24 = scmp.eq.s32.totalorder %s8, 1
    %p25 = por %p23, %p24
    %p26 = scmp.ne.s32.totalorder %s18, %s21
    %p27 = scmp.eq.s32.totalorder %s8, 0
    %p28 = por %p26, %p27
    %p29 = scmp.ne.s32.totalorder %s18, %s21
    %p30 = scmp.eq.s32.totalorder %s13, 1
    %p31 = por %p29, %p30
    %p32 = scmp.ne.s32.totalorder %s21, %s22
    %p33 = scmp.eq.s32.totalorder %s13, 0
    %p34 = por %p32, %p33
    %p35 = scmp.ne.s32.totalorder %s21, %s22
    %p36 = scmp.eq.s32.totalorder %s14, 1
    %p37 = por %p35, %p36
    %p39 = scmp.ne.s32.totalorder %s22, %s38
    %p40 = scmp.eq.s32.totalorder %s14, 0
    %p41 = por %p39, %p40
    %s43 = sadd.s32 %s42, 1
    %p46 = scmp.eq.s32.totalorder %s8, 1
    %p47 = scmp.ne.s32.totalorder %s42, %s44
    %p48 = scmp.eq.s32.totalorder %s8, 0
    %p49 = por %p47, %p48
    %p50 = scmp.ne.s32.totalorder %s42, %s44
    %p51 = scmp.eq.s32.totalorder %s13, 1
    %p52 = por %p50, %p51
    %p53 = scmp.ne.s32.totalorder %s44, %s45
    %p54 = scmp.eq.s32.totalorder %s13, 0
    %p55 = por %p53, %p54
    %p56 = scmp.ne.s32.totalorder %s44, %s45
    %p57 = scmp.eq.s32.totalorder %s14, 1
    %p58 = por %p56, %p57
    %p60 = scmp.ne.s32.totalorder %s45, %s59
    %p61 = scmp.eq.s32.totalorder %s14, 0
    %p62 = por %p60, %p61
    %s63 = ssub.s32 %s8, %s15
    %p64 = scmp.eq.s32.totalorder %s63, 0
    %s66 = sadd.s32 %s65, 1
    %s67 = scalar_select %p64, %s65, %s66
    %p70 = pneg %p64
    %p71 = scmp.eq.s32.totalorder %s8, 1
    %p72 = por %p70, %p71
    %p73 = scmp.ne.s32.totalorder %s65, %s68
    %p74 = scmp.eq.s32.totalorder %s8, 0
    %p75 = por %p73, %p74
    %p76 = scmp.ne.s32.totalorder %s65, %s68
    %p77 = scmp.eq.s32.totalorder %s13, 1
    %p78 = por %p76, %p77
    %p79 = scmp.ne.s32.totalorder %s68, %s69
    %p80 = scmp.eq.s32.totalorder %s13, 0
    %p81 = por %p79, %p80
    %p82 = scmp.ne.s32.totalorder %s68, %s69
    %p83 = scmp.eq.s32.totalorder %s14, 1
    %p84 = por %p82, %p83
    %p86 = scmp.ne.s32.totalorder %s69, %s85
    %p87 = scmp.eq.s32.totalorder %s14, 0
    %p88 = por %p86, %p87
    %p89 = scmp.le.s32.totalorder 1, %s8
    %p90 = scmp.lt.s32.totalorder %s8, 3
    %p91 = pnand %p89, %p90
    %p92 = pneg %p91
    // Predicated region
    $region9: #{_lambda_.4} parent=5 // pred_check
      _
    $region10: #{_lambda_.4} parent=5 // pred_check_branch
      %94 = sbr.rel (%p91) target = $region12
    $region11: #{_lambda_.4} parent=5 // pred_region
      %s95 = ssub.s32 %s8, 1
      // Predicated region
      $region13: #{_lambda_.4} parent=11 // pred_check
        %p96 = pneg %p55
      $region14: #{_lambda_.4} parent=11 // pred_check_branch
        %98 = sbr.rel (%p96) target = $region16
      $region15: #{_lambda_.4} parent=11 // pred_region
        _
      $region16: #{_lambda_.4} parent=11 // pred_fallthru
        _
    $region12: #{_lambda_.4} parent=5 // pred_fallthru
      _
    %p99 = scmp.lt.s32.totalorder %s8, 2
    // Predicated region
    $region17: #{_lambda_.4} parent=5 // pred_check
      %p100 = pneg %p99
    $region18: #{_lambda_.4} parent=5 // pred_check_branch
      %102 = sbr.rel (%p100) target = $region20
    $region19: #{_lambda_.4} parent=5 // pred_region
      // Predicated region
      $region21: #{_lambda_.4} parent=19 // pred_check
        %p103 = pneg %p28
      $region22: #{_lambda_.4} parent=19 // pred_check_branch
        %105 = sbr.rel (%p103) target = $region24
      $region23: #{_lambda_.4} parent=19 // pred_region
        %p106 = scmp.lt.s32.totalorder %s8, 1
        %s107 = scalar_select %p106, %s8, 1
        %s108 = smul.addr %s107, 8
        %s109 = smul.addr %s108, 8
        %s110 = scalar_lea.vmem %s0, %s109
      $region24: #{_lambda_.4} parent=19 // pred_fallthru
        _
    $region20: #{_lambda_.4} parent=5 // pred_fallthru
      _
    %p111 = scmp.le.s32.totalorder 1, %s8
    %p112 = scmp.lt.s32.totalorder %s8, 3
    %p113 = pnand %p111, %p112
    %p114 = pneg %p113
    // Predicated region
    $region25: #{_lambda_.4} parent=5 // pred_check
      _
    $region26: #{_lambda_.4} parent=5 // pred_check_branch
      %116 = sbr.rel (%p113) target = $region28
    $region27: #{_lambda_.4} parent=5 // pred_region
      %s117 = ssub.s32 %s8, 1
      %p118 = scmp.lt.s32.totalorder %s13, 1
      %s119 = scalar_select %p118, %s13, 1
      %s120 = smul.addr %s119, 8
      %s121 = smul.addr %s120, 8
      %s122 = scalar_lea.vmem %s0, %s121
      %p123 = pneg %p34
      %p124 = pneg %p31
      %p125 = pneg %p55
      %p126 = pneg %p52
      %p127 = pneg %p81
      %p128 = pneg %p78
      %p129 = scmp.lt.s32.totalorder %s13, 1
      %s130 = scalar_select %p129, %s13, 1
      %s131 = smul.addr %s130, 8
      %s132 = smul.addr %s131, 8
      %s133 = scalar_lea.vmem %s2, %s132
      %p134 = scmp.lt.s32.totalorder %s13, 1
      %s135 = scalar_select %p134, %s13, 1
      %s136 = smul.addr %s135, 8
      %s137 = smul.addr %s136, 8
      %s138 = scalar_lea.vmem %s0, %s137
      %p139 = scmp.lt.s32.totalorder %s13, 1
      %s140 = scalar_select %p139, %s13, 1
      %s141 = smul.addr %s140, 8
      %s142 = smul.addr %s141, 8
      %s143 = scalar_lea.vmem %s2, %s142
      %vm145 = vcmask 23552
      %146 = vst.msk [vmem:[#allocation2] sm:$0xff] %vm145, 0.0
      %vm147 = vcmask 17408
      %148 = vst.msk [vmem:[#allocation2 + $0x8] sm:$0x3] %vm147, 0.0
      %149 = vst.msk [vmem:[#allocation2 + $0x10] sm:$0xff] %vm145, 0.0
      %150 = vst.msk [vmem:[#allocation2 + $0x18] sm:$0x3] %vm147, 0.0
      %151 = vst.msk [vmem:[#allocation2 + $0x20] sm:$0xff] %vm145, 0.0
      %152 = vst.msk [vmem:[#allocation2 + $0x28] sm:$0x3] %vm147, 0.0
      %153 = vst.msk [vmem:[#allocation2 + $0x30] sm:$0xff] %vm145, 0.0
      %154 = vst.msk [vmem:[#allocation2 + $0x38] sm:$0x3] %vm147, 0.0
      %155 = vst.msk [vmem:[#allocation2 + $0x40] sm:$0xff] %vm145, 0.0
      %156 = vst.msk [vmem:[#allocation2 + $0x48] sm:$0x3] %vm147, 0.0
      %157 = vst.msk [vmem:[#allocation2 + $0x50] sm:$0xff] %vm145, 0.0
      %158 = vst.msk [vmem:[#allocation2 + $0x58] sm:$0x3] %vm147, 0.0
      %159 = vst.msk [vmem:[#allocation2 + $0x60] sm:$0xff] %vm145, 0.0
      %160 = vst.msk [vmem:[#allocation2 + $0x68] sm:$0x3] %vm147, 0.0
      %161 = vst.msk [vmem:[#allocation2 + $0x70] sm:$0xff] %vm145, 0.0
      %162 = vst.msk [vmem:[#allocation2 + $0x78] sm:$0x3] %vm147, 0.0
      %163 = vst.msk [vmem:[#allocation2 + $0x80] sm:$0xff] %vm145, 0.0
      %164 = vst.msk [vmem:[#allocation2 + $0x88] sm:$0x3] %vm147, 0.0
      %165 = vst.msk [vmem:[#allocation2 + $0x90] sm:$0xff] %vm145, 0.0
      %166 = vst.msk [vmem:[#allocation2 + $0x98] sm:$0x3] %vm147, 0.0
      %v167 = vld [vmem:[%s138] sm:$0xff]
      %v168 = vld [vmem:[%s138 + $0x8] sm:$0xff]
      %v169 = vld [vmem:[%s138 + $0x10] sm:$0xff]
      %v170 = vld [vmem:[%s138 + $0x18] sm:$0xff]
      %v171 = vld [vmem:[%s138 + $0x20] sm:$0xff]
      %v172 = vld [vmem:[%s138 + $0x28] sm:$0xff]
      %v173 = vld [vmem:[%s138 + $0x30] sm:$0xff]
      %v174 = vld [vmem:[%s138 + $0x38] sm:$0xff]
      %s175 = scalar_lea.vmem [#allocation2], 16
      %176 = vst.msk [vmem:[%s175 + $0x1] sm:$0xff] %vm145, %v167
      %177 = vst.msk [vmem:[%s175 + $0x11] sm:$0xff] %vm145, %v168
      %178 = vst.msk [vmem:[%s175 + $0x21] sm:$0xff] %vm145, %v169
      %179 = vst.msk [vmem:[%s175 + $0x31] sm:$0xff] %vm145, %v170
      %180 = vst.msk [vmem:[%s175 + $0x41] sm:$0xff] %vm145, %v171
      %181 = vst.msk [vmem:[%s175 + $0x51] sm:$0xff] %vm145, %v172
      %182 = vst.msk [vmem:[%s175 + $0x61] sm:$0xff] %vm145, %v173
      %183 = vst.msk [vmem:[%s175 + $0x71] sm:$0xff] %vm145, %v174
      %v184 = vld [vmem:[%s1] sm:$0xf]
      %v185 = vld [vmem:[%s1 + $0x4] sm:$0xf]
      %v186 = vld [vmem:[%s1 + $0x8] sm:$0xf]
      %v187 = vld [vmem:[%s1 + $0xc] sm:$0x3]
      %s188 = smul.u32 0, 16
      %s189 = scalar_lea.vmem [#allocation2], %s188
      %v190 = vld [vmem:[%s189] sm:$0xff]
      %v191 = vld [vmem:[%s189 + $0x8] sm:$0x3]
      %v192 = vld [vmem:[%s189 + $0x10] sm:$0xff]
      %v193 = vld [vmem:[%s189 + $0x18] sm:$0x3]
      %v194 = vld [vmem:[%s189 + $0x20] sm:$0xff]
      %v195 = vld [vmem:[%s189 + $0x28] sm:$0x3]
      %v196 = vld [vmem:[%s189 + $0x30] sm:$0xff]
      %v197 = vld [vmem:[%s189 + $0x38] sm:$0x3]
      %v198 = vld [vmem:[%s189 + $0x40] sm:$0xff]
      %v199 = vld [vmem:[%s189 + $0x48] sm:$0x3]
      %v200 = vld [vmem:[%s189 + $0x50] sm:$0xff]
      %v201 = vld [vmem:[%s189 + $0x58] sm:$0x3]
      %v202 = vld [vmem:[%s189 + $0x60] sm:$0xff]
      %v203 = vld [vmem:[%s189 + $0x68] sm:$0x3]
      %v204 = vld [vmem:[%s189 + $0x70] sm:$0xff]
      %v205 = vld [vmem:[%s189 + $0x78] sm:$0x3]
      %s206 = sadd.s32 0, 1
      %s207 = smul.u32 %s206, 16
      %s208 = scalar_lea.vmem [#allocation2], %s207
      %v209 = vld [vmem:[%s208] sm:$0xff]
      %v210 = vld [vmem:[%s208 + $0x8] sm:$0x3]
      %v211 = vld [vmem:[%s208 + $0x10] sm:$0xff]
      %v212 = vld [vmem:[%s208 + $0x18] sm:$0x3]
      %v213 = vld [vmem:[%s208 + $0x20] sm:$0xff]
      %v214 = vld [vmem:[%s208 + $0x28] sm:$0x3]
      %v215 = vld [vmem:[%s208 + $0x30] sm:$0xff]
      %v216 = vld [vmem:[%s208 + $0x38] sm:$0x3]
      %v217 = vld [vmem:[%s208 + $0x40] sm:$0xff]
      %v218 = vld [vmem:[%s208 + $0x48] sm:$0x3]
      %v219 = vld [vmem:[%s208 + $0x50] sm:$0xff]
      %v220 = vld [vmem:[%s208 + $0x58] sm:$0x3]
      %v221 = vld [vmem:[%s208 + $0x60] sm:$0xff]
      %v222 = vld [vmem:[%s208 + $0x68] sm:$0x3]
      %v223 = vld [vmem:[%s208 + $0x70] sm:$0xff]
      %v224 = vld [vmem:[%s208 + $0x78] sm:$0x3]
      %s225 = sadd.s32 0, 2
      %s226 = smul.u32 %s225, 16
      %s227 = scalar_lea.vmem [#allocation2], %s226
      %v228 = vld [vmem:[%s227] sm:$0xff]
      %v229 = vld [vmem:[%s227 + $0x8] sm:$0x3]
      %v230 = vld [vmem:[%s227 + $0x10] sm:$0xff]
      %v231 = vld [vmem:[%s227 + $0x18] sm:$0x3]
      %v232 = vld [vmem:[%s227 + $0x20] sm:$0xff]
      %v233 = vld [vmem:[%s227 + $0x28] sm:$0x3]
      %v234 = vld [vmem:[%s227 + $0x30] sm:$0xff]
      %v235 = vld [vmem:[%s227 + $0x38] sm:$0x3]
      %v236 = vld [vmem:[%s227 + $0x40] sm:$0xff]
      %v237 = vld [vmem:[%s227 + $0x48] sm:$0x3]
      %v238 = vld [vmem:[%s227 + $0x50] sm:$0xff]
      %v239 = vld [vmem:[%s227 + $0x58] sm:$0x3]
      %v240 = vld [vmem:[%s227 + $0x60] sm:$0xff]
      %v241 = vld [vmem:[%s227 + $0x68] sm:$0x3]
      %v242 = vld [vmem:[%s227 + $0x70] sm:$0xff]
      %v243 = vld [vmem:[%s227 + $0x78] sm:$0x3]
      %vm260 = vcmask 1046528
      %v261 = vrot.slane %v190, 1
      %v262 = vrot.slane %v191, 1
      %v263 = vsel %vm260, %v261, %v262
      %v264 = vrot.slane %v192, 1
      %v265 = vrot.slane %v193, 1
      %v266 = vsel %vm260, %v264, %v265
      %v267 = vrot.slane %v194, 1
      %v268 = vrot.slane %v195, 1
      %v269 = vsel %vm260, %v267, %v268
      %v270 = vrot.slane %v196, 1
      %v271 = vrot.slane %v197, 1
      %v272 = vsel %vm260, %v270, %v271
      %v273 = vrot.slane %v198, 1
      %v274 = vrot.slane %v199, 1
      %v275 = vsel %vm260, %v273, %v274
      %v276 = vrot.slane %v200, 1
      %v277 = vrot.slane %v201, 1
      %v278 = vsel %vm260, %v276, %v277
      %v279 = vrot.slane %v202, 1
      %v280 = vrot.slane %v203, 1
      %v281 = vsel %vm260, %v279, %v280
      %v282 = vrot.slane %v204, 1
      %v283 = vrot.slane %v205, 1
      %v284 = vsel %vm260, %v282, %v283
      %285 = vrot.lane.b32.xlu0 %v263, 3
      %v286 = vpop.permute.xlu0 %285
      %287 = vrot.lane.b32.xlu0 %v266, 3
      %v288 = vpop.permute.xlu0 %287
      %289 = vrot.lane.b32.xlu0 %v269, 3
      %v290 = vpop.permute.xlu0 %289
      %291 = vrot.lane.b32.xlu0 %v272, 3
      %v292 = vpop.permute.xlu0 %291
      %293 = vrot.lane.b32.xlu0 %v275, 3
      %v294 = vpop.permute.xlu0 %293
      %295 = vrot.lane.b32.xlu0 %v278, 3
      %v296 = vpop.permute.xlu0 %295
      %297 = vrot.lane.b32.xlu0 %v281, 3
      %v298 = vpop.permute.xlu0 %297
      %299 = vrot.lane.b32.xlu0 %v284, 3
      %v300 = vpop.permute.xlu0 %299
      %vm309 = vcmask 1045504
      %v310 = vrot.slane %v190, 2
      %v311 = vrot.slane %v191, 2
      %v312 = vsel %vm309, %v310, %v311
      %v313 = vrot.slane %v192, 2
      %v314 = vrot.slane %v193, 2
      %v315 = vsel %vm309, %v313, %v314
      %v316 = vrot.slane %v194, 2
      %v317 = vrot.slane %v195, 2
      %v318 = vsel %vm309, %v316, %v317
      %v319 = vrot.slane %v196, 2
      %v320 = vrot.slane %v197, 2
      %v321 = vsel %vm309, %v319, %v320
      %v322 = vrot.slane %v198, 2
      %v323 = vrot.slane %v199, 2
      %v324 = vsel %vm309, %v322, %v323
      %v325 = vrot.slane %v200, 2
      %v326 = vrot.slane %v201, 2
      %v327 = vsel %vm309, %v325, %v326
      %v328 = vrot.slane %v202, 2
      %v329 = vrot.slane %v203, 2
      %v330 = vsel %vm309, %v328, %v329
      %v331 = vrot.slane %v204, 2
      %v332 = vrot.slane %v205, 2
      %v333 = vsel %vm309, %v331, %v332
      %334 = vrot.lane.b32.xlu0 %v312, 6
      %v335 = vpop.permute.xlu0 %334
      %336 = vrot.lane.b32.xlu0 %v315, 6
      %v337 = vpop.permute.xlu0 %336
      %338 = vrot.lane.b32.xlu0 %v318, 6
      %v339 = vpop.permute.xlu0 %338
      %340 = vrot.lane.b32.xlu0 %v321, 6
      %v341 = vpop.permute.xlu0 %340
      %342 = vrot.lane.b32.xlu0 %v324, 6
      %v343 = vpop.permute.xlu0 %342
      %344 = vrot.lane.b32.xlu0 %v327, 6
      %v345 = vpop.permute.xlu0 %344
      %346 = vrot.lane.b32.xlu0 %v330, 6
      %v347 = vpop.permute.xlu0 %346
      %348 = vrot.lane.b32.xlu0 %v333, 6
      %v349 = vpop.permute.xlu0 %348
      %366 = vrot.lane.b32.xlu0 %v209, 9
      %v367 = vpop.permute.xlu0 %366
      %368 = vrot.lane.b32.xlu0 %v211, 9
      %v369 = vpop.permute.xlu0 %368
      %370 = vrot.lane.b32.xlu0 %v213, 9
      %v371 = vpop.permute.xlu0 %370
      %372 = vrot.lane.b32.xlu0 %v215, 9
      %v373 = vpop.permute.xlu0 %372
      %374 = vrot.lane.b32.xlu0 %v217, 9
      %v375 = vpop.permute.xlu0 %374
      %376 = vrot.lane.b32.xlu0 %v219, 9
      %v377 = vpop.permute.xlu0 %376
      %378 = vrot.lane.b32.xlu0 %v221, 9
      %v379 = vpop.permute.xlu0 %378
      %380 = vrot.lane.b32.xlu0 %v223, 9
      %v381 = vpop.permute.xlu0 %380
      %v398 = vrot.slane %v209, 1
      %v399 = vrot.slane %v210, 1
      %v400 = vsel %vm260, %v398, %v399
      %v401 = vrot.slane %v211, 1
      %v402 = vrot.slane %v212, 1
      %v403 = vsel %vm260, %v401, %v402
      %v404 = vrot.slane %v213, 1
      %v405 = vrot.slane %v214, 1
      %v406 = vsel %vm260, %v404, %v405
      %v407 = vrot.slane %v215, 1
      %v408 = vrot.slane %v216, 1
      %v409 = vsel %vm260, %v407, %v408
      %v410 = vrot.slane %v217, 1
      %v411 = vrot.slane %v218, 1
      %v412 = vsel %vm260, %v410, %v411
      %v413 = vrot.slane %v219, 1
      %v414 = vrot.slane %v220, 1
      %v415 = vsel %vm260, %v413, %v414
      %v416 = vrot.slane %v221, 1
      %v417 = vrot.slane %v222, 1
      %v418 = vsel %vm260, %v416, %v417
      %v419 = vrot.slane %v223, 1
      %v420 = vrot.slane %v224, 1
      %v421 = vsel %vm260, %v419, %v420
      %422 = vrot.lane.b32.xlu0 %v400, 12
      %v423 = vpop.permute.xlu0 %422
      %424 = vrot.lane.b32.xlu0 %v403, 12
      %v425 = vpop.permute.xlu0 %424
      %426 = vrot.lane.b32.xlu0 %v406, 12
      %v427 = vpop.permute.xlu0 %426
      %428 = vrot.lane.b32.xlu0 %v409, 12
      %v429 = vpop.permute.xlu0 %428
      %430 = vrot.lane.b32.xlu0 %v412, 12
      %v431 = vpop.permute.xlu0 %430
      %432 = vrot.lane.b32.xlu0 %v415, 12
      %v433 = vpop.permute.xlu0 %432
      %434 = vrot.lane.b32.xlu0 %v418, 12
      %v435 = vpop.permute.xlu0 %434
      %436 = vrot.lane.b32.xlu0 %v421, 12
      %v437 = vpop.permute.xlu0 %436
      %v446 = vrot.slane %v209, 2
      %v447 = vrot.slane %v210, 2
      %v448 = vsel %vm309, %v446, %v447
      %v449 = vrot.slane %v211, 2
      %v450 = vrot.slane %v212, 2
      %v451 = vsel %vm309, %v449, %v450
      %v452 = vrot.slane %v213, 2
      %v453 = vrot.slane %v214, 2
      %v454 = vsel %vm309, %v452, %v453
      %v455 = vrot.slane %v215, 2
      %v456 = vrot.slane %v216, 2
      %v457 = vsel %vm309, %v455, %v456
      %v458 = vrot.slane %v217, 2
      %v459 = vrot.slane %v218, 2
      %v460 = vsel %vm309, %v458, %v459
      %v461 = vrot.slane %v219, 2
      %v462 = vrot.slane %v220, 2
      %v463 = vsel %vm309, %v461, %v462
      %v464 = vrot.slane %v221, 2
      %v465 = vrot.slane %v222, 2
      %v466 = vsel %vm309, %v464, %v465
      %v467 = vrot.slane %v223, 2
      %v468 = vrot.slane %v224, 2
      %v469 = vsel %vm309, %v467, %v468
      %470 = vrot.lane.b32.xlu0 %v448, 15
      %v471 = vpop.permute.xlu0 %470
      %472 = vrot.lane.b32.xlu0 %v451, 15
      %v473 = vpop.permute.xlu0 %472
      %474 = vrot.lane.b32.xlu0 %v454, 15
      %v475 = vpop.permute.xlu0 %474
      %476 = vrot.lane.b32.xlu0 %v457, 15
      %v477 = vpop.permute.xlu0 %476
      %478 = vrot.lane.b32.xlu0 %v460, 15
      %v479 = vpop.permute.xlu0 %478
      %480 = vrot.lane.b32.xlu0 %v463, 15
      %v481 = vpop.permute.xlu0 %480
      %482 = vrot.lane.b32.xlu0 %v466, 15
      %v483 = vpop.permute.xlu0 %482
      %484 = vrot.lane.b32.xlu0 %v469, 15
      %v485 = vpop.permute.xlu0 %484
      %502 = vrot.lane.b32.xlu0 %v228, 18
      %v503 = vpop.permute.xlu0 %502
      %504 = vrot.lane.b32.xlu0 %v230, 18
      %v505 = vpop.permute.xlu0 %504
      %506 = vrot.lane.b32.xlu0 %v232, 18
      %v507 = vpop.permute.xlu0 %506
      %508 = vrot.lane.b32.xlu0 %v234, 18
      %v509 = vpop.permute.xlu0 %508
      %510 = vrot.lane.b32.xlu0 %v236, 18
      %v511 = vpop.permute.xlu0 %510
      %512 = vrot.lane.b32.xlu0 %v238, 18
      %v513 = vpop.permute.xlu0 %512
      %514 = vrot.lane.b32.xlu0 %v240, 18
      %v515 = vpop.permute.xlu0 %514
      %516 = vrot.lane.b32.xlu0 %v242, 18
      %v517 = vpop.permute.xlu0 %516
      %v534 = vrot.slane %v228, 1
      %v535 = vrot.slane %v229, 1
      %v536 = vsel %vm260, %v534, %v535
      %v537 = vrot.slane %v230, 1
      %v538 = vrot.slane %v231, 1
      %v539 = vsel %vm260, %v537, %v538
      %v540 = vrot.slane %v232, 1
      %v541 = vrot.slane %v233, 1
      %v542 = vsel %vm260, %v540, %v541
      %v543 = vrot.slane %v234, 1
      %v544 = vrot.slane %v235, 1
      %v545 = vsel %vm260, %v543, %v544
      %v546 = vrot.slane %v236, 1
      %v547 = vrot.slane %v237, 1
      %v548 = vsel %vm260, %v546, %v547
      %v549 = vrot.slane %v238, 1
      %v550 = vrot.slane %v239, 1
      %v551 = vsel %vm260, %v549, %v550
      %v552 = vrot.slane %v240, 1
      %v553 = vrot.slane %v241, 1
      %v554 = vsel %vm260, %v552, %v553
      %v555 = vrot.slane %v242, 1
      %v556 = vrot.slane %v243, 1
      %v557 = vsel %vm260, %v555, %v556
      %558 = vrot.lane.b32.xlu0 %v536, 21
      %v559 = vpop.permute.xlu0 %558
      %560 = vrot.lane.b32.xlu0 %v539, 21
      %v561 = vpop.permute.xlu0 %560
      %562 = vrot.lane.b32.xlu0 %v542, 21
      %v563 = vpop.permute.xlu0 %562
      %564 = vrot.lane.b32.xlu0 %v545, 21
      %v565 = vpop.permute.xlu0 %564
      %566 = vrot.lane.b32.xlu0 %v548, 21
      %v567 = vpop.permute.xlu0 %566
      %568 = vrot.lane.b32.xlu0 %v551, 21
      %v569 = vpop.permute.xlu0 %568
      %570 = vrot.lane.b32.xlu0 %v554, 21
      %v571 = vpop.permute.xlu0 %570
      %572 = vrot.lane.b32.xlu0 %v557, 21
      %v573 = vpop.permute.xlu0 %572
      %v582 = vrot.slane %v228, 2
      %v583 = vrot.slane %v229, 2
      %v584 = vsel %vm309, %v582, %v583
      %v585 = vrot.slane %v230, 2
      %v586 = vrot.slane %v231, 2
      %v587 = vsel %vm309, %v585, %v586
      %v588 = vrot.slane %v232, 2
      %v589 = vrot.slane %v233, 2
      %v590 = vsel %vm309, %v588, %v589
      %v591 = vrot.slane %v234, 2
      %v592 = vrot.slane %v235, 2
      %v593 = vsel %vm309, %v591, %v592
      %v594 = vrot.slane %v236, 2
      %v595 = vrot.slane %v237, 2
      %v596 = vsel %vm309, %v594, %v595
      %v597 = vrot.slane %v238, 2
      %v598 = vrot.slane %v239, 2
      %v599 = vsel %vm309, %v597, %v598
      %v600 = vrot.slane %v240, 2
      %v601 = vrot.slane %v241, 2
      %v602 = vsel %vm309, %v600, %v601
      %v603 = vrot.slane %v242, 2
      %v604 = vrot.slane %v243, 2
      %v605 = vsel %vm309, %v603, %v604
      %606 = vrot.lane.b32.xlu0 %v584, 24
      %v607 = vpop.permute.xlu0 %606
      %608 = vrot.lane.b32.xlu0 %v587, 24
      %v609 = vpop.permute.xlu0 %608
      %610 = vrot.lane.b32.xlu0 %v590, 24
      %v611 = vpop.permute.xlu0 %610
      %612 = vrot.lane.b32.xlu0 %v593, 24
      %v613 = vpop.permute.xlu0 %612
      %614 = vrot.lane.b32.xlu0 %v596, 24
      %v615 = vpop.permute.xlu0 %614
      %616 = vrot.lane.b32.xlu0 %v599, 24
      %v617 = vpop.permute.xlu0 %616
      %618 = vrot.lane.b32.xlu0 %v602, 24
      %v619 = vpop.permute.xlu0 %618
      %620 = vrot.lane.b32.xlu0 %v605, 24
      %v621 = vpop.permute.xlu0 %620
      %v630 = vsel %vm145, %v190, %v286
      %v631 = vsel %vm145, %v192, %v288
      %v632 = vsel %vm145, %v194, %v290
      %v633 = vsel %vm145, %v196, %v292
      %v634 = vsel %vm145, %v198, %v294
      %v635 = vsel %vm145, %v200, %v296
      %v636 = vsel %vm145, %v202, %v298
      %v637 = vsel %vm145, %v204, %v300
      %vm638 = vcmask 48128
      %v639 = vsel %vm638, %v630, %v335
      %v640 = vsel %vm638, %v631, %v337
      %v641 = vsel %vm638, %v632, %v339
      %v642 = vsel %vm638, %v633, %v341
      %v643 = vsel %vm638, %v634, %v343
      %v644 = vsel %vm638, %v635, %v345
      %v645 = vsel %vm638, %v636, %v347
      %v646 = vsel %vm638, %v637, %v349
      %vm647 = vcmask 72704
      %v648 = vsel %vm647, %v639, %v367
      %v649 = vsel %vm647, %v640, %v369
      %v650 = vsel %vm647, %v641, %v371
      %v651 = vsel %vm647, %v642, %v373
      %v652 = vsel %vm647, %v643, %v375
      %v653 = vsel %vm647, %v644, %v377
      %v654 = vsel %vm647, %v645, %v379
      %v655 = vsel %vm647, %v646, %v381
      %vm656 = vcmask 97280
      %v657 = vsel %vm656, %v648, %v423
      %v658 = vsel %vm656, %v649, %v425
      %v659 = vsel %vm656, %v650, %v427
      %v660 = vsel %vm656, %v651, %v429
      %v661 = vsel %vm656, %v652, %v431
      %v662 = vsel %vm656, %v653, %v433
      %v663 = vsel %vm656, %v654, %v435
      %v664 = vsel %vm656, %v655, %v437
      %vm665 = vcmask 121856
      %v666 = vsel %vm665, %v657, %v471
      %v667 = vsel %vm665, %v658, %v473
      %v668 = vsel %vm665, %v659, %v475
      %v669 = vsel %vm665, %v660, %v477
      %v670 = vsel %vm665, %v661, %v479
      %v671 = vsel %vm665, %v662, %v481
      %v672 = vsel %vm665, %v663, %v483
      %v673 = vsel %vm665, %v664, %v485
      %vm674 = vcmask 146432
      %v675 = vsel %vm674, %v666, %v503
      %v676 = vsel %vm674, %v667, %v505
      %v677 = vsel %vm674, %v668, %v507
      %v678 = vsel %vm674, %v669, %v509
      %v679 = vsel %vm674, %v670, %v511
      %v680 = vsel %vm674, %v671, %v513
      %v681 = vsel %vm674, %v672, %v515
      %v682 = vsel %vm674, %v673, %v517
      %vm683 = vcmask 171008
      %v684 = vsel %vm683, %v675, %v559
      %v685 = vsel %vm683, %v676, %v561
      %v686 = vsel %vm683, %v677, %v563
      %v687 = vsel %vm683, %v678, %v565
      %v688 = vsel %vm683, %v679, %v567
      %v689 = vsel %vm683, %v680, %v569
      %v690 = vsel %vm683, %v681, %v571
      %v691 = vsel %vm683, %v682, %v573
      %vm692 = vcmask 195584
      %v693 = vsel %vm692, %v684, %v607
      %v694 = vsel %vm692, %v685, %v609
      %v695 = vsel %vm692, %v686, %v611
      %v696 = vsel %vm692, %v687, %v613
      %v697 = vsel %vm692, %v688, %v615
      %v698 = vsel %vm692, %v689, %v617
      %v699 = vsel %vm692, %v690, %v619
      %v700 = vsel %vm692, %v691, %v621
      %v701 = vpack.c.bf16 %v693, %v693
      %v702 = vpack.c.bf16 %v694, %v694
      %v703 = vpack.c.bf16 %v695, %v695
      %v704 = vpack.c.bf16 %v696, %v696
      %v705 = vpack.c.bf16 %v697, %v697
      %v706 = vpack.c.bf16 %v698, %v698
      %v707 = vpack.c.bf16 %v699, %v699
      %v708 = vpack.c.bf16 %v700, %v700
      %v717 = vunpack.c.l.b16 %v701
      %v718 = vunpack.c.l.b16 %v702
      %v719 = vunpack.c.l.b16 %v703
      %v720 = vunpack.c.l.b16 %v704
      %v721 = vunpack.c.l.b16 %v705
      %v722 = vunpack.c.l.b16 %v706
      %v723 = vunpack.c.l.b16 %v707
      %v724 = vunpack.c.l.b16 %v708
      %v725 = vpack.c.b16 %v718, %v717
      %v726 = vpack.c.b16 %v720, %v719
      %v727 = vpack.c.b16 %v722, %v721
      %v728 = vpack.c.b16 %v724, %v723
      %v733 = vunpack.c.l.b16 %v184
      %v734 = vunpack.c.l.b16 %v185
      %v735 = vunpack.c.l.b16 %v186
      %v736 = vunpack.c.l.b16 %v187
      %v737 = vpack.c.b16 %v734, %v733
      %v738 = vpack.c.b16 %v736, %v735
      %vm740 = vcmask 220160
      %v742 = vsel %vm740, %v725, 0
      %v745 = vsel %vm740, %v726, 0
      %v748 = vsel %vm740, %v727, 0
      %v751 = vsel %vm740, %v728, 0
      %vm753 = vcmask 1044480
      %v754 = vsel %vm753, 4294967295, 65535
      %v755 = vsel %vm309, %v754, 0
      %v757 = vand.u32 %v738, %v755
      %759 = vmatprep.subr.bf16.mxu0 0
      %760 = vmatpush1.bf16.msra.mxu0 0
      %761 = vmatprep.subr.bf16.mxu0 0
      %762 = vmatpush1.bf16.msra.mxu0 0
      %763 = vmatprep.subr.bf16.mxu0 0
      %764 = vmatpush1.bf16.msra.mxu0 0
      %765 = vmatprep.subr.bf16.mxu0 0
      %766 = vmatpush1.bf16.msra.mxu0 0
      %767 = vmatprep.subr.bf16.mxu0 0
      %768 = vmatpush1.bf16.msra.mxu0 0
      %769 = vmatprep.subr.bf16.mxu0 0
      %770 = vmatpush1.bf16.msra.mxu0 0
      %771 = vmatprep.subr.bf16.mxu0 0
      %772 = vmatpush1.bf16.msra.mxu0 %v757
      %773 = vmatprep.subr.bf16.mxu0 0
      %774 = vmatpush1.bf16.msra.mxu0 %v737
      %775 = vmatprep.subr.bf16.mxu0 0
      %776 = vmatpush2.bf16.msra.mxu0 0
      %777 = vmatprep.subr.bf16.mxu0 0
      %778 = vmatpush2.bf16.msra.mxu0 0
      %779 = vmatprep.subr.bf16.mxu0 0
      %780 = vmatpush2.bf16.msra.mxu0 0
      %781 = vmatprep.subr.bf16.mxu0 0
      %782 = vmatpush2.bf16.msra.mxu0 0
      %783 = vmatprep.subr.bf16.mxu0 0
      %784 = vmatpush2.bf16.msra.mxu0 0
      %785 = vmatprep.subr.bf16.mxu0 0
      %786 = vmatpush2.bf16.msra.mxu0 0
      %787 = vmatprep.subr.bf16.mxu0 0
      %788 = vmatpush2.bf16.msra.mxu0 0
      %789 = vmatprep.subr.bf16.mxu0 0
      %790 = vmatpush2.bf16.msra.mxu0 0
      %791 = vmatprep.mubr.bf16.mxu0 0
      %792 = vmatmul.mubr.bf16.gmra.mxu0 %v742
      %v793 = vpop.f32.mrf.mxu0
      %v794 = vadd.f32 0.0, %v793
      %v795 = vpop.f32.mrf.mxu0
      %v796 = vpop.f32.mrf.mxu0
      %v797 = vadd.f32 0.0, %v796
      %v798 = vpop.f32.mrf.mxu0
      %799 = vmatprep.mubr.bf16.mxu0 0
      %800 = vmatmul.mubr.bf16.gmra.mxu0 %v745
      %v801 = vpop.f32.mrf.mxu0
      %v802 = vadd.f32 0.0, %v801
      %v803 = vpop.f32.mrf.mxu0
      %v804 = vpop.f32.mrf.mxu0
      %v805 = vadd.f32 0.0, %v804
      %v806 = vpop.f32.mrf.mxu0
      %807 = vmatprep.mubr.bf16.mxu0 0
      %808 = vmatmul.mubr.bf16.gmra.mxu0 %v748
      %v809 = vpop.f32.mrf.mxu0
      %v810 = vadd.f32 0.0, %v809
      %v811 = vpop.f32.mrf.mxu0
      %v812 = vpop.f32.mrf.mxu0
      %v813 = vadd.f32 0.0, %v812
      %v814 = vpop.f32.mrf.mxu0
      %815 = vmatprep.mubr.bf16.mxu0 0
      %816 = vmatmul.mubr.bf16.gmra.mxu0 %v751
      %v817 = vpop.f32.mrf.mxu0
      %v818 = vadd.f32 0.0, %v817
      %v819 = vpop.f32.mrf.mxu0
      %v820 = vpop.f32.mrf.mxu0
      %v821 = vadd.f32 0.0, %v820
      %v822 = vpop.f32.mrf.mxu0
      %823 = vdwg.mxu0
      %v824 = vmax.f32 %v794, 0.0
      %v825 = vmax.f32 %v797, 0.0
      %v826 = vmax.f32 %v802, 0.0
      %v827 = vmax.f32 %v805, 0.0
      %v828 = vmax.f32 %v810, 0.0
      %v829 = vmax.f32 %v813, 0.0
      %v830 = vmax.f32 %v818, 0.0
      %v831 = vmax.f32 %v821, 0.0
      %s832 = smul.u32 0, 8
      %s833 = scalar_lea.vmem %s143, %s832
      %vm834 = vcmask 130048
      %835 = vst.msk [vmem:[%s833] sm:$0xff] %vm834, %v824
      %836 = vst.msk [vmem:[%s833 + $0x8] sm:$0xff] %vm834, %v825
      %837 = vst.msk [vmem:[%s833 + $0x10] sm:$0xff] %vm834, %v826
      %838 = vst.msk [vmem:[%s833 + $0x18] sm:$0xff] %vm834, %v827
      %839 = vst.msk [vmem:[%s833 + $0x20] sm:$0xff] %vm834, %v828
      %840 = vst.msk [vmem:[%s833 + $0x28] sm:$0xff] %vm834, %v829
      %841 = vst.msk [vmem:[%s833 + $0x30] sm:$0xff] %vm834, %v830
      %842 = vst.msk [vmem:[%s833 + $0x38] sm:$0xff] %vm834, %v831
      %p843 = scmp.lt.s32.totalorder %s13, 1
      %s844 = scalar_select %p843, %s13, 1
      %s845 = smul.addr %s844, 8
      %s846 = smul.addr %s845, 8
      %s847 = scalar_lea.vmem %s2, %s846
      // Predicated region
      $region29: #{_lambda_.4} parent=27 // pred_check
        %p848 = pneg %p78
      $region30: #{_lambda_.4} parent=27 // pred_check_branch
        %850 = sbr.rel (%p848) target = $region32
      $region31: #{_lambda_.4} parent=27 // pred_region
        _
      $region32: #{_lambda_.4} parent=27 // pred_fallthru
        _
    $region28: #{_lambda_.4} parent=5 // pred_fallthru
      _
    %p851 = scmp.le.s32.totalorder 2, %s8
    // Predicated region
    $region33: #{_lambda_.4} parent=5 // pred_check
      %p852 = pneg %p851
    $region34: #{_lambda_.4} parent=5 // pred_check_branch
      %854 = sbr.rel (%p852) target = $region36
    $region35: #{_lambda_.4} parent=5 // pred_region
      %s855 = ssub.s32 %s8, 2
      // Predicated region
      $region37: #{_lambda_.4} parent=35 // pred_check
        %p856 = pneg %p84
      $region38: #{_lambda_.4} parent=35 // pred_check_branch
        %858 = sbr.rel (%p856) target = $region40
      $region39: #{_lambda_.4} parent=35 // pred_region
        %p859 = scmp.lt.s32.totalorder %s14, 1
        %s860 = scalar_select %p859, %s14, 1
        %s861 = smul.addr %s860, 8
        %s862 = smul.addr %s861, 8
        %s863 = scalar_lea.vmem %s2, %s862
      $region40: #{_lambda_.4} parent=35 // pred_fallthru
        _
    $region36: #{_lambda_.4} parent=5 // pred_fallthru
      _
  $region6: #{_lambda_.4} parent=0 // loop_footer
    %s12 = sadd.s32 1, %s8
  $region7: #{_lambda_.4} parent=0 // loop_footer_branch
    %7 = sbr.rel target = $region3
  $region8: #{_lambda_.4} parent=0 // loop_exit
    _

// kernel: _lambda_.6
$region0: #{_lambda_.6}
  #allocation0 [shape = 'u32[]', space=smem, size = 0x4, offset = 0x4, fixed_abs, tag = 'smem constant byte address 0x4 - core index']
  #allocation1 [shape = 'u32[144,128]{1,0:T(1,128)}', space=vmem, size = 0x12000, scoped, tag = 'internal scratch']
  #allocation2 [shape = 'f32[10,10,16]{2,1,0:T(8,128)}', space=vmem, size = 0x14000, scoped, tag = 'scratch operand']
  %s0 = inlined_call_operand.vmem [shape: f32[2,8,8,16], index: 0, kind: input, shape index: {}]
  %s1 = inlined_call_operand.vmem [shape: bf16[144,64], index: 1, kind: input, shape index: {}]
  %s2 = inlined_call_operand.vmem [shape: f32[2,8,8,64], index: 2, kind: output, shape index: {}]
  %s3 = sld [smem:[#allocation0]]
  $region41: #{_lambda_.6} parent=0
    _
  %s5 = ssub.s32 1, %s3
  %s6 = scalar_select 0, %s5, %s3
  loop: start=0, step=1, limit=4
  $region2: #{_lambda_.6} parent=0 // loop_pre_header
    _
  $region3: #{_lambda_.6} parent=0 // loop_header
    %s8 = sphi 0, %s12
    %p9 = scmp.ge.s32.totalorder %s8, 4
    %s18 = sphi 0, %s20
    %s21 = sphi 0, %s18
    %s22 = sphi 0, %s21
    %s38 = sphi 0, %s22
    %s42 = sphi 0, %s42
    %s44 = sphi 0, %s42
    %s45 = sphi 0, %s44
    %s59 = sphi 0, %s45
    %s65 = sphi 0, %s67
    %s68 = sphi 0, %s65
    %s69 = sphi 0, %s68
    %s85 = sphi 0, %s69
  $region4: #{_lambda_.6} parent=0 // loop_header_branch
    %11 = sbr.rel (%p9) target = $region8
  $region5: #{_lambda_.6} parent=0 // loop_body
    %s13 = ssub.s32 %s8, 1
    %s14 = ssub.s32 %s8, 2
    %s15 = sadd.s32 %s8, 1
    %s16 = ssub.s32 %s8, %s15
    %p17 = scmp.eq.s32.totalorder %s16, 0
    %s19 = sadd.s32 %s18, 1
    %s20 = scalar_select %p17, %s18, %s19
    %p23 = pneg %p17
    %p24 = scmp.eq.s32.totalorder %s8, 1
    %p25 = por %p23, %p24
    %p26 = scmp.ne.s32.totalorder %s18, %s21
    %p27 = scmp.eq.s32.totalorder %s8, 0
    %p28 = por %p26, %p27
    %p29 = scmp.ne.s32.totalorder %s18, %s21
    %p30 = scmp.eq.s32.totalorder %s13, 1
    %p31 = por %p29, %p30
    %p32 = scmp.ne.s32.totalorder %s21, %s22
    %p33 = scmp.eq.s32.totalorder %s13, 0
    %p34 = por %p32, %p33
    %p35 = scmp.ne.s32.totalorder %s21, %s22
    %p36 = scmp.eq.s32.totalorder %s14, 1
    %p37 = por %p35, %p36
    %p39 = scmp.ne.s32.totalorder %s22, %s38
    %p40 = scmp.eq.s32.totalorder %s14, 0
    %p41 = por %p39, %p40
    %s43 = sadd.s32 %s42, 1
    %p46 = scmp.eq.s32.totalorder %s8, 1
    %p47 = scmp.ne.s32.totalorder %s42, %s44
    %p48 = scmp.eq.s32.totalorder %s8, 0
    %p49 = por %p47, %p48
    %p50 = scmp.ne.s32.totalorder %s42, %s44
    %p51 = scmp.eq.s32.totalorder %s13, 1
    %p52 = por %p50, %p51
    %p53 = scmp.ne.s32.totalorder %s44, %s45
    %p54 = scmp.eq.s32.totalorder %s13, 0
    %p55 = por %p53, %p54
    %p56 = scmp.ne.s32.totalorder %s44, %s45
    %p57 = scmp.eq.s32.totalorder %s14, 1
    %p58 = por %p56, %p57
    %p60 = scmp.ne.s32.totalorder %s45, %s59
    %p61 = scmp.eq.s32.totalorder %s14, 0
    %p62 = por %p60, %p61
    %s63 = ssub.s32 %s8, %s15
    %p64 = scmp.eq.s32.totalorder %s63, 0
    %s66 = sadd.s32 %s65, 1
    %s67 = scalar_select %p64, %s65, %s66
    %p70 = pneg %p64
    %p71 = scmp.eq.s32.totalorder %s8, 1
    %p72 = por %p70, %p71
    %p73 = scmp.ne.s32.totalorder %s65, %s68
    %p74 = scmp.eq.s32.totalorder %s8, 0
    %p75 = por %p73, %p74
    %p76 = scmp.ne.s32.totalorder %s65, %s68
    %p77 = scmp.eq.s32.totalorder %s13, 1
    %p78 = por %p76, %p77
    %p79 = scmp.ne.s32.totalorder %s68, %s69
    %p80 = scmp.eq.s32.totalorder %s13, 0
    %p81 = por %p79, %p80
    %p82 = scmp.ne.s32.totalorder %s68, %s69
    %p83 = scmp.eq.s32.totalorder %s14, 1
    %p84 = por %p82, %p83
    %p86 = scmp.ne.s32.totalorder %s69, %s85
    %p87 = scmp.eq.s32.totalorder %s14, 0
    %p88 = por %p86, %p87
    %p89 = scmp.le.s32.totalorder 1, %s8
    %p90 = scmp.lt.s32.totalorder %s8, 3
    %p91 = pnand %p89, %p90
    %p92 = pneg %p91
    // Predicated region
    $region9: #{_lambda_.6} parent=5 // pred_check
      _
    $region10: #{_lambda_.6} parent=5 // pred_check_branch
      %94 = sbr.rel (%p91) target = $region12
    $region11: #{_lambda_.6} parent=5 // pred_region
      %s95 = ssub.s32 %s8, 1
      // Predicated region
      $region13: #{_lambda_.6} parent=11 // pred_check
        %p96 = pneg %p55
      $region14: #{_lambda_.6} parent=11 // pred_check_branch
        %98 = sbr.rel (%p96) target = $region16
      $region15: #{_lambda_.6} parent=11 // pred_region
        _
      $region16: #{_lambda_.6} parent=11 // pred_fallthru
        _
    $region12: #{_lambda_.6} parent=5 // pred_fallthru
      _
    %p99 = scmp.lt.s32.totalorder %s8, 2
    // Predicated region
    $region17: #{_lambda_.6} parent=5 // pred_check
      %p100 = pneg %p99
    $region18: #{_lambda_.6} parent=5 // pred_check_branch
      %102 = sbr.rel (%p100) target = $region20
    $region19: #{_lambda_.6} parent=5 // pred_region
      // Predicated region
      $region21: #{_lambda_.6} parent=19 // pred_check
        %p103 = pneg %p28
      $region22: #{_lambda_.6} parent=19 // pred_check_branch
        %105 = sbr.rel (%p103) target = $region24
      $region23: #{_lambda_.6} parent=19 // pred_region
        %p106 = scmp.lt.s32.totalorder %s8, 1
        %s107 = scalar_select %p106, %s8, 1
        %s108 = smul.addr %s107, 8
        %s109 = smul.addr %s108, 8
        %s110 = scalar_lea.vmem %s0, %s109
      $region24: #{_lambda_.6} parent=19 // pred_fallthru
        _
    $region20: #{_lambda_.6} parent=5 // pred_fallthru
      _
    %p111 = scmp.le.s32.totalorder 1, %s8
    %p112 = scmp.lt.s32.totalorder %s8, 3
    %p113 = pnand %p111, %p112
    %p114 = pneg %p113
    // Predicated region
    $region25: #{_lambda_.6} parent=5 // pred_check
      _
    $region26: #{_lambda_.6} parent=5 // pred_check_branch
      %116 = sbr.rel (%p113) target = $region28
    $region27: #{_lambda_.6} parent=5 // pred_region
      %s117 = ssub.s32 %s8, 1
      %p118 = scmp.lt.s32.totalorder %s13, 1
      %s119 = scalar_select %p118, %s13, 1
      %s120 = smul.addr %s119, 8
      %s121 = smul.addr %s120, 8
      %s122 = scalar_lea.vmem %s0, %s121
      %p123 = pneg %p34
      %p124 = pneg %p31
      %p125 = pneg %p55
      %p126 = pneg %p52
      %p127 = pneg %p81
      %p128 = pneg %p78
      %p129 = scmp.lt.s32.totalorder %s13, 1
      %s130 = scalar_select %p129, %s13, 1
      %s131 = smul.addr %s130, 8
      %s132 = smul.addr %s131, 8
      %s133 = scalar_lea.vmem %s2, %s132
      %p134 = scmp.lt.s32.totalorder %s13, 1
      %s135 = scalar_select %p134, %s13, 1
      %s136 = smul.addr %s135, 8
      %s137 = smul.addr %s136, 8
      %s138 = scalar_lea.vmem %s0, %s137
      %p139 = scmp.lt.s32.totalorder %s13, 1
      %s140 = scalar_select %p139, %s13, 1
      %s141 = smul.addr %s140, 8
      %s142 = smul.addr %s141, 8
      %s143 = scalar_lea.vmem %s2, %s142
      %vm145 = vcmask 130048
      %146 = vst.msk [vmem:[#allocation2] sm:$0xff] %vm145, 0.0
      %vm147 = vcmask 123904
      %148 = vst.msk [vmem:[#allocation2 + $0x8] sm:$0x3] %vm147, 0.0
      %149 = vst.msk [vmem:[#allocation2 + $0x10] sm:$0xff] %vm145, 0.0
      %150 = vst.msk [vmem:[#allocation2 + $0x18] sm:$0x3] %vm147, 0.0
      %151 = vst.msk [vmem:[#allocation2 + $0x20] sm:$0xff] %vm145, 0.0
      %152 = vst.msk [vmem:[#allocation2 + $0x28] sm:$0x3] %vm147, 0.0
      %153 = vst.msk [vmem:[#allocation2 + $0x30] sm:$0xff] %vm145, 0.0
      %154 = vst.msk [vmem:[#allocation2 + $0x38] sm:$0x3] %vm147, 0.0
      %155 = vst.msk [vmem:[#allocation2 + $0x40] sm:$0xff] %vm145, 0.0
      %156 = vst.msk [vmem:[#allocation2 + $0x48] sm:$0x3] %vm147, 0.0
      %157 = vst.msk [vmem:[#allocation2 + $0x50] sm:$0xff] %vm145, 0.0
      %158 = vst.msk [vmem:[#allocation2 + $0x58] sm:$0x3] %vm147, 0.0
      %159 = vst.msk [vmem:[#allocation2 + $0x60] sm:$0xff] %vm145, 0.0
      %160 = vst.msk [vmem:[#allocation2 + $0x68] sm:$0x3] %vm147, 0.0
      %161 = vst.msk [vmem:[#allocation2 + $0x70] sm:$0xff] %vm145, 0.0
      %162 = vst.msk [vmem:[#allocation2 + $0x78] sm:$0x3] %vm147, 0.0
      %163 = vst.msk [vmem:[#allocation2 + $0x80] sm:$0xff] %vm145, 0.0
      %164 = vst.msk [vmem:[#allocation2 + $0x88] sm:$0x3] %vm147, 0.0
      %165 = vst.msk [vmem:[#allocation2 + $0x90] sm:$0xff] %vm145, 0.0
      %166 = vst.msk [vmem:[#allocation2 + $0x98] sm:$0x3] %vm147, 0.0
      %v167 = vld [vmem:[%s138] sm:$0xff]
      %v168 = vld [vmem:[%s138 + $0x8] sm:$0xff]
      %v169 = vld [vmem:[%s138 + $0x10] sm:$0xff]
      %v170 = vld [vmem:[%s138 + $0x18] sm:$0xff]
      %v171 = vld [vmem:[%s138 + $0x20] sm:$0xff]
      %v172 = vld [vmem:[%s138 + $0x28] sm:$0xff]
      %v173 = vld [vmem:[%s138 + $0x30] sm:$0xff]
      %v174 = vld [vmem:[%s138 + $0x38] sm:$0xff]
      %s175 = scalar_lea.vmem [#allocation2], 16
      %176 = vst.msk [vmem:[%s175 + $0x1] sm:$0xff] %vm145, %v167
      %177 = vst.msk [vmem:[%s175 + $0x11] sm:$0xff] %vm145, %v168
      %178 = vst.msk [vmem:[%s175 + $0x21] sm:$0xff] %vm145, %v169
      %179 = vst.msk [vmem:[%s175 + $0x31] sm:$0xff] %vm145, %v170
      %180 = vst.msk [vmem:[%s175 + $0x41] sm:$0xff] %vm145, %v171
      %181 = vst.msk [vmem:[%s175 + $0x51] sm:$0xff] %vm145, %v172
      %182 = vst.msk [vmem:[%s175 + $0x61] sm:$0xff] %vm145, %v173
      %183 = vst.msk [vmem:[%s175 + $0x71] sm:$0xff] %vm145, %v174
      %v184 = vld [vmem:[%s1] sm:$0xf]
      %v185 = vld [vmem:[%s1 + $0x4] sm:$0xf]
      %v186 = vld [vmem:[%s1 + $0x8] sm:$0xf]
      %v187 = vld [vmem:[%s1 + $0xc] sm:$0xf]
      %v188 = vld [vmem:[%s1 + $0x10] sm:$0xf]
      %v189 = vld [vmem:[%s1 + $0x14] sm:$0xf]
      %v190 = vld [vmem:[%s1 + $0x18] sm:$0xf]
      %v191 = vld [vmem:[%s1 + $0x1c] sm:$0xf]
      %v192 = vld [vmem:[%s1 + $0x20] sm:$0xf]
      %v193 = vld [vmem:[%s1 + $0x24] sm:$0xf]
      %v194 = vld [vmem:[%s1 + $0x28] sm:$0xf]
      %v195 = vld [vmem:[%s1 + $0x2c] sm:$0xf]
      %v196 = vld [vmem:[%s1 + $0x30] sm:$0xf]
      %v197 = vld [vmem:[%s1 + $0x34] sm:$0xf]
      %v198 = vld [vmem:[%s1 + $0x38] sm:$0xf]
      %v199 = vld [vmem:[%s1 + $0x3c] sm:$0xf]
      %v200 = vld [vmem:[%s1 + $0x40] sm:$0xf]
      %v201 = vld [vmem:[%s1 + $0x44] sm:$0xf]
      %s202 = smul.u32 0, 16
      %s203 = scalar_lea.vmem [#allocation2], %s202
      %v204 = vld [vmem:[%s203] sm:$0xff]
      %v205 = vld [vmem:[%s203 + $0x8] sm:$0x3]
      %v206 = vld [vmem:[%s203 + $0x10] sm:$0xff]
      %v207 = vld [vmem:[%s203 + $0x18] sm:$0x3]
      %v208 = vld [vmem:[%s203 + $0x20] sm:$0xff]
      %v209 = vld [vmem:[%s203 + $0x28] sm:$0x3]
      %v210 = vld [vmem:[%s203 + $0x30] sm:$0xff]
      %v211 = vld [vmem:[%s203 + $0x38] sm:$0x3]
      %v212 = vld [vmem:[%s203 + $0x40] sm:$0xff]
      %v213 = vld [vmem:[%s203 + $0x48] sm:$0x3]
      %v214 = vld [vmem:[%s203 + $0x50] sm:$0xff]
      %v215 = vld [vmem:[%s203 + $0x58] sm:$0x3]
      %v216 = vld [vmem:[%s203 + $0x60] sm:$0xff]
      %v217 = vld [vmem:[%s203 + $0x68] sm:$0x3]
      %v218 = vld [vmem:[%s203 + $0x70] sm:$0xff]
      %v219 = vld [vmem:[%s203 + $0x78] sm:$0x3]
      %s220 = sadd.s32 0, 1
      %s221 = smul.u32 %s220, 16
      %s222 = scalar_lea.vmem [#allocation2], %s221
      %v223 = vld [vmem:[%s222] sm:$0xff]
      %v224 = vld [vmem:[%s222 + $0x8] sm:$0x3]
      %v225 = vld [vmem:[%s222 + $0x10] sm:$0xff]
      %v226 = vld [vmem:[%s222 + $0x18] sm:$0x3]
      %v227 = vld [vmem:[%s222 + $0x20] sm:$0xff]
      %v228 = vld [vmem:[%s222 + $0x28] sm:$0x3]
      %v229 = vld [vmem:[%s222 + $0x30] sm:$0xff]
      %v230 = vld [vmem:[%s222 + $0x38] sm:$0x3]
      %v231 = vld [vmem:[%s222 + $0x40] sm:$0xff]
      %v232 = vld [vmem:[%s222 + $0x48] sm:$0x3]
      %v233 = vld [vmem:[%s222 + $0x50] sm:$0xff]
      %v234 = vld [vmem:[%s222 + $0x58] sm:$0x3]
      %v235 = vld [vmem:[%s222 + $0x60] sm:$0xff]
      %v236 = vld [vmem:[%s222 + $0x68] sm:$0x3]
      %v237 = vld [vmem:[%s222 + $0x70] sm:$0xff]
      %v238 = vld [vmem:[%s222 + $0x78] sm:$0x3]
      %s239 = sadd.s32 0, 2
      %s240 = smul.u32 %s239, 16
      %s241 = scalar_lea.vmem [#allocation2], %s240
      %v242 = vld [vmem:[%s241] sm:$0xff]
      %v243 = vld [vmem:[%s241 + $0x8] sm:$0x3]
      %v244 = vld [vmem:[%s241 + $0x10] sm:$0xff]
      %v245 = vld [vmem:[%s241 + $0x18] sm:$0x3]
      %v246 = vld [vmem:[%s241 + $0x20] sm:$0xff]
      %v247 = vld [vmem:[%s241 + $0x28] sm:$0x3]
      %v248 = vld [vmem:[%s241 + $0x30] sm:$0xff]
      %v249 = vld [vmem:[%s241 + $0x38] sm:$0x3]
      %v250 = vld [vmem:[%s241 + $0x40] sm:$0xff]
      %v251 = vld [vmem:[%s241 + $0x48] sm:$0x3]
      %v252 = vld [vmem:[%s241 + $0x50] sm:$0xff]
      %v253 = vld [vmem:[%s241 + $0x58] sm:$0x3]
      %v254 = vld [vmem:[%s241 + $0x60] sm:$0xff]
      %v255 = vld [vmem:[%s241 + $0x68] sm:$0x3]
      %v256 = vld [vmem:[%s241 + $0x70] sm:$0xff]
      %v257 = vld [vmem:[%s241 + $0x78] sm:$0x3]
      %vm274 = vcmask 1046528
      %v275 = vrot.slane %v204, 1
      %v276 = vrot.slane %v205, 1
      %v277 = vsel %vm274, %v275, %v276
      %v278 = vrot.slane %v206, 1
      %v279 = vrot.slane %v207, 1
      %v280 = vsel %vm274, %v278, %v279
      %v281 = vrot.slane %v208, 1
      %v282 = vrot.slane %v209, 1
      %v283 = vsel %vm274, %v281, %v282
      %v284 = vrot.slane %v210, 1
      %v285 = vrot.slane %v211, 1
      %v286 = vsel %vm274, %v284, %v285
      %v287 = vrot.slane %v212, 1
      %v288 = vrot.slane %v213, 1
      %v289 = vsel %vm274, %v287, %v288
      %v290 = vrot.slane %v214, 1
      %v291 = vrot.slane %v215, 1
      %v292 = vsel %vm274, %v290, %v291
      %v293 = vrot.slane %v216, 1
      %v294 = vrot.slane %v217, 1
      %v295 = vsel %vm274, %v293, %v294
      %v296 = vrot.slane %v218, 1
      %v297 = vrot.slane %v219, 1
      %v298 = vsel %vm274, %v296, %v297
      %299 = vrot.lane.b32.xlu0 %v277, 16
      %v300 = vpop.permute.xlu0 %299
      %301 = vrot.lane.b32.xlu0 %v280, 16
      %v302 = vpop.permute.xlu0 %301
      %303 = vrot.lane.b32.xlu0 %v283, 16
      %v304 = vpop.permute.xlu0 %303
      %305 = vrot.lane.b32.xlu0 %v286, 16
      %v306 = vpop.permute.xlu0 %305
      %307 = vrot.lane.b32.xlu0 %v289, 16
      %v308 = vpop.permute.xlu0 %307
      %309 = vrot.lane.b32.xlu0 %v292, 16
      %v310 = vpop.permute.xlu0 %309
      %311 = vrot.lane.b32.xlu0 %v295, 16
      %v312 = vpop.permute.xlu0 %311
      %313 = vrot.lane.b32.xlu0 %v298, 16
      %v314 = vpop.permute.xlu0 %313
      %vm323 = vcmask 1045504
      %v324 = vrot.slane %v204, 2
      %v325 = vrot.slane %v205, 2
      %v326 = vsel %vm323, %v324, %v325
      %v327 = vrot.slane %v206, 2
      %v328 = vrot.slane %v207, 2
      %v329 = vsel %vm323, %v327, %v328
      %v330 = vrot.slane %v208, 2
      %v331 = vrot.slane %v209, 2
      %v332 = vsel %vm323, %v330, %v331
      %v333 = vrot.slane %v210, 2
      %v334 = vrot.slane %v211, 2
      %v335 = vsel %vm323, %v333, %v334
      %v336 = vrot.slane %v212, 2
      %v337 = vrot.slane %v213, 2
      %v338 = vsel %vm323, %v336, %v337
      %v339 = vrot.slane %v214, 2
      %v340 = vrot.slane %v215, 2
      %v341 = vsel %vm323, %v339, %v340
      %v342 = vrot.slane %v216, 2
      %v343 = vrot.slane %v217, 2
      %v344 = vsel %vm323, %v342, %v343
      %v345 = vrot.slane %v218, 2
      %v346 = vrot.slane %v219, 2
      %v347 = vsel %vm323, %v345, %v346
      %348 = vrot.lane.b32.xlu0 %v326, 32
      %v349 = vpop.permute.xlu0 %348
      %350 = vrot.lane.b32.xlu0 %v329, 32
      %v351 = vpop.permute.xlu0 %350
      %352 = vrot.lane.b32.xlu0 %v332, 32
      %v353 = vpop.permute.xlu0 %352
      %354 = vrot.lane.b32.xlu0 %v335, 32
      %v355 = vpop.permute.xlu0 %354
      %356 = vrot.lane.b32.xlu0 %v338, 32
      %v357 = vpop.permute.xlu0 %356
      %358 = vrot.lane.b32.xlu0 %v341, 32
      %v359 = vpop.permute.xlu0 %358
      %360 = vrot.lane.b32.xlu0 %v344, 32
      %v361 = vpop.permute.xlu0 %360
      %362 = vrot.lane.b32.xlu0 %v347, 32
      %v363 = vpop.permute.xlu0 %362
      %380 = vrot.lane.b32.xlu0 %v223, 48
      %v381 = vpop.permute.xlu0 %380
      %382 = vrot.lane.b32.xlu0 %v225, 48
      %v383 = vpop.permute.xlu0 %382
      %384 = vrot.lane.b32.xlu0 %v227, 48
      %v385 = vpop.permute.xlu0 %384
      %386 = vrot.lane.b32.xlu0 %v229, 48
      %v387 = vpop.permute.xlu0 %386
      %388 = vrot.lane.b32.xlu0 %v231, 48
      %v389 = vpop.permute.xlu0 %388
      %390 = vrot.lane.b32.xlu0 %v233, 48
      %v391 = vpop.permute.xlu0 %390
      %392 = vrot.lane.b32.xlu0 %v235, 48
      %v393 = vpop.permute.xlu0 %392
      %394 = vrot.lane.b32.xlu0 %v237, 48
      %v395 = vpop.permute.xlu0 %394
      %v412 = vrot.slane %v223, 1
      %v413 = vrot.slane %v224, 1
      %v414 = vsel %vm274, %v412, %v413
      %v415 = vrot.slane %v225, 1
      %v416 = vrot.slane %v226, 1
      %v417 = vsel %vm274, %v415, %v416
      %v418 = vrot.slane %v227, 1
      %v419 = vrot.slane %v228, 1
      %v420 = vsel %vm274, %v418, %v419
      %v421 = vrot.slane %v229, 1
      %v422 = vrot.slane %v230, 1
      %v423 = vsel %vm274, %v421, %v422
      %v424 = vrot.slane %v231, 1
      %v425 = vrot.slane %v232, 1
      %v426 = vsel %vm274, %v424, %v425
      %v427 = vrot.slane %v233, 1
      %v428 = vrot.slane %v234, 1
      %v429 = vsel %vm274, %v427, %v428
      %v430 = vrot.slane %v235, 1
      %v431 = vrot.slane %v236, 1
      %v432 = vsel %vm274, %v430, %v431
      %v433 = vrot.slane %v237, 1
      %v434 = vrot.slane %v238, 1
      %v435 = vsel %vm274, %v433, %v434
      %436 = vrot.lane.b32.xlu0 %v414, 64
      %v437 = vpop.permute.xlu0 %436
      %438 = vrot.lane.b32.xlu0 %v417, 64
      %v439 = vpop.permute.xlu0 %438
      %440 = vrot.lane.b32.xlu0 %v420, 64
      %v441 = vpop.permute.xlu0 %440
      %442 = vrot.lane.b32.xlu0 %v423, 64
      %v443 = vpop.permute.xlu0 %442
      %444 = vrot.lane.b32.xlu0 %v426, 64
      %v445 = vpop.permute.xlu0 %444
      %446 = vrot.lane.b32.xlu0 %v429, 64
      %v447 = vpop.permute.xlu0 %446
      %448 = vrot.lane.b32.xlu0 %v432, 64
      %v449 = vpop.permute.xlu0 %448
      %450 = vrot.lane.b32.xlu0 %v435, 64
      %v451 = vpop.permute.xlu0 %450
      %v460 = vrot.slane %v223, 2
      %v461 = vrot.slane %v224, 2
      %v462 = vsel %vm323, %v460, %v461
      %v463 = vrot.slane %v225, 2
      %v464 = vrot.slane %v226, 2
      %v465 = vsel %vm323, %v463, %v464
      %v466 = vrot.slane %v227, 2
      %v467 = vrot.slane %v228, 2
      %v468 = vsel %vm323, %v466, %v467
      %v469 = vrot.slane %v229, 2
      %v470 = vrot.slane %v230, 2
      %v471 = vsel %vm323, %v469, %v470
      %v472 = vrot.slane %v231, 2
      %v473 = vrot.slane %v232, 2
      %v474 = vsel %vm323, %v472, %v473
      %v475 = vrot.slane %v233, 2
      %v476 = vrot.slane %v234, 2
      %v477 = vsel %vm323, %v475, %v476
      %v478 = vrot.slane %v235, 2
      %v479 = vrot.slane %v236, 2
      %v480 = vsel %vm323, %v478, %v479
      %v481 = vrot.slane %v237, 2
      %v482 = vrot.slane %v238, 2
      %v483 = vsel %vm323, %v481, %v482
      %484 = vrot.lane.b32.xlu0 %v462, 80
      %v485 = vpop.permute.xlu0 %484
      %486 = vrot.lane.b32.xlu0 %v465, 80
      %v487 = vpop.permute.xlu0 %486
      %488 = vrot.lane.b32.xlu0 %v468, 80
      %v489 = vpop.permute.xlu0 %488
      %490 = vrot.lane.b32.xlu0 %v471, 80
      %v491 = vpop.permute.xlu0 %490
      %492 = vrot.lane.b32.xlu0 %v474, 80
      %v493 = vpop.permute.xlu0 %492
      %494 = vrot.lane.b32.xlu0 %v477, 80
      %v495 = vpop.permute.xlu0 %494
      %496 = vrot.lane.b32.xlu0 %v480, 80
      %v497 = vpop.permute.xlu0 %496
      %498 = vrot.lane.b32.xlu0 %v483, 80
      %v499 = vpop.permute.xlu0 %498
      %516 = vrot.lane.b32.xlu0 %v242, 96
      %v517 = vpop.permute.xlu0 %516
      %518 = vrot.lane.b32.xlu0 %v244, 96
      %v519 = vpop.permute.xlu0 %518
      %520 = vrot.lane.b32.xlu0 %v246, 96
      %v521 = vpop.permute.xlu0 %520
      %522 = vrot.lane.b32.xlu0 %v248, 96
      %v523 = vpop.permute.xlu0 %522
      %524 = vrot.lane.b32.xlu0 %v250, 96
      %v525 = vpop.permute.xlu0 %524
      %526 = vrot.lane.b32.xlu0 %v252, 96
      %v527 = vpop.permute.xlu0 %526
      %528 = vrot.lane.b32.xlu0 %v254, 96
      %v529 = vpop.permute.xlu0 %528
      %530 = vrot.lane.b32.xlu0 %v256, 96
      %v531 = vpop.permute.xlu0 %530
      %v548 = vrot.slane %v242, 1
      %v549 = vrot.slane %v243, 1
      %v550 = vsel %vm274, %v548, %v549
      %v551 = vrot.slane %v244, 1
      %v552 = vrot.slane %v245, 1
      %v553 = vsel %vm274, %v551, %v552
      %v554 = vrot.slane %v246, 1
      %v555 = vrot.slane %v247, 1
      %v556 = vsel %vm274, %v554, %v555
      %v557 = vrot.slane %v248, 1
      %v558 = vrot.slane %v249, 1
      %v559 = vsel %vm274, %v557, %v558
      %v560 = vrot.slane %v250, 1
      %v561 = vrot.slane %v251, 1
      %v562 = vsel %vm274, %v560, %v561
      %v563 = vrot.slane %v252, 1
      %v564 = vrot.slane %v253, 1
      %v565 = vsel %vm274, %v563, %v564
      %v566 = vrot.slane %v254, 1
      %v567 = vrot.slane %v255, 1
      %v568 = vsel %vm274, %v566, %v567
      %v569 = vrot.slane %v256, 1
      %v570 = vrot.slane %v257, 1
      %v571 = vsel %vm274, %v569, %v570
      %572 = vrot.lane.b32.xlu0 %v550, 112
      %v573 = vpop.permute.xlu0 %572
      %574 = vrot.lane.b32.xlu0 %v553, 112
      %v575 = vpop.permute.xlu0 %574
      %576 = vrot.lane.b32.xlu0 %v556, 112
      %v577 = vpop.permute.xlu0 %576
      %578 = vrot.lane.b32.xlu0 %v559, 112
      %v579 = vpop.permute.xlu0 %578
      %580 = vrot.lane.b32.xlu0 %v562, 112
      %v581 = vpop.permute.xlu0 %580
      %582 = vrot.lane.b32.xlu0 %v565, 112
      %v583 = vpop.permute.xlu0 %582
      %584 = vrot.lane.b32.xlu0 %v568, 112
      %v585 = vpop.permute.xlu0 %584
      %586 = vrot.lane.b32.xlu0 %v571, 112
      %v587 = vpop.permute.xlu0 %586
      %v596 = vrot.slane %v242, 2
      %v597 = vrot.slane %v243, 2
      %v598 = vsel %vm323, %v596, %v597
      %v599 = vrot.slane %v244, 2
      %v600 = vrot.slane %v245, 2
      %v601 = vsel %vm323, %v599, %v600
      %v602 = vrot.slane %v246, 2
      %v603 = vrot.slane %v247, 2
      %v604 = vsel %vm323, %v602, %v603
      %v605 = vrot.slane %v248, 2
      %v606 = vrot.slane %v249, 2
      %v607 = vsel %vm323, %v605, %v606
      %v608 = vrot.slane %v250, 2
      %v609 = vrot.slane %v251, 2
      %v610 = vsel %vm323, %v608, %v609
      %v611 = vrot.slane %v252, 2
      %v612 = vrot.slane %v253, 2
      %v613 = vsel %vm323, %v611, %v612
      %v614 = vrot.slane %v254, 2
      %v615 = vrot.slane %v255, 2
      %v616 = vsel %vm323, %v614, %v615
      %v617 = vrot.slane %v256, 2
      %v618 = vrot.slane %v257, 2
      %v619 = vsel %vm323, %v617, %v618
      %v628 = vsel %vm145, %v204, %v300
      %v629 = vsel %vm145, %v206, %v302
      %v630 = vsel %vm145, %v208, %v304
      %v631 = vsel %vm145, %v210, %v306
      %v632 = vsel %vm145, %v212, %v308
      %v633 = vsel %vm145, %v214, %v310
      %v634 = vsel %vm145, %v216, %v312
      %v635 = vsel %vm145, %v218, %v314
      %vm636 = vcmask 261120
      %v637 = vsel %vm636, %v628, %v349
      %v638 = vsel %vm636, %v629, %v351
      %v639 = vsel %vm636, %v630, %v353
      %v640 = vsel %vm636, %v631, %v355
      %v641 = vsel %vm636, %v632, %v357
      %v642 = vsel %vm636, %v633, %v359
      %v643 = vsel %vm636, %v634, %v361
      %v644 = vsel %vm636, %v635, %v363
      %vm645 = vcmask 392192
      %v646 = vsel %vm645, %v637, %v381
      %v647 = vsel %vm645, %v638, %v383
      %v648 = vsel %vm645, %v639, %v385
      %v649 = vsel %vm645, %v640, %v387
      %v650 = vsel %vm645, %v641, %v389
      %v651 = vsel %vm645, %v642, %v391
      %v652 = vsel %vm645, %v643, %v393
      %v653 = vsel %vm645, %v644, %v395
      %vm654 = vcmask 523264
      %v655 = vsel %vm654, %v646, %v437
      %v656 = vsel %vm654, %v647, %v439
      %v657 = vsel %vm654, %v648, %v441
      %v658 = vsel %vm654, %v649, %v443
      %v659 = vsel %vm654, %v650, %v445
      %v660 = vsel %vm654, %v651, %v447
      %v661 = vsel %vm654, %v652, %v449
      %v662 = vsel %vm654, %v653, %v451
      %vm663 = vcmask 654336
      %v664 = vsel %vm663, %v655, %v485
      %v665 = vsel %vm663, %v656, %v487
      %v666 = vsel %vm663, %v657, %v489
      %v667 = vsel %vm663, %v658, %v491
      %v668 = vsel %vm663, %v659, %v493
      %v669 = vsel %vm663, %v660, %v495
      %v670 = vsel %vm663, %v661, %v497
      %v671 = vsel %vm663, %v662, %v499
      %vm672 = vcmask 785408
      %v673 = vsel %vm672, %v664, %v517
      %v674 = vsel %vm672, %v665, %v519
      %v675 = vsel %vm672, %v666, %v521
      %v676 = vsel %vm672, %v667, %v523
      %v677 = vsel %vm672, %v668, %v525
      %v678 = vsel %vm672, %v669, %v527
      %v679 = vsel %vm672, %v670, %v529
      %v680 = vsel %vm672, %v671, %v531
      %vm681 = vcmask 916480
      %v682 = vsel %vm681, %v673, %v573
      %v683 = vsel %vm681, %v674, %v575
      %v684 = vsel %vm681, %v675, %v577
      %v685 = vsel %vm681, %v676, %v579
      %v686 = vsel %vm681, %v677, %v581
      %v687 = vsel %vm681, %v678, %v583
      %v688 = vsel %vm681, %v679, %v585
      %v689 = vsel %vm681, %v680, %v587
      %v690 = vpack.c.bf16 %v682, %v682
      %v691 = vpack.c.bf16 %v598, %v598
      %v692 = vpack.c.bf16 %v683, %v683
      %v693 = vpack.c.bf16 %v601, %v601
      %v694 = vpack.c.bf16 %v684, %v684
      %v695 = vpack.c.bf16 %v604, %v604
      %v696 = vpack.c.bf16 %v685, %v685
      %v697 = vpack.c.bf16 %v607, %v607
      %v698 = vpack.c.bf16 %v686, %v686
      %v699 = vpack.c.bf16 %v610, %v610
      %v700 = vpack.c.bf16 %v687, %v687
      %v701 = vpack.c.bf16 %v613, %v613
      %v702 = vpack.c.bf16 %v688, %v688
      %v703 = vpack.c.bf16 %v616, %v616
      %v704 = vpack.c.bf16 %v689, %v689
      %v705 = vpack.c.bf16 %v619, %v619
      %v722 = vunpack.c.l.b16 %v690
      %v723 = vunpack.c.l.b16 %v691
      %v724 = vunpack.c.l.b16 %v692
      %v725 = vunpack.c.l.b16 %v693
      %v726 = vunpack.c.l.b16 %v694
      %v727 = vunpack.c.l.b16 %v695
      %v728 = vunpack.c.l.b16 %v696
      %v729 = vunpack.c.l.b16 %v697
      %v730 = vunpack.c.l.b16 %v698
      %v731 = vunpack.c.l.b16 %v699
      %v732 = vunpack.c.l.b16 %v700
      %v733 = vunpack.c.l.b16 %v701
      %v734 = vunpack.c.l.b16 %v702
      %v735 = vunpack.c.l.b16 %v703
      %v736 = vunpack.c.l.b16 %v704
      %v737 = vunpack.c.l.b16 %v705
      %v738 = vpack.c.b16 %v724, %v722
      %v739 = vpack.c.b16 %v725, %v723
      %v740 = vpack.c.b16 %v728, %v726
      %v741 = vpack.c.b16 %v729, %v727
      %v742 = vpack.c.b16 %v732, %v730
      %v743 = vpack.c.b16 %v733, %v731
      %v744 = vpack.c.b16 %v736, %v734
      %v745 = vpack.c.b16 %v737, %v735
      %v768 = vunpack.c.l.b16 %v184
      %v769 = vunpack.c.l.b16 %v185
      %v770 = vunpack.c.l.b16 %v186
      %v771 = vunpack.c.l.b16 %v187
      %v772 = vunpack.c.l.b16 %v188
      %v773 = vunpack.c.l.b16 %v189
      %v774 = vunpack.c.l.b16 %v190
      %v775 = vunpack.c.l.b16 %v191
      %v776 = vunpack.c.l.b16 %v192
      %v777 = vunpack.c.l.b16 %v193
      %v778 = vunpack.c.l.b16 %v194
      %v779 = vunpack.c.l.b16 %v195
      %v780 = vunpack.c.l.b16 %v196
      %v781 = vunpack.c.l.b16 %v197
      %v782 = vunpack.c.l.b16 %v198
      %v783 = vunpack.c.l.b16 %v199
      %v784 = vunpack.c.l.b16 %v200
      %v785 = vunpack.c.l.b16 %v201
      %v786 = vpack.c.b16 %v769, %v768
      %v787 = vpack.c.b16 %v771, %v770
      %v788 = vpack.c.b16 %v773, %v772
      %v789 = vpack.c.b16 %v775, %v774
      %v790 = vpack.c.b16 %v777, %v776
      %v791 = vpack.c.b16 %v779, %v778
      %v792 = vpack.c.b16 %v781, %v780
      %v793 = vpack.c.b16 %v783, %v782
      %v794 = vpack.c.b16 %v785, %v784
      %v805 = vsel %vm145, %v739, 0
      %v808 = vsel %vm145, %v741, 0
      %v811 = vsel %vm145, %v743, 0
      %v814 = vsel %vm145, %v745, 0
      %816 = vmatprep.subr.bf16.mxu0 0
      %817 = vmatpush1.bf16.msra.mxu0 %v793
      %818 = vmatprep.subr.bf16.mxu0 0
      %819 = vmatpush1.bf16.msra.mxu0 %v792
      %820 = vmatprep.subr.bf16.mxu0 0
      %821 = vmatpush1.bf16.msra.mxu0 %v791
      %822 = vmatprep.subr.bf16.mxu0 0
      %823 = vmatpush1.bf16.msra.mxu0 %v790
      %824 = vmatprep.subr.bf16.mxu0 0
      %825 = vmatpush1.bf16.msra.mxu0 %v789
      %826 = vmatprep.subr.bf16.mxu0 0
      %827 = vmatpush1.bf16.msra.mxu0 %v788
      %828 = vmatprep.subr.bf16.mxu0 0
      %829 = vmatpush1.bf16.msra.mxu0 %v787
      %830 = vmatprep.subr.bf16.mxu0 0
      %831 = vmatpush1.bf16.msra.mxu0 %v786
      %832 = vmatprep.subr.bf16.mxu0 0
      %833 = vmatpush2.bf16.msra.mxu0 0
      %834 = vmatprep.subr.bf16.mxu0 0
      %835 = vmatpush2.bf16.msra.mxu0 0
      %836 = vmatprep.subr.bf16.mxu0 0
      %837 = vmatpush2.bf16.msra.mxu0 0
      %838 = vmatprep.subr.bf16.mxu0 0
      %839 = vmatpush2.bf16.msra.mxu0 0
      %840 = vmatprep.subr.bf16.mxu0 0
      %841 = vmatpush2.bf16.msra.mxu0 0
      %842 = vmatprep.subr.bf16.mxu0 0
      %843 = vmatpush2.bf16.msra.mxu0 0
      %844 = vmatprep.subr.bf16.mxu0 0
      %845 = vmatpush2.bf16.msra.mxu0 0
      %846 = vmatprep.subr.bf16.mxu0 0
      %847 = vmatpush2.bf16.msra.mxu0 %v794
      %848 = vmatprep.mubr.bf16.mxu0 %v805
      %849 = vmatmul.mubr.bf16.gmra.mxu0 %v738
      %v850 = vpop.f32.mrf.mxu0
      %v851 = vadd.f32 0.0, %v850
      %v852 = vpop.f32.mrf.mxu0
      %v853 = vpop.f32.mrf.mxu0
      %v854 = vadd.f32 0.0, %v853
      %v855 = vpop.f32.mrf.mxu0
      %856 = vmatprep.mubr.bf16.mxu0 %v808
      %857 = vmatmul.mubr.bf16.gmra.mxu0 %v740
      %v858 = vpop.f32.mrf.mxu0
      %v859 = vadd.f32 0.0, %v858
      %v860 = vpop.f32.mrf.mxu0
      %v861 = vpop.f32.mrf.mxu0
      %v862 = vadd.f32 0.0, %v861
      %v863 = vpop.f32.mrf.mxu0
      %864 = vmatprep.mubr.bf16.mxu0 %v811
      %865 = vmatmul.mubr.bf16.gmra.mxu0 %v742
      %v866 = vpop.f32.mrf.mxu0
      %v867 = vadd.f32 0.0, %v866
      %v868 = vpop.f32.mrf.mxu0
      %v869 = vpop.f32.mrf.mxu0
      %v870 = vadd.f32 0.0, %v869
      %v871 = vpop.f32.mrf.mxu0
      %872 = vmatprep.mubr.bf16.mxu0 %v814
      %873 = vmatmul.mubr.bf16.gmra.mxu0 %v744
      %v874 = vpop.f32.mrf.mxu0
      %v875 = vadd.f32 0.0, %v874
      %v876 = vpop.f32.mrf.mxu0
      %v877 = vpop.f32.mrf.mxu0
      %v878 = vadd.f32 0.0, %v877
      %v879 = vpop.f32.mrf.mxu0
      %880 = vdwg.mxu0
      %v881 = vmax.f32 %v851, 0.0
      %v882 = vmax.f32 %v854, 0.0
      %v883 = vmax.f32 %v859, 0.0
      %v884 = vmax.f32 %v862, 0.0
      %v885 = vmax.f32 %v867, 0.0
      %v886 = vmax.f32 %v870, 0.0
      %v887 = vmax.f32 %v875, 0.0
      %v888 = vmax.f32 %v878, 0.0
      %s889 = smul.u32 0, 8
      %s890 = scalar_lea.vmem %s143, %s889
      %891 = vst.msk [vmem:[%s890] sm:$0xff] %vm654, %v881
      %892 = vst.msk [vmem:[%s890 + $0x8] sm:$0xff] %vm654, %v882
      %893 = vst.msk [vmem:[%s890 + $0x10] sm:$0xff] %vm654, %v883
      %894 = vst.msk [vmem:[%s890 + $0x18] sm:$0xff] %vm654, %v884
      %895 = vst.msk [vmem:[%s890 + $0x20] sm:$0xff] %vm654, %v885
      %896 = vst.msk [vmem:[%s890 + $0x28] sm:$0xff] %vm654, %v886
      %897 = vst.msk [vmem:[%s890 + $0x30] sm:$0xff] %vm654, %v887
      %898 = vst.msk [vmem:[%s890 + $0x38] sm:$0xff] %vm654, %v888
      %p899 = scmp.lt.s32.totalorder %s13, 1
      %s900 = scalar_select %p899, %s13, 1
      %s901 = smul.addr %s900, 8
      %s902 = smul.addr %s901, 8
      %s903 = scalar_lea.vmem %s2, %s902
      // Predicated region
      $region29: #{_lambda_.6} parent=27 // pred_check
        %p904 = pneg %p78
      $region30: #{_lambda_.6} parent=27 // pred_check_branch
        %906 = sbr.rel (%p904) target = $region32
      $region31: #{_lambda_.6} parent=27 // pred_region
        _
      $region32: #{_lambda_.6} parent=27 // pred_fallthru
        _
    $region28: #{_lambda_.6} parent=5 // pred_fallthru
      _
    %p907 = scmp.le.s32.totalorder 2, %s8
    // Predicated region
    $region33: #{_lambda_.6} parent=5 // pred_check
      %p908 = pneg %p907
    $region34: #{_lambda_.6} parent=5 // pred_check_branch
      %910 = sbr.rel (%p908) target = $region36
    $region35: #{_lambda_.6} parent=5 // pred_region
      %s911 = ssub.s32 %s8, 2
      // Predicated region
      $region37: #{_lambda_.6} parent=35 // pred_check
        %p912 = pneg %p84
      $region38: #{_lambda_.6} parent=35 // pred_check_branch
        %914 = sbr.rel (%p912) target = $region40
      $region39: #{_lambda_.6} parent=35 // pred_region
        %p915 = scmp.lt.s32.totalorder %s14, 1
        %s916 = scalar_select %p915, %s14, 1
        %s917 = smul.addr %s916, 8
        %s918 = smul.addr %s917, 8
        %s919 = scalar_lea.vmem %s2, %s918
      $region40: #{_lambda_.6} parent=35 // pred_fallthru
        _
    $region36: #{_lambda_.6} parent=5 // pred_fallthru
      _
  $region6: #{_lambda_.6} parent=0 // loop_footer
    %s12 = sadd.s32 1, %s8
  $region7: #{_lambda_.6} parent=0 // loop_footer_branch
    %7 = sbr.rel target = $region3
  $region8: #{_lambda_.6} parent=0 // loop_exit
    _

// kernel: _lambda_.5
$region0: #{_lambda_.5}
  #allocation0 [shape = 'u32[]', space=smem, size = 0x4, offset = 0x4, fixed_abs, tag = 'smem constant byte address 0x4 - core index']
  #allocation1 [shape = 'u32[144,128]{1,0:T(1,128)}', space=vmem, size = 0x12000, scoped, tag = 'internal scratch']
  #allocation2 [shape = 'f32[10,10,16]{2,1,0:T(8,128)}', space=vmem, size = 0x14000, scoped, tag = 'scratch operand']
  #allocation3 [shape = 'f32[10,10,16]{2,1,0:T(8,128)}', space=vmem, size = 0x14000, scoped, tag = 'scratch operand']
  %s0 = inlined_call_operand.vmem [shape: f32[2,8,8,16], index: 0, kind: input, shape index: {}]
  %s1 = inlined_call_operand.vmem [shape: bf16[2,2,144,16], index: 1, kind: input, shape index: {}]
  %s2 = inlined_call_operand.vmem [shape: f32[2,8,8,16], index: 2, kind: output, shape index: {}]
  %s3 = sld [smem:[#allocation0]]
  $region49: #{_lambda_.5} parent=0
    _
  %s5 = ssub.s32 1, %s3
  %s6 = scalar_select 0, %s5, %s3
  loop: start=0, step=1, limit=6
  $region2: #{_lambda_.5} parent=0 // loop_pre_header
    _
  $region3: #{_lambda_.5} parent=0 // loop_header
    %s8 = sphi 0, %s12
    %p9 = scmp.ge.s32.totalorder %s8, 6
    %s15 = sphi 0, %s27
    %s16 = sphi 0, %s23
    %s17 = sphi 0, %s15
    %s18 = sphi 0, %s16
    %s19 = sphi 0, %s17
    %s20 = sphi 0, %s18
    %s30 = sphi 0, %s32
    %s33 = sphi 0, %s30
    %s34 = sphi 0, %s33
    %s50 = sphi 0, %s34
    %s56 = sphi 0, %s58
    %s59 = sphi 0, %s56
    %s60 = sphi 0, %s59
    %s76 = sphi 0, %s60
    %s82 = sphi 0, %s84
    %s85 = sphi 0, %s82
    %s86 = sphi 0, %s85
    %s102 = sphi 0, %s86
  $region4: #{_lambda_.5} parent=0 // loop_header_branch
    %11 = sbr.rel (%p9) target = $region8
  $region5: #{_lambda_.5} parent=0 // loop_body
    %s13 = ssub.s32 %s8, 1
    %s14 = ssub.s32 %s8, 2
    %s21 = sadd.s32 1, %s16
    %p22 = scmp.ge.s32.totalorder %s21, 2
    %s23 = scalar_select %p22, 0, %s21
    %s24 = sadd.s32 1, %s15
    %s25 = scalar_select %p22, %s24, %s15
    %p26 = scmp.ge.s32.totalorder %s25, 2
    %s27 = scalar_select %p26, 0, %s25
    %s28 = ssub.s32 %s15, %s27
    %p29 = scmp.eq.s32.totalorder %s28, 0
    %s31 = sadd.s32 %s30, 1
    %s32 = scalar_select %p29, %s30, %s31
    %p35 = pneg %p29
    %p36 = scmp.eq.s32.totalorder %s8, 3
    %p37 = por %p35, %p36
    %p38 = scmp.ne.s32.totalorder %s30, %s33
    %p39 = scmp.eq.s32.totalorder %s8, 0
    %p40 = por %p38, %p39
    %p41 = scmp.ne.s32.totalorder %s30, %s33
    %p42 = scmp.eq.s32.totalorder %s13, 3
    %p43 = por %p41, %p42
    %p44 = scmp.ne.s32.totalorder %s33, %s34
    %p45 = scmp.eq.s32.totalorder %s13, 0
    %p46 = por %p44, %p45
    %p47 = scmp.ne.s32.totalorder %s33, %s34
    %p48 = scmp.eq.s32.totalorder %s14, 3
    %p49 = por %p47, %p48
    %p51 = scmp.ne.s32.totalorder %s34, %s50
    %p52 = scmp.eq.s32.totalorder %s14, 0
    %p53 = por %p51, %p52
    %s54 = ssub.s32 %s16, %s23
    %p55 = scmp.eq.s32.totalorder %s54, 0
    %s57 = sadd.s32 %s56, 1
    %s58 = scalar_select %p55, %s56, %s57
    %p61 = pneg %p55
    %p62 = scmp.eq.s32.totalorder %s8, 3
    %p63 = por %p61, %p62
    %p64 = scmp.ne.s32.totalorder %s56, %s59
    %p65 = scmp.eq.s32.totalorder %s8, 0
    %p66 = por %p64, %p65
    %p67 = scmp.ne.s32.totalorder %s56, %s59
    %p68 = scmp.eq.s32.totalorder %s13, 3
    %p69 = por %p67, %p68
    %p70 = scmp.ne.s32.totalorder %s59, %s60
    %p71 = scmp.eq.s32.totalorder %s13, 0
    %p72 = por %p70, %p71
    %p73 = scmp.ne.s32.totalorder %s59, %s60
    %p74 = scmp.eq.s32.totalorder %s14, 3
    %p75 = por %p73, %p74
    %p77 = scmp.ne.s32.totalorder %s60, %s76
    %p78 = scmp.eq.s32.totalorder %s14, 0
    %p79 = por %p77, %p78
    %s80 = ssub.s32 %s15, %s27
    %p81 = scmp.eq.s32.totalorder %s80, 0
    %s83 = sadd.s32 %s82, 1
    %s84 = scalar_select %p81, %s82, %s83
    %p87 = pneg %p81
    %p88 = scmp.eq.s32.totalorder %s8, 3
    %p89 = por %p87, %p88
    %p90 = scmp.ne.s32.totalorder %s82, %s85
    %p91 = scmp.eq.s32.totalorder %s8, 0
    %p92 = por %p90, %p91
    %p93 = scmp.ne.s32.totalorder %s82, %s85
    %p94 = scmp.eq.s32.totalorder %s13, 3
    %p95 = por %p93, %p94
    %p96 = scmp.ne.s32.totalorder %s85, %s86
    %p97 = scmp.eq.s32.totalorder %s13, 0
    %p98 = por %p96, %p97
    %p99 = scmp.ne.s32.totalorder %s85, %s86
    %p100 = scmp.eq.s32.totalorder %s14, 3
    %p101 = por %p99, %p100
    %p103 = scmp.ne.s32.totalorder %s86, %s102
    %p104 = scmp.eq.s32.totalorder %s14, 0
    %p105 = por %p103, %p104
    %p106 = scmp.le.s32.totalorder 1, %s8
    %p107 = scmp.lt.s32.totalorder %s8, 5
    %p108 = pnand %p106, %p107
    %p109 = pneg %p108
    // Predicated region
    $region9: #{_lambda_.5} parent=5 // pred_check
      _
    $region10: #{_lambda_.5} parent=5 // pred_check_branch
      %111 = sbr.rel (%p108) target = $region12
    $region11: #{_lambda_.5} parent=5 // pred_region
      %s112 = ssub.s32 %s8, 1
    $region12: #{_lambda_.5} parent=5 // pred_fallthru
      _
    %p113 = scmp.lt.s32.totalorder %s8, 4
    // Predicated region
    $region13: #{_lambda_.5} parent=5 // pred_check
      %p114 = pneg %p113
    $region14: #{_lambda_.5} parent=5 // pred_check_branch
      %116 = sbr.rel (%p114) target = $region16
    $region15: #{_lambda_.5} parent=5 // pred_region
      // Predicated region
      $region17: #{_lambda_.5} parent=15 // pred_check
        %p117 = pneg %p40
      $region18: #{_lambda_.5} parent=15 // pred_check_branch
        %119 = sbr.rel (%p117) target = $region20
      $region19: #{_lambda_.5} parent=15 // pred_region
        %p120 = scmp.lt.s32.totalorder %s15, 1
        %s121 = scalar_select %p120, %s15, 1
        %s122 = smul.addr %s121, 8
        %s123 = smul.addr %s122, 8
        %s124 = scalar_lea.vmem %s0, %s123
      $region20: #{_lambda_.5} parent=15 // pred_fallthru
        _
      // Predicated region
      $region21: #{_lambda_.5} parent=15 // pred_check
        %p125 = pneg %p66
      $region22: #{_lambda_.5} parent=15 // pred_check_branch
        %127 = sbr.rel (%p125) target = $region24
      $region23: #{_lambda_.5} parent=15 // pred_region
        %p128 = scmp.lt.s32.totalorder %s16, 1
        %s129 = scalar_select %p128, %s16, 1
        %s130 = smul.addr %s129, 36
        %s131 = smul.addr %s130, 4
        %s132 = scalar_lea.vmem %s1, %s131
      $region24: #{_lambda_.5} parent=15 // pred_fallthru
        _
    $region16: #{_lambda_.5} parent=5 // pred_fallthru
      _
    %p133 = scmp.le.s32.totalorder 1, %s8
    %p134 = scmp.lt.s32.totalorder %s8, 5
    %p135 = pnand %p133, %p134
    %p136 = pneg %p135
    // Predicated region
    $region25: #{_lambda_.5} parent=5 // pred_check
      _
    $region26: #{_lambda_.5} parent=5 // pred_check_branch
      %138 = sbr.rel (%p135) target = $region28
    $region27: #{_lambda_.5} parent=5 // pred_region
      %s139 = ssub.s32 %s8, 1
      %p140 = scmp.lt.s32.totalorder %s17, 1
      %s141 = scalar_select %p140, %s17, 1
      %s142 = smul.addr %s141, 8
      %s143 = smul.addr %s142, 8
      %s144 = scalar_lea.vmem %s0, %s143
      %p145 = pneg %p46
      %p146 = pneg %p43
      %p147 = scmp.lt.s32.totalorder %s18, 1
      %s148 = scalar_select %p147, %s18, 1
      %s149 = smul.addr %s148, 36
      %s150 = smul.addr %s149, 4
      %s151 = scalar_lea.vmem %s1, %s150
      %p152 = pneg %p72
      %p153 = pneg %p69
      %p154 = pneg %p98
      %p155 = pneg %p95
      %p156 = scmp.lt.s32.totalorder %s17, 1
      %s157 = scalar_select %p156, %s17, 1
      %s158 = smul.addr %s157, 8
      %s159 = smul.addr %s158, 8
      %s160 = scalar_lea.vmem %s2, %s159
      %p161 = scmp.lt.s32.totalorder %s17, 1
      %s162 = scalar_select %p161, %s17, 1
      %s163 = smul.addr %s162, 8
      %s164 = smul.addr %s163, 8
      %s165 = scalar_lea.vmem %s0, %s164
      %p166 = scmp.lt.s32.totalorder %s18, 1
      %s167 = scalar_select %p166, %s18, 1
      %s168 = smul.addr %s167, 36
      %s169 = smul.addr %s168, 4
      %s170 = scalar_lea.vmem %s1, %s169
      %p171 = scmp.lt.s32.totalorder %s17, 1
      %s172 = scalar_select %p171, %s17, 1
      %s173 = smul.addr %s172, 8
      %s174 = smul.addr %s173, 8
      %s175 = scalar_lea.vmem %s2, %s174
      %p177 = scmp.eq.s32.totalorder %s18, 0
      // Predicated region
      $region29: #{_lambda_.5} parent=27 // pred_check
        %p178 = pneg %p177
      $region30: #{_lambda_.5} parent=27 // pred_check_branch
        %180 = sbr.rel (%p178) target = $region32
      $region31: #{_lambda_.5} parent=27 // pred_region
        %vm181 = vcmask 130048
        %182 = vst.msk [vmem:[#allocation2] sm:$0xff] %vm181, 0.0
        %vm183 = vcmask 123904
        %184 = vst.msk [vmem:[#allocation2 + $0x8] sm:$0x3] %vm183, 0.0
        %185 = vst.msk [vmem:[#allocation2 + $0x10] sm:$0xff] %vm181, 0.0
        %186 = vst.msk [vmem:[#allocation2 + $0x18] sm:$0x3] %vm183, 0.0
        %187 = vst.msk [vmem:[#allocation2 + $0x20] sm:$0xff] %vm181, 0.0
        %188 = vst.msk [vmem:[#allocation2 + $0x28] sm:$0x3] %vm183, 0.0
        %189 = vst.msk [vmem:[#allocation2 + $0x30] sm:$0xff] %vm181, 0.0
        %190 = vst.msk [vmem:[#allocation2 + $0x38] sm:$0x3] %vm183, 0.0
        %191 = vst.msk [vmem:[#allocation2 + $0x40] sm:$0xff] %vm181, 0.0
        %192 = vst.msk [vmem:[#allocation2 + $0x48] sm:$0x3] %vm183, 0.0
        %193 = vst.msk [vmem:[#allocation2 + $0x50] sm:$0xff] %vm181, 0.0
        %194 = vst.msk [vmem:[#allocation2 + $0x58] sm:$0x3] %vm183, 0.0
        %195 = vst.msk [vmem:[#allocation2 + $0x60] sm:$0xff] %vm181, 0.0
        %196 = vst.msk [vmem:[#allocation2 + $0x68] sm:$0x3] %vm183, 0.0
        %197 = vst.msk [vmem:[#allocation2 + $0x70] sm:$0xff] %vm181, 0.0
        %198 = vst.msk [vmem:[#allocation2 + $0x78] sm:$0x3] %vm183, 0.0
        %199 = vst.msk [vmem:[#allocation2 + $0x80] sm:$0xff] %vm181, 0.0
        %200 = vst.msk [vmem:[#allocation2 + $0x88] sm:$0x3] %vm183, 0.0
        %201 = vst.msk [vmem:[#allocation2 + $0x90] sm:$0xff] %vm181, 0.0
        %202 = vst.msk [vmem:[#allocation2 + $0x98] sm:$0x3] %vm183, 0.0
        %203 = vst.msk [vmem:[#allocation3] sm:$0xff] %vm181, 0.0
        %204 = vst.msk [vmem:[#allocation3 + $0x8] sm:$0x3] %vm183, 0.0
        %205 = vst.msk [vmem:[#allocation3 + $0x10] sm:$0xff] %vm181, 0.0
        %206 = vst.msk [vmem:[#allocation3 + $0x18] sm:$0x3] %vm183, 0.0
        %207 = vst.msk [vmem:[#allocation3 + $0x20] sm:$0xff] %vm181, 0.0
        %208 = vst.msk [vmem:[#allocation3 + $0x28] sm:$0x3] %vm183, 0.0
        %209 = vst.msk [vmem:[#allocation3 + $0x30] sm:$0xff] %vm181, 0.0
        %210 = vst.msk [vmem:[#allocation3 + $0x38] sm:$0x3] %vm183, 0.0
        %211 = vst.msk [vmem:[#allocation3 + $0x40] sm:$0xff] %vm181, 0.0
        %212 = vst.msk [vmem:[#allocation3 + $0x48] sm:$0x3] %vm183, 0.0
        %213 = vst.msk [vmem:[#allocation3 + $0x50] sm:$0xff] %vm181, 0.0
        %214 = vst.msk [vmem:[#allocation3 + $0x58] sm:$0x3] %vm183, 0.0
        %215 = vst.msk [vmem:[#allocation3 + $0x60] sm:$0xff] %vm181, 0.0
        %216 = vst.msk [vmem:[#allocation3 + $0x68] sm:$0x3] %vm183, 0.0
        %217 = vst.msk [vmem:[#allocation3 + $0x70] sm:$0xff] %vm181, 0.0
        %218 = vst.msk [vmem:[#allocation3 + $0x78] sm:$0x3] %vm183, 0.0
        %219 = vst.msk [vmem:[#allocation3 + $0x80] sm:$0xff] %vm181, 0.0
        %220 = vst.msk [vmem:[#allocation3 + $0x88] sm:$0x3] %vm183, 0.0
        %221 = vst.msk [vmem:[#allocation3 + $0x90] sm:$0xff] %vm181, 0.0
        %222 = vst.msk [vmem:[#allocation3 + $0x98] sm:$0x3] %vm183, 0.0
        %v223 = vld [vmem:[%s165] sm:$0xff]
        %v224 = vld [vmem:[%s165 + $0x8] sm:$0xff]
        %v225 = vld [vmem:[%s165 + $0x10] sm:$0xff]
        %v226 = vld [vmem:[%s165 + $0x18] sm:$0xff]
        %v227 = vld [vmem:[%s165 + $0x20] sm:$0xff]
        %v228 = vld [vmem:[%s165 + $0x28] sm:$0xff]
        %v229 = vld [vmem:[%s165 + $0x30] sm:$0xff]
        %v230 = vld [vmem:[%s165 + $0x38] sm:$0xff]
        %s231 = scalar_lea.vmem [#allocation2], 16
        %232 = vst.msk [vmem:[%s231 + $0x1] sm:$0xff] %vm181, %v223
        %233 = vst.msk [vmem:[%s231 + $0x11] sm:$0xff] %vm181, %v224
        %234 = vst.msk [vmem:[%s231 + $0x21] sm:$0xff] %vm181, %v225
        %235 = vst.msk [vmem:[%s231 + $0x31] sm:$0xff] %vm181, %v226
        %236 = vst.msk [vmem:[%s231 + $0x41] sm:$0xff] %vm181, %v227
        %237 = vst.msk [vmem:[%s231 + $0x51] sm:$0xff] %vm181, %v228
        %238 = vst.msk [vmem:[%s231 + $0x61] sm:$0xff] %vm181, %v229
        %239 = vst.msk [vmem:[%s231 + $0x71] sm:$0xff] %vm181, %v230
      $region32: #{_lambda_.5} parent=27 // pred_fallthru
        _
      %v240 = vld [vmem:[%s170] sm:$0xf]
      %v241 = vld [vmem:[%s170 + $0x4] sm:$0xf]
      %v242 = vld [vmem:[%s170 + $0x8] sm:$0xf]
      %v243 = vld [vmem:[%s170 + $0xc] sm:$0xf]
      %v244 = vld [vmem:[%s170 + $0x10] sm:$0xf]
      %v245 = vld [vmem:[%s170 + $0x14] sm:$0xf]
      %v246 = vld [vmem:[%s170 + $0x18] sm:$0xf]
      %v247 = vld [vmem:[%s170 + $0x1c] sm:$0xf]
      %v248 = vld [vmem:[%s170 + $0x20] sm:$0xf]
      %v249 = vld [vmem:[%s170 + $0x24] sm:$0xf]
      %v250 = vld [vmem:[%s170 + $0x28] sm:$0xf]
      %v251 = vld [vmem:[%s170 + $0x2c] sm:$0xf]
      %v252 = vld [vmem:[%s170 + $0x30] sm:$0xf]
      %v253 = vld [vmem:[%s170 + $0x34] sm:$0xf]
      %v254 = vld [vmem:[%s170 + $0x38] sm:$0xf]
      %v255 = vld [vmem:[%s170 + $0x3c] sm:$0xf]
      %v256 = vld [vmem:[%s170 + $0x40] sm:$0xf]
      %v257 = vld [vmem:[%s170 + $0x44] sm:$0xf]
      %s258 = scalar_lea.vmem %s170, 72
      %v259 = vld [vmem:[%s258] sm:$0xf]
      %v260 = vld [vmem:[%s258 + $0x4] sm:$0xf]
      %v261 = vld [vmem:[%s258 + $0x8] sm:$0xf]
      %v262 = vld [vmem:[%s258 + $0xc] sm:$0xf]
      %v263 = vld [vmem:[%s258 + $0x10] sm:$0xf]
      %v264 = vld [vmem:[%s258 + $0x14] sm:$0xf]
      %v265 = vld [vmem:[%s258 + $0x18] sm:$0xf]
      %v266 = vld [vmem:[%s258 + $0x1c] sm:$0xf]
      %v267 = vld [vmem:[%s258 + $0x20] sm:$0xf]
      %v268 = vld [vmem:[%s258 + $0x24] sm:$0xf]
      %v269 = vld [vmem:[%s258 + $0x28] sm:$0xf]
      %v270 = vld [vmem:[%s258 + $0x2c] sm:$0xf]
      %v271 = vld [vmem:[%s258 + $0x30] sm:$0xf]
      %v272 = vld [vmem:[%s258 + $0x34] sm:$0xf]
      %v273 = vld [vmem:[%s258 + $0x38] sm:$0xf]
      %v274 = vld [vmem:[%s258 + $0x3c] sm:$0xf]
      %v275 = vld [vmem:[%s258 + $0x40] sm:$0xf]
      %v276 = vld [vmem:[%s258 + $0x44] sm:$0xf]
      %s277 = smul.u32 0, 16
      %s278 = scalar_lea.vmem [#allocation2], %s277
      %v279 = vld [vmem:[%s278] sm:$0xff]
      %v280 = vld [vmem:[%s278 + $0x8] sm:$0x3]
      %v281 = vld [vmem:[%s278 + $0x10] sm:$0xff]
      %v282 = vld [vmem:[%s278 + $0x18] sm:$0x3]
      %v283 = vld [vmem:[%s278 + $0x20] sm:$0xff]
      %v284 = vld [vmem:[%s278 + $0x28] sm:$0x3]
      %v285 = vld [vmem:[%s278 + $0x30] sm:$0xff]
      %v286 = vld [vmem:[%s278 + $0x38] sm:$0x3]
      %v287 = vld [vmem:[%s278 + $0x40] sm:$0xff]
      %v288 = vld [vmem:[%s278 + $0x48] sm:$0x3]
      %v289 = vld [vmem:[%s278 + $0x50] sm:$0xff]
      %v290 = vld [vmem:[%s278 + $0x58] sm:$0x3]
      %v291 = vld [vmem:[%s278 + $0x60] sm:$0xff]
      %v292 = vld [vmem:[%s278 + $0x68] sm:$0x3]
      %v293 = vld [vmem:[%s278 + $0x70] sm:$0xff]
      %v294 = vld [vmem:[%s278 + $0x78] sm:$0x3]
      %s295 = sadd.s32 0, 1
      %s296 = smul.u32 %s295, 16
      %s297 = scalar_lea.vmem [#allocation2], %s296
      %v298 = vld [vmem:[%s297] sm:$0xff]
      %v299 = vld [vmem:[%s297 + $0x8] sm:$0x3]
      %v300 = vld [vmem:[%s297 + $0x10] sm:$0xff]
      %v301 = vld [vmem:[%s297 + $0x18] sm:$0x3]
      %v302 = vld [vmem:[%s297 + $0x20] sm:$0xff]
      %v303 = vld [vmem:[%s297 + $0x28] sm:$0x3]
      %v304 = vld [vmem:[%s297 + $0x30] sm:$0xff]
      %v305 = vld [vmem:[%s297 + $0x38] sm:$0x3]
      %v306 = vld [vmem:[%s297 + $0x40] sm:$0xff]
      %v307 = vld [vmem:[%s297 + $0x48] sm:$0x3]
      %v308 = vld [vmem:[%s297 + $0x50] sm:$0xff]
      %v309 = vld [vmem:[%s297 + $0x58] sm:$0x3]
      %v310 = vld [vmem:[%s297 + $0x60] sm:$0xff]
      %v311 = vld [vmem:[%s297 + $0x68] sm:$0x3]
      %v312 = vld [vmem:[%s297 + $0x70] sm:$0xff]
      %v313 = vld [vmem:[%s297 + $0x78] sm:$0x3]
      %s314 = sadd.s32 0, 2
      %s315 = smul.u32 %s314, 16
      %s316 = scalar_lea.vmem [#allocation2], %s315
      %v317 = vld [vmem:[%s316] sm:$0xff]
      %v318 = vld [vmem:[%s316 + $0x8] sm:$0x3]
      %v319 = vld [vmem:[%s316 + $0x10] sm:$0xff]
      %v320 = vld [vmem:[%s316 + $0x18] sm:$0x3]
      %v321 = vld [vmem:[%s316 + $0x20] sm:$0xff]
      %v322 = vld [vmem:[%s316 + $0x28] sm:$0x3]
      %v323 = vld [vmem:[%s316 + $0x30] sm:$0xff]
      %v324 = vld [vmem:[%s316 + $0x38] sm:$0x3]
      %v325 = vld [vmem:[%s316 + $0x40] sm:$0xff]
      %v326 = vld [vmem:[%s316 + $0x48] sm:$0x3]
      %v327 = vld [vmem:[%s316 + $0x50] sm:$0xff]
      %v328 = vld [vmem:[%s316 + $0x58] sm:$0x3]
      %v329 = vld [vmem:[%s316 + $0x60] sm:$0xff]
      %v330 = vld [vmem:[%s316 + $0x68] sm:$0x3]
      %v331 = vld [vmem:[%s316 + $0x70] sm:$0xff]
      %v332 = vld [vmem:[%s316 + $0x78] sm:$0x3]
      %vm349 = vcmask 1046528
      %v350 = vrot.slane %v279, 1
      %v351 = vrot.slane %v280, 1
      %v352 = vsel %vm349, %v350, %v351
      %v353 = vrot.slane %v281, 1
      %v354 = vrot.slane %v282, 1
      %v355 = vsel %vm349, %v353, %v354
      %v356 = vrot.slane %v283, 1
      %v357 = vrot.slane %v284, 1
      %v358 = vsel %vm349, %v356, %v357
      %v359 = vrot.slane %v285, 1
      %v360 = vrot.slane %v286, 1
      %v361 = vsel %vm349, %v359, %v360
      %v362 = vrot.slane %v287, 1
      %v363 = vrot.slane %v288, 1
      %v364 = vsel %vm349, %v362, %v363
      %v365 = vrot.slane %v289, 1
      %v366 = vrot.slane %v290, 1
      %v367 = vsel %vm349, %v365, %v366
      %v368 = vrot.slane %v291, 1
      %v369 = vrot.slane %v292, 1
      %v370 = vsel %vm349, %v368, %v369
      %v371 = vrot.slane %v293, 1
      %v372 = vrot.slane %v294, 1
      %v373 = vsel %vm349, %v371, %v372
      %374 = vrot.lane.b32.xlu0 %v352, 16
      %v375 = vpop.permute.xlu0 %374
      %376 = vrot.lane.b32.xlu0 %v355, 16
      %v377 = vpop.permute.xlu0 %376
      %378 = vrot.lane.b32.xlu0 %v358, 16
      %v379 = vpop.permute.xlu0 %378
      %380 = vrot.lane.b32.xlu0 %v361, 16
      %v381 = vpop.permute.xlu0 %380
      %382 = vrot.lane.b32.xlu0 %v364, 16
      %v383 = vpop.permute.xlu0 %382
      %384 = vrot.lane.b32.xlu0 %v367, 16
      %v385 = vpop.permute.xlu0 %384
      %386 = vrot.lane.b32.xlu0 %v370, 16
      %v387 = vpop.permute.xlu0 %386
      %388 = vrot.lane.b32.xlu0 %v373, 16
      %v389 = vpop.permute.xlu0 %388
      %vm398 = vcmask 1045504
      %v399 = vrot.slane %v279, 2
      %v400 = vrot.slane %v280, 2
      %v401 = vsel %vm398, %v399, %v400
      %v402 = vrot.slane %v281, 2
      %v403 = vrot.slane %v282, 2
      %v404 = vsel %vm398, %v402, %v403
      %v405 = vrot.slane %v283, 2
      %v406 = vrot.slane %v284, 2
      %v407 = vsel %vm398, %v405, %v406
      %v408 = vrot.slane %v285, 2
      %v409 = vrot.slane %v286, 2
      %v410 = vsel %vm398, %v408, %v409
      %v411 = vrot.slane %v287, 2
      %v412 = vrot.slane %v288, 2
      %v413 = vsel %vm398, %v411, %v412
      %v414 = vrot.slane %v289, 2
      %v415 = vrot.slane %v290, 2
      %v416 = vsel %vm398, %v414, %v415
      %v417 = vrot.slane %v291, 2
      %v418 = vrot.slane %v292, 2
      %v419 = vsel %vm398, %v417, %v418
      %v420 = vrot.slane %v293, 2
      %v421 = vrot.slane %v294, 2
      %v422 = vsel %vm398, %v420, %v421
      %423 = vrot.lane.b32.xlu0 %v401, 32
      %v424 = vpop.permute.xlu0 %423
      %425 = vrot.lane.b32.xlu0 %v404, 32
      %v426 = vpop.permute.xlu0 %425
      %427 = vrot.lane.b32.xlu0 %v407, 32
      %v428 = vpop.permute.xlu0 %427
      %429 = vrot.lane.b32.xlu0 %v410, 32
      %v430 = vpop.permute.xlu0 %429
      %431 = vrot.lane.b32.xlu0 %v413, 32
      %v432 = vpop.permute.xlu0 %431
      %433 = vrot.lane.b32.xlu0 %v416, 32
      %v434 = vpop.permute.xlu0 %433
      %435 = vrot.lane.b32.xlu0 %v419, 32
      %v436 = vpop.permute.xlu0 %435
      %437 = vrot.lane.b32.xlu0 %v422, 32
      %v438 = vpop.permute.xlu0 %437
      %455 = vrot.lane.b32.xlu0 %v298, 48
      %v456 = vpop.permute.xlu0 %455
      %457 = vrot.lane.b32.xlu0 %v300, 48
      %v458 = vpop.permute.xlu0 %457
      %459 = vrot.lane.b32.xlu0 %v302, 48
      %v460 = vpop.permute.xlu0 %459
      %461 = vrot.lane.b32.xlu0 %v304, 48
      %v462 = vpop.permute.xlu0 %461
      %463 = vrot.lane.b32.xlu0 %v306, 48
      %v464 = vpop.permute.xlu0 %463
      %465 = vrot.lane.b32.xlu0 %v308, 48
      %v466 = vpop.permute.xlu0 %465
      %467 = vrot.lane.b32.xlu0 %v310, 48
      %v468 = vpop.permute.xlu0 %467
      %469 = vrot.lane.b32.xlu0 %v312, 48
      %v470 = vpop.permute.xlu0 %469
      %v487 = vrot.slane %v298, 1
      %v488 = vrot.slane %v299, 1
      %v489 = vsel %vm349, %v487, %v488
      %v490 = vrot.slane %v300, 1
      %v491 = vrot.slane %v301, 1
      %v492 = vsel %vm349, %v490, %v491
      %v493 = vrot.slane %v302, 1
      %v494 = vrot.slane %v303, 1
      %v495 = vsel %vm349, %v493, %v494
      %v496 = vrot.slane %v304, 1
      %v497 = vrot.slane %v305, 1
      %v498 = vsel %vm349, %v496, %v497
      %v499 = vrot.slane %v306, 1
      %v500 = vrot.slane %v307, 1
      %v501 = vsel %vm349, %v499, %v500
      %v502 = vrot.slane %v308, 1
      %v503 = vrot.slane %v309, 1
      %v504 = vsel %vm349, %v502, %v503
      %v505 = vrot.slane %v310, 1
      %v506 = vrot.slane %v311, 1
      %v507 = vsel %vm349, %v505, %v506
      %v508 = vrot.slane %v312, 1
      %v509 = vrot.slane %v313, 1
      %v510 = vsel %vm349, %v508, %v509
      %511 = vrot.lane.b32.xlu0 %v489, 64
      %v512 = vpop.permute.xlu0 %511
      %513 = vrot.lane.b32.xlu0 %v492, 64
      %v514 = vpop.permute.xlu0 %513
      %515 = vrot.lane.b32.xlu0 %v495, 64
      %v516 = vpop.permute.xlu0 %515
      %517 = vrot.lane.b32.xlu0 %v498, 64
      %v518 = vpop.permute.xlu0 %517
      %519 = vrot.lane.b32.xlu0 %v501, 64
      %v520 = vpop.permute.xlu0 %519
      %521 = vrot.lane.b32.xlu0 %v504, 64
      %v522 = vpop.permute.xlu0 %521
      %523 = vrot.lane.b32.xlu0 %v507, 64
      %v524 = vpop.permute.xlu0 %523
      %525 = vrot.lane.b32.xlu0 %v510, 64
      %v526 = vpop.permute.xlu0 %525
      %v535 = vrot.slane %v298, 2
      %v536 = vrot.slane %v299, 2
      %v537 = vsel %vm398, %v535, %v536
      %v538 = vrot.slane %v300, 2
      %v539 = vrot.slane %v301, 2
      %v540 = vsel %vm398, %v538, %v539
      %v541 = vrot.slane %v302, 2
      %v542 = vrot.slane %v303, 2
      %v543 = vsel %vm398, %v541, %v542
      %v544 = vrot.slane %v304, 2
      %v545 = vrot.slane %v305, 2
      %v546 = vsel %vm398, %v544, %v545
      %v547 = vrot.slane %v306, 2
      %v548 = vrot.slane %v307, 2
      %v549 = vsel %vm398, %v547, %v548
      %v550 = vrot.slane %v308, 2
      %v551 = vrot.slane %v309, 2
      %v552 = vsel %vm398, %v550, %v551
      %v553 = vrot.slane %v310, 2
      %v554 = vrot.slane %v311, 2
      %v555 = vsel %vm398, %v553, %v554
      %v556 = vrot.slane %v312, 2
      %v557 = vrot.slane %v313, 2
      %v558 = vsel %vm398, %v556, %v557
      %559 = vrot.lane.b32.xlu0 %v537, 80
      %v560 = vpop.permute.xlu0 %559
      %561 = vrot.lane.b32.xlu0 %v540, 80
      %v562 = vpop.permute.xlu0 %561
      %563 = vrot.lane.b32.xlu0 %v543, 80
      %v564 = vpop.permute.xlu0 %563
      %565 = vrot.lane.b32.xlu0 %v546, 80
      %v566 = vpop.permute.xlu0 %565
      %567 = vrot.lane.b32.xlu0 %v549, 80
      %v568 = vpop.permute.xlu0 %567
      %569 = vrot.lane.b32.xlu0 %v552, 80
      %v570 = vpop.permute.xlu0 %569
      %571 = vrot.lane.b32.xlu0 %v555, 80
      %v572 = vpop.permute.xlu0 %571
      %573 = vrot.lane.b32.xlu0 %v558, 80
      %v574 = vpop.permute.xlu0 %573
      %591 = vrot.lane.b32.xlu0 %v317, 96
      %v592 = vpop.permute.xlu0 %591
      %593 = vrot.lane.b32.xlu0 %v319, 96
      %v594 = vpop.permute.xlu0 %593
      %595 = vrot.lane.b32.xlu0 %v321, 96
      %v596 = vpop.permute.xlu0 %595
      %597 = vrot.lane.b32.xlu0 %v323, 96
      %v598 = vpop.permute.xlu0 %597
      %599 = vrot.lane.b32.xlu0 %v325, 96
      %v600 = vpop.permute.xlu0 %599
      %601 = vrot.lane.b32.xlu0 %v327, 96
      %v602 = vpop.permute.xlu0 %601
      %603 = vrot.lane.b32.xlu0 %v329, 96
      %v604 = vpop.permute.xlu0 %603
      %605 = vrot.lane.b32.xlu0 %v331, 96
      %v606 = vpop.permute.xlu0 %605
      %v623 = vrot.slane %v317, 1
      %v624 = vrot.slane %v318, 1
      %v625 = vsel %vm349, %v623, %v624
      %v626 = vrot.slane %v319, 1
      %v627 = vrot.slane %v320, 1
      %v628 = vsel %vm349, %v626, %v627
      %v629 = vrot.slane %v321, 1
      %v630 = vrot.slane %v322, 1
      %v631 = vsel %vm349, %v629, %v630
      %v632 = vrot.slane %v323, 1
      %v633 = vrot.slane %v324, 1
      %v634 = vsel %vm349, %v632, %v633
      %v635 = vrot.slane %v325, 1
      %v636 = vrot.slane %v326, 1
      %v637 = vsel %vm349, %v635, %v636
      %v638 = vrot.slane %v327, 1
      %v639 = vrot.slane %v328, 1
      %v640 = vsel %vm349, %v638, %v639
      %v641 = vrot.slane %v329, 1
      %v642 = vrot.slane %v330, 1
      %v643 = vsel %vm349, %v641, %v642
      %v644 = vrot.slane %v331, 1
      %v645 = vrot.slane %v332, 1
      %v646 = vsel %vm349, %v644, %v645
      %647 = vrot.lane.b32.xlu0 %v625, 112
      %v648 = vpop.permute.xlu0 %647
      %649 = vrot.lane.b32.xlu0 %v628, 112
      %v650 = vpop.permute.xlu0 %649
      %651 = vrot.lane.b32.xlu0 %v631, 112
      %v652 = vpop.permute.xlu0 %651
      %653 = vrot.lane.b32.xlu0 %v634, 112
      %v654 = vpop.permute.xlu0 %653
      %655 = vrot.lane.b32.xlu0 %v637, 112
      %v656 = vpop.permute.xlu0 %655
      %657 = vrot.lane.b32.xlu0 %v640, 112
      %v658 = vpop.permute.xlu0 %657
      %659 = vrot.lane.b32.xlu0 %v643, 112
      %v660 = vpop.permute.xlu0 %659
      %661 = vrot.lane.b32.xlu0 %v646, 112
      %v662 = vpop.permute.xlu0 %661
      %v671 = vrot.slane %v317, 2
      %v672 = vrot.slane %v318, 2
      %v673 = vsel %vm398, %v671, %v672
      %v674 = vrot.slane %v319, 2
      %v675 = vrot.slane %v320, 2
      %v676 = vsel %vm398, %v674, %v675
      %v677 = vrot.slane %v321, 2
      %v678 = vrot.slane %v322, 2
      %v679 = vsel %vm398, %v677, %v678
      %v680 = vrot.slane %v323, 2
      %v681 = vrot.slane %v324, 2
      %v682 = vsel %vm398, %v680, %v681
      %v683 = vrot.slane %v325, 2
      %v684 = vrot.slane %v326, 2
      %v685 = vsel %vm398, %v683, %v684
      %v686 = vrot.slane %v327, 2
      %v687 = vrot.slane %v328, 2
      %v688 = vsel %vm398, %v686, %v687
      %v689 = vrot.slane %v329, 2
      %v690 = vrot.slane %v330, 2
      %v691 = vsel %vm398, %v689, %v690
      %v692 = vrot.slane %v331, 2
      %v693 = vrot.slane %v332, 2
      %v694 = vsel %vm398, %v692, %v693
      %vm703 = vcmask 130048
      %v704 = vsel %vm703, %v279, %v375
      %v705 = vsel %vm703, %v281, %v377
      %v706 = vsel %vm703, %v283, %v379
      %v707 = vsel %vm703, %v285, %v381
      %v708 = vsel %vm703, %v287, %v383
      %v709 = vsel %vm703, %v289, %v385
      %v710 = vsel %vm703, %v291, %v387
      %v711 = vsel %vm703, %v293, %v389
      %vm712 = vcmask 261120
      %v713 = vsel %vm712, %v704, %v424
      %v714 = vsel %vm712, %v705, %v426
      %v715 = vsel %vm712, %v706, %v428
      %v716 = vsel %vm712, %v707, %v430
      %v717 = vsel %vm712, %v708, %v432
      %v718 = vsel %vm712, %v709, %v434
      %v719 = vsel %vm712, %v710, %v436
      %v720 = vsel %vm712, %v711, %v438
      %vm721 = vcmask 392192
      %v722 = vsel %vm721, %v713, %v456
      %v723 = vsel %vm721, %v714, %v458
      %v724 = vsel %vm721, %v715, %v460
      %v725 = vsel %vm721, %v716, %v462
      %v726 = vsel %vm721, %v717, %v464
      %v727 = vsel %vm721, %v718, %v466
      %v728 = vsel %vm721, %v719, %v468
      %v729 = vsel %vm721, %v720, %v470
      %vm730 = vcmask 523264
      %v731 = vsel %vm730, %v722, %v512
      %v732 = vsel %vm730, %v723, %v514
      %v733 = vsel %vm730, %v724, %v516
      %v734 = vsel %vm730, %v725, %v518
      %v735 = vsel %vm730, %v726, %v520
      %v736 = vsel %vm730, %v727, %v522
      %v737 = vsel %vm730, %v728, %v524
      %v738 = vsel %vm730, %v729, %v526
      %vm739 = vcmask 654336
      %v740 = vsel %vm739, %v731, %v560
      %v741 = vsel %vm739, %v732, %v562
      %v742 = vsel %vm739, %v733, %v564
      %v743 = vsel %vm739, %v734, %v566
      %v744 = vsel %vm739, %v735, %v568
      %v745 = vsel %vm739, %v736, %v570
      %v746 = vsel %vm739, %v737, %v572
      %v747 = vsel %vm739, %v738, %v574
      %vm748 = vcmask 785408
      %v749 = vsel %vm748, %v740, %v592
      %v750 = vsel %vm748, %v741, %v594
      %v751 = vsel %vm748, %v742, %v596
      %v752 = vsel %vm748, %v743, %v598
      %v753 = vsel %vm748, %v744, %v600
      %v754 = vsel %vm748, %v745, %v602
      %v755 = vsel %vm748, %v746, %v604
      %v756 = vsel %vm748, %v747, %v606
      %vm757 = vcmask 916480
      %v758 = vsel %vm757, %v749, %v648
      %v759 = vsel %vm757, %v750, %v650
      %v760 = vsel %vm757, %v751, %v652
      %v761 = vsel %vm757, %v752, %v654
      %v762 = vsel %vm757, %v753, %v656
      %v763 = vsel %vm757, %v754, %v658
      %v764 = vsel %vm757, %v755, %v660
      %v765 = vsel %vm757, %v756, %v662
      %v766 = vpack.c.bf16 %v758, %v758
      %v767 = vpack.c.bf16 %v673, %v673
      %v768 = vpack.c.bf16 %v759, %v759
      %v769 = vpack.c.bf16 %v676, %v676
      %v770 = vpack.c.bf16 %v760, %v760
      %v771 = vpack.c.bf16 %v679, %v679
      %v772 = vpack.c.bf16 %v761, %v761
      %v773 = vpack.c.bf16 %v682, %v682
      %v774 = vpack.c.bf16 %v762, %v762
      %v775 = vpack.c.bf16 %v685, %v685
      %v776 = vpack.c.bf16 %v763, %v763
      %v777 = vpack.c.bf16 %v688, %v688
      %v778 = vpack.c.bf16 %v764, %v764
      %v779 = vpack.c.bf16 %v691, %v691
      %v780 = vpack.c.bf16 %v765, %v765
      %v781 = vpack.c.bf16 %v694, %v694
      %v798 = vunpack.c.l.b16 %v766
      %v799 = vunpack.c.l.b16 %v767
      %v800 = vunpack.c.l.b16 %v768
      %v801 = vunpack.c.l.b16 %v769
      %v802 = vunpack.c.l.b16 %v770
      %v803 = vunpack.c.l.b16 %v771
      %v804 = vunpack.c.l.b16 %v772
      %v805 = vunpack.c.l.b16 %v773
      %v806 = vunpack.c.l.b16 %v774
      %v807 = vunpack.c.l.b16 %v775
      %v808 = vunpack.c.l.b16 %v776
      %v809 = vunpack.c.l.b16 %v777
      %v810 = vunpack.c.l.b16 %v778
      %v811 = vunpack.c.l.b16 %v779
      %v812 = vunpack.c.l.b16 %v780
      %v813 = vunpack.c.l.b16 %v781
      %v814 = vpack.c.b16 %v800, %v798
      %v815 = vpack.c.b16 %v801, %v799
      %v816 = vpack.c.b16 %v804, %v802
      %v817 = vpack.c.b16 %v805, %v803
      %v818 = vpack.c.b16 %v808, %v806
      %v819 = vpack.c.b16 %v809, %v807
      %v820 = vpack.c.b16 %v812, %v810
      %v821 = vpack.c.b16 %v813, %v811
      %v844 = vunpack.c.l.b16 %v240
      %v845 = vunpack.c.l.b16 %v241
      %v846 = vunpack.c.l.b16 %v242
      %v847 = vunpack.c.l.b16 %v243
      %v848 = vunpack.c.l.b16 %v244
      %v849 = vunpack.c.l.b16 %v245
      %v850 = vunpack.c.l.b16 %v246
      %v851 = vunpack.c.l.b16 %v247
      %v852 = vunpack.c.l.b16 %v248
      %v853 = vunpack.c.l.b16 %v249
      %v854 = vunpack.c.l.b16 %v250
      %v855 = vunpack.c.l.b16 %v251
      %v856 = vunpack.c.l.b16 %v252
      %v857 = vunpack.c.l.b16 %v253
      %v858 = vunpack.c.l.b16 %v254
      %v859 = vunpack.c.l.b16 %v255
      %v860 = vunpack.c.l.b16 %v256
      %v861 = vunpack.c.l.b16 %v257
      %v862 = vpack.c.b16 %v845, %v844
      %v863 = vpack.c.b16 %v847, %v846
      %v864 = vpack.c.b16 %v849, %v848
      %v865 = vpack.c.b16 %v851, %v850
      %v866 = vpack.c.b16 %v853, %v852
      %v867 = vpack.c.b16 %v855, %v854
      %v868 = vpack.c.b16 %v857, %v856
      %v869 = vpack.c.b16 %v859, %v858
      %v870 = vpack.c.b16 %v861, %v860
      %v881 = vsel %vm703, %v815, 0
      %v884 = vsel %vm703, %v817, 0
      %v887 = vsel %vm703, %v819, 0
      %v890 = vsel %vm703, %v821, 0
      %892 = vmatprep.subr.bf16.mxu0 0
      %893 = vmatpush1.bf16.msra.mxu0 %v869
      %894 = vmatprep.subr.bf16.mxu0 0
      %895 = vmatpush1.bf16.msra.mxu0 %v868
      %896 = vmatprep.subr.bf16.mxu0 0
      %897 = vmatpush1.bf16.msra.mxu0 %v867
      %898 = vmatprep.subr.bf16.mxu0 0
      %899 = vmatpush1.bf16.msra.mxu0 %v866
      %900 = vmatprep.subr.bf16.mxu0 0
      %901 = vmatpush1.bf16.msra.mxu0 %v865
      %902 = vmatprep.subr.bf16.mxu0 0
      %903 = vmatpush1.bf16.msra.mxu0 %v864
      %904 = vmatprep.subr.bf16.mxu0 0
      %905 = vmatpush1.bf16.msra.mxu0 %v863
      %906 = vmatprep.subr.bf16.mxu0 0
      %907 = vmatpush1.bf16.msra.mxu0 %v862
      %908 = vmatprep.subr.bf16.mxu0 0
      %909 = vmatpush2.bf16.msra.mxu0 0
      %910 = vmatprep.subr.bf16.mxu0 0
      %911 = vmatpush2.bf16.msra.mxu0 0
      %912 = vmatprep.subr.bf16.mxu0 0
      %913 = vmatpush2.bf16.msra.mxu0 0
      %914 = vmatprep.subr.bf16.mxu0 0
      %915 = vmatpush2.bf16.msra.mxu0 0
      %916 = vmatprep.subr.bf16.mxu0 0
      %917 = vmatpush2.bf16.msra.mxu0 0
      %918 = vmatprep.subr.bf16.mxu0 0
      %919 = vmatpush2.bf16.msra.mxu0 0
      %920 = vmatprep.subr.bf16.mxu0 0
      %921 = vmatpush2.bf16.msra.mxu0 0
      %922 = vmatprep.subr.bf16.mxu0 0
      %923 = vmatpush2.bf16.msra.mxu0 %v870
      %924 = vmatprep.mubr.bf16.mxu0 %v881
      %925 = vmatmul.mubr.bf16.gmra.mxu0 %v814
      %v926 = vpop.f32.mrf.mxu0
      %v927 = vadd.f32 0.0, %v926
      %v928 = vpop.f32.mrf.mxu0
      %v929 = vpop.f32.mrf.mxu0
      %v930 = vadd.f32 0.0, %v929
      %v931 = vpop.f32.mrf.mxu0
      %932 = vmatprep.mubr.bf16.mxu0 %v884
      %933 = vmatmul.mubr.bf16.gmra.mxu0 %v816
      %v934 = vpop.f32.mrf.mxu0
      %v935 = vadd.f32 0.0, %v934
      %v936 = vpop.f32.mrf.mxu0
      %v937 = vpop.f32.mrf.mxu0
      %v938 = vadd.f32 0.0, %v937
      %v939 = vpop.f32.mrf.mxu0
      %940 = vmatprep.mubr.bf16.mxu0 %v887
      %941 = vmatmul.mubr.bf16.gmra.mxu0 %v818
      %v942 = vpop.f32.mrf.mxu0
      %v943 = vadd.f32 0.0, %v942
      %v944 = vpop.f32.mrf.mxu0
      %v945 = vpop.f32.mrf.mxu0
      %v946 = vadd.f32 0.0, %v945
      %v947 = vpop.f32.mrf.mxu0
      %948 = vmatprep.mubr.bf16.mxu0 %v890
      %949 = vmatmul.mubr.bf16.gmra.mxu0 %v820
      %v950 = vpop.f32.mrf.mxu0
      %v951 = vadd.f32 0.0, %v950
      %v952 = vpop.f32.mrf.mxu0
      %v953 = vpop.f32.mrf.mxu0
      %v954 = vadd.f32 0.0, %v953
      %v955 = vpop.f32.mrf.mxu0
      %956 = vdwg.mxu0
      %v957 = vmax.f32 %v927, 0.0
      %v958 = vmax.f32 %v930, 0.0
      %v959 = vmax.f32 %v935, 0.0
      %v960 = vmax.f32 %v938, 0.0
      %v961 = vmax.f32 %v943, 0.0
      %v962 = vmax.f32 %v946, 0.0
      %v963 = vmax.f32 %v951, 0.0
      %v964 = vmax.f32 %v954, 0.0
      %s965 = scalar_lea.vmem [#allocation3], %s296
      %966 = vst.msk [vmem:[%s965 + $0x1] sm:$0xff] %vm703, %v957
      %967 = vst.msk [vmem:[%s965 + $0x11] sm:$0xff] %vm703, %v958
      %968 = vst.msk [vmem:[%s965 + $0x21] sm:$0xff] %vm703, %v959
      %969 = vst.msk [vmem:[%s965 + $0x31] sm:$0xff] %vm703, %v960
      %970 = vst.msk [vmem:[%s965 + $0x41] sm:$0xff] %vm703, %v961
      %971 = vst.msk [vmem:[%s965 + $0x51] sm:$0xff] %vm703, %v962
      %972 = vst.msk [vmem:[%s965 + $0x61] sm:$0xff] %vm703, %v963
      %973 = vst.msk [vmem:[%s965 + $0x71] sm:$0xff] %vm703, %v964
      %s974 = scalar_lea.vmem [#allocation3], %s277
      %v975 = vld [vmem:[%s974] sm:$0xff]
      %v976 = vld [vmem:[%s974 + $0x8] sm:$0x3]
      %v977 = vld [vmem:[%s974 + $0x10] sm:$0xff]
      %v978 = vld [vmem:[%s974 + $0x18] sm:$0x3]
      %v979 = vld [vmem:[%s974 + $0x20] sm:$0xff]
      %v980 = vld [vmem:[%s974 + $0x28] sm:$0x3]
      %v981 = vld [vmem:[%s974 + $0x30] sm:$0xff]
      %v982 = vld [vmem:[%s974 + $0x38] sm:$0x3]
      %v983 = vld [vmem:[%s974 + $0x40] sm:$0xff]
      %v984 = vld [vmem:[%s974 + $0x48] sm:$0x3]
      %v985 = vld [vmem:[%s974 + $0x50] sm:$0xff]
      %v986 = vld [vmem:[%s974 + $0x58] sm:$0x3]
      %v987 = vld [vmem:[%s974 + $0x60] sm:$0xff]
      %v988 = vld [vmem:[%s974 + $0x68] sm:$0x3]
      %v989 = vld [vmem:[%s974 + $0x70] sm:$0xff]
      %v990 = vld [vmem:[%s974 + $0x78] sm:$0x3]
      %v991 = vld [vmem:[%s965] sm:$0xff]
      %v992 = vld [vmem:[%s965 + $0x8] sm:$0x3]
      %v993 = vld [vmem:[%s965 + $0x10] sm:$0xff]
      %v994 = vld [vmem:[%s965 + $0x18] sm:$0x3]
      %v995 = vld [vmem:[%s965 + $0x20] sm:$0xff]
      %v996 = vld [vmem:[%s965 + $0x28] sm:$0x3]
      %v997 = vld [vmem:[%s965 + $0x30] sm:$0xff]
      %v998 = vld [vmem:[%s965 + $0x38] sm:$0x3]
      %v999 = vld [vmem:[%s965 + $0x40] sm:$0xff]
      %v1000 = vld [vmem:[%s965 + $0x48] sm:$0x3]
      %v1001 = vld [vmem:[%s965 + $0x50] sm:$0xff]
      %v1002 = vld [vmem:[%s965 + $0x58] sm:$0x3]
      %v1003 = vld [vmem:[%s965 + $0x60] sm:$0xff]
      %v1004 = vld [vmem:[%s965 + $0x68] sm:$0x3]
      %v1005 = vld [vmem:[%s965 + $0x70] sm:$0xff]
      %v1006 = vld [vmem:[%s965 + $0x78] sm:$0x3]
      %s1007 = scalar_lea.vmem [#allocation3], %s315
      %v1008 = vld [vmem:[%s1007] sm:$0xff]
      %v1009 = vld [vmem:[%s1007 + $0x8] sm:$0x3]
      %v1010 = vld [vmem:[%s1007 + $0x10] sm:$0xff]
      %v1011 = vld [vmem:[%s1007 + $0x18] sm:$0x3]
      %v1012 = vld [vmem:[%s1007 + $0x20] sm:$0xff]
      %v1013 = vld [vmem:[%s1007 + $0x28] sm:$0x3]
      %v1014 = vld [vmem:[%s1007 + $0x30] sm:$0xff]
      %v1015 = vld [vmem:[%s1007 + $0x38] sm:$0x3]
      %v1016 = vld [vmem:[%s1007 + $0x40] sm:$0xff]
      %v1017 = vld [vmem:[%s1007 + $0x48] sm:$0x3]
      %v1018 = vld [vmem:[%s1007 + $0x50] sm:$0xff]
      %v1019 = vld [vmem:[%s1007 + $0x58] sm:$0x3]
      %v1020 = vld [vmem:[%s1007 + $0x60] sm:$0xff]
      %v1021 = vld [vmem:[%s1007 + $0x68] sm:$0x3]
      %v1022 = vld [vmem:[%s1007 + $0x70] sm:$0xff]
      %v1023 = vld [vmem:[%s1007 + $0x78] sm:$0x3]
      %v1040 = vrot.slane %v975, 1
      %v1041 = vrot.slane %v976, 1
      %v1042 = vsel %vm349, %v1040, %v1041
      %v1043 = vrot.slane %v977, 1
      %v1044 = vrot.slane %v978, 1
      %v1045 = vsel %vm349, %v1043, %v1044
      %v1046 = vrot.slane %v979, 1
      %v1047 = vrot.slane %v980, 1
      %v1048 = vsel %vm349, %v1046, %v1047
      %v1049 = vrot.slane %v981, 1
      %v1050 = vrot.slane %v982, 1
      %v1051 = vsel %vm349, %v1049, %v1050
      %v1052 = vrot.slane %v983, 1
      %v1053 = vrot.slane %v984, 1
      %v1054 = vsel %vm349, %v1052, %v1053
      %v1055 = vrot.slane %v985, 1
      %v1056 = vrot.slane %v986, 1
      %v1057 = vsel %vm349, %v1055, %v1056
      %v1058 = vrot.slane %v987, 1
      %v1059 = vrot.slane %v988, 1
      %v1060 = vsel %vm349, %v1058, %v1059
      %v1061 = vrot.slane %v989, 1
      %v1062 = vrot.slane %v990, 1
      %v1063 = vsel %vm349, %v1061, %v1062
      %1064 = vrot.lane.b32.xlu0 %v1042, 16
      %v1065 = vpop.permute.xlu0 %1064
      %1066 = vrot.lane.b32.xlu0 %v1045, 16
      %v1067 = vpop.permute.xlu0 %1066
      %1068 = vrot.lane.b32.xlu0 %v1048, 16
      %v1069 = vpop.permute.xlu0 %1068
      %1070 = vrot.lane.b32.xlu0 %v1051, 16
      %v1071 = vpop.permute.xlu0 %1070
      %1072 = vrot.lane.b32.xlu0 %v1054, 16
      %v1073 = vpop.permute.xlu0 %1072
      %1074 = vrot.lane.b32.xlu0 %v1057, 16
      %v1075 = vpop.permute.xlu0 %1074
      %1076 = vrot.lane.b32.xlu0 %v1060, 16
      %v1077 = vpop.permute.xlu0 %1076
      %1078 = vrot.lane.b32.xlu0 %v1063, 16
      %v1079 = vpop.permute.xlu0 %1078
      %v1088 = vrot.slane %v975, 2
      %v1089 = vrot.slane %v976, 2
      %v1090 = vsel %vm398, %v1088, %v1089
      %v1091 = vrot.slane %v977, 2
      %v1092 = vrot.slane %v978, 2
      %v1093 = vsel %vm398, %v1091, %v1092
      %v1094 = vrot.slane %v979, 2
      %v1095 = vrot.slane %v980, 2
      %v1096 = vsel %vm398, %v1094, %v1095
      %v1097 = vrot.slane %v981, 2
      %v1098 = vrot.slane %v982, 2
      %v1099 = vsel %vm398, %v1097, %v1098
      %v1100 = vrot.slane %v983, 2
      %v1101 = vrot.slane %v984, 2
      %v1102 = vsel %vm398, %v1100, %v1101
      %v1103 = vrot.slane %v985, 2
      %v1104 = vrot.slane %v986, 2
      %v1105 = vsel %vm398, %v1103, %v1104
      %v1106 = vrot.slane %v987, 2
      %v1107 = vrot.slane %v988, 2
      %v1108 = vsel %vm398, %v1106, %v1107
      %v1109 = vrot.slane %v989, 2
      %v1110 = vrot.slane %v990, 2
      %v1111 = vsel %vm398, %v1109, %v1110
      %1112 = vrot.lane.b32.xlu0 %v1090, 32
      %v1113 = vpop.permute.xlu0 %1112
      %1114 = vrot.lane.b32.xlu0 %v1093, 32
      %v1115 = vpop.permute.xlu0 %1114
      %1116 = vrot.lane.b32.xlu0 %v1096, 32
      %v1117 = vpop.permute.xlu0 %1116
      %1118 = vrot.lane.b32.xlu0 %v1099, 32
      %v1119 = vpop.permute.xlu0 %1118
      %1120 = vrot.lane.b32.xlu0 %v1102, 32
      %v1121 = vpop.permute.xlu0 %1120
      %1122 = vrot.lane.b32.xlu0 %v1105, 32
      %v1123 = vpop.permute.xlu0 %1122
      %1124 = vrot.lane.b32.xlu0 %v1108, 32
      %v1125 = vpop.permute.xlu0 %1124
      %1126 = vrot.lane.b32.xlu0 %v1111, 32
      %v1127 = vpop.permute.xlu0 %1126
      %1144 = vrot.lane.b32.xlu0 %v991, 48
      %v1145 = vpop.permute.xlu0 %1144
      %1146 = vrot.lane.b32.xlu0 %v993, 48
      %v1147 = vpop.permute.xlu0 %1146
      %1148 = vrot.lane.b32.xlu0 %v995, 48
      %v1149 = vpop.permute.xlu0 %1148
      %1150 = vrot.lane.b32.xlu0 %v997, 48
      %v1151 = vpop.permute.xlu0 %1150
      %1152 = vrot.lane.b32.xlu0 %v999, 48
      %v1153 = vpop.permute.xlu0 %1152
      %1154 = vrot.lane.b32.xlu0 %v1001, 48
      %v1155 = vpop.permute.xlu0 %1154
      %1156 = vrot.lane.b32.xlu0 %v1003, 48
      %v1157 = vpop.permute.xlu0 %1156
      %1158 = vrot.lane.b32.xlu0 %v1005, 48
      %v1159 = vpop.permute.xlu0 %1158
      %v1176 = vrot.slane %v991, 1
      %v1177 = vrot.slane %v992, 1
      %v1178 = vsel %vm349, %v1176, %v1177
      %v1179 = vrot.slane %v993, 1
      %v1180 = vrot.slane %v994, 1
      %v1181 = vsel %vm349, %v1179, %v1180
      %v1182 = vrot.slane %v995, 1
      %v1183 = vrot.slane %v996, 1
      %v1184 = vsel %vm349, %v1182, %v1183
      %v1185 = vrot.slane %v997, 1
      %v1186 = vrot.slane %v998, 1
      %v1187 = vsel %vm349, %v1185, %v1186
      %v1188 = vrot.slane %v999, 1
      %v1189 = vrot.slane %v1000, 1
      %v1190 = vsel %vm349, %v1188, %v1189
      %v1191 = vrot.slane %v1001, 1
      %v1192 = vrot.slane %v1002, 1
      %v1193 = vsel %vm349, %v1191, %v1192
      %v1194 = vrot.slane %v1003, 1
      %v1195 = vrot.slane %v1004, 1
      %v1196 = vsel %vm349, %v1194, %v1195
      %v1197 = vrot.slane %v1005, 1
      %v1198 = vrot.slane %v1006, 1
      %v1199 = vsel %vm349, %v1197, %v1198
      %1200 = vrot.lane.b32.xlu0 %v1178, 64
      %v1201 = vpop.permute.xlu0 %1200
      %1202 = vrot.lane.b32.xlu0 %v1181, 64
      %v1203 = vpop.permute.xlu0 %1202
      %1204 = vrot.lane.b32.xlu0 %v1184, 64
      %v1205 = vpop.permute.xlu0 %1204
      %1206 = vrot.lane.b32.xlu0 %v1187, 64
      %v1207 = vpop.permute.xlu0 %1206
      %1208 = vrot.lane.b32.xlu0 %v1190, 64
      %v1209 = vpop.permute.xlu0 %1208
      %1210 = vrot.lane.b32.xlu0 %v1193, 64
      %v1211 = vpop.permute.xlu0 %1210
      %1212 = vrot.lane.b32.xlu0 %v1196, 64
      %v1213 = vpop.permute.xlu0 %1212
      %1214 = vrot.lane.b32.xlu0 %v1199, 64
      %v1215 = vpop.permute.xlu0 %1214
      %v1224 = vrot.slane %v991, 2
      %v1225 = vrot.slane %v992, 2
      %v1226 = vsel %vm398, %v1224, %v1225
      %v1227 = vrot.slane %v993, 2
      %v1228 = vrot.slane %v994, 2
      %v1229 = vsel %vm398, %v1227, %v1228
      %v1230 = vrot.slane %v995, 2
      %v1231 = vrot.slane %v996, 2
      %v1232 = vsel %vm398, %v1230, %v1231
      %v1233 = vrot.slane %v997, 2
      %v1234 = vrot.slane %v998, 2
      %v1235 = vsel %vm398, %v1233, %v1234
      %v1236 = vrot.slane %v999, 2
      %v1237 = vrot.slane %v1000, 2
      %v1238 = vsel %vm398, %v1236, %v1237
      %v1239 = vrot.slane %v1001, 2
      %v1240 = vrot.slane %v1002, 2
      %v1241 = vsel %vm398, %v1239, %v1240
      %v1242 = vrot.slane %v1003, 2
      %v1243 = vrot.slane %v1004, 2
      %v1244 = vsel %vm398, %v1242, %v1243
      %v1245 = vrot.slane %v1005, 2
      %v1246 = vrot.slane %v1006, 2
      %v1247 = vsel %vm398, %v1245, %v1246
      %1248 = vrot.lane.b32.xlu0 %v1226, 80
      %v1249 = vpop.permute.xlu0 %1248
      %1250 = vrot.lane.b32.xlu0 %v1229, 80
      %v1251 = vpop.permute.xlu0 %1250
      %1252 = vrot.lane.b32.xlu0 %v1232, 80
      %v1253 = vpop.permute.xlu0 %1252
      %1254 = vrot.lane.b32.xlu0 %v1235, 80
      %v1255 = vpop.permute.xlu0 %1254
      %1256 = vrot.lane.b32.xlu0 %v1238, 80
      %v1257 = vpop.permute.xlu0 %1256
      %1258 = vrot.lane.b32.xlu0 %v1241, 80
      %v1259 = vpop.permute.xlu0 %1258
      %1260 = vrot.lane.b32.xlu0 %v1244, 80
      %v1261 = vpop.permute.xlu0 %1260
      %1262 = vrot.lane.b32.xlu0 %v1247, 80
      %v1263 = vpop.permute.xlu0 %1262
      %1280 = vrot.lane.b32.xlu0 %v1008, 96
      %v1281 = vpop.permute.xlu0 %1280
      %1282 = vrot.lane.b32.xlu0 %v1010, 96
      %v1283 = vpop.permute.xlu0 %1282
      %1284 = vrot.lane.b32.xlu0 %v1012, 96
      %v1285 = vpop.permute.xlu0 %1284
      %1286 = vrot.lane.b32.xlu0 %v1014, 96
      %v1287 = vpop.permute.xlu0 %1286
      %1288 = vrot.lane.b32.xlu0 %v1016, 96
      %v1289 = vpop.permute.xlu0 %1288
      %1290 = vrot.lane.b32.xlu0 %v1018, 96
      %v1291 = vpop.permute.xlu0 %1290
      %1292 = vrot.lane.b32.xlu0 %v1020, 96
      %v1293 = vpop.permute.xlu0 %1292
      %1294 = vrot.lane.b32.xlu0 %v1022, 96
      %v1295 = vpop.permute.xlu0 %1294
      %v1312 = vrot.slane %v1008, 1
      %v1313 = vrot.slane %v1009, 1
      %v1314 = vsel %vm349, %v1312, %v1313
      %v1315 = vrot.slane %v1010, 1
      %v1316 = vrot.slane %v1011, 1
      %v1317 = vsel %vm349, %v1315, %v1316
      %v1318 = vrot.slane %v1012, 1
      %v1319 = vrot.slane %v1013, 1
      %v1320 = vsel %vm349, %v1318, %v1319
      %v1321 = vrot.slane %v1014, 1
      %v1322 = vrot.slane %v1015, 1
      %v1323 = vsel %vm349, %v1321, %v1322
      %v1324 = vrot.slane %v1016, 1
      %v1325 = vrot.slane %v1017, 1
      %v1326 = vsel %vm349, %v1324, %v1325
      %v1327 = vrot.slane %v1018, 1
      %v1328 = vrot.slane %v1019, 1
      %v1329 = vsel %vm349, %v1327, %v1328
      %v1330 = vrot.slane %v1020, 1
      %v1331 = vrot.slane %v1021, 1
      %v1332 = vsel %vm349, %v1330, %v1331
      %v1333 = vrot.slane %v1022, 1
      %v1334 = vrot.slane %v1023, 1
      %v1335 = vsel %vm349, %v1333, %v1334
      %1336 = vrot.lane.b32.xlu0 %v1314, 112
      %v1337 = vpop.permute.xlu0 %1336
      %1338 = vrot.lane.b32.xlu0 %v1317, 112
      %v1339 = vpop.permute.xlu0 %1338
      %1340 = vrot.lane.b32.xlu0 %v1320, 112
      %v1341 = vpop.permute.xlu0 %1340
      %1342 = vrot.lane.b32.xlu0 %v1323, 112
      %v1343 = vpop.permute.xlu0 %1342
      %1344 = vrot.lane.b32.xlu0 %v1326, 112
      %v1345 = vpop.permute.xlu0 %1344
      %1346 = vrot.lane.b32.xlu0 %v1329, 112
      %v1347 = vpop.permute.xlu0 %1346
      %1348 = vrot.lane.b32.xlu0 %v1332, 112
      %v1349 = vpop.permute.xlu0 %1348
      %1350 = vrot.lane.b32.xlu0 %v1335, 112
      %v1351 = vpop.permute.xlu0 %1350
      %v1360 = vrot.slane %v1008, 2
      %v1361 = vrot.slane %v1009, 2
      %v1362 = vsel %vm398, %v1360, %v1361
      %v1363 = vrot.slane %v1010, 2
      %v1364 = vrot.slane %v1011, 2
      %v1365 = vsel %vm398, %v1363, %v1364
      %v1366 = vrot.slane %v1012, 2
      %v1367 = vrot.slane %v1013, 2
      %v1368 = vsel %vm398, %v1366, %v1367
      %v1369 = vrot.slane %v1014, 2
      %v1370 = vrot.slane %v1015, 2
      %v1371 = vsel %vm398, %v1369, %v1370
      %v1372 = vrot.slane %v1016, 2
      %v1373 = vrot.slane %v1017, 2
      %v1374 = vsel %vm398, %v1372, %v1373
      %v1375 = vrot.slane %v1018, 2
      %v1376 = vrot.slane %v1019, 2
      %v1377 = vsel %vm398, %v1375, %v1376
      %v1378 = vrot.slane %v1020, 2
      %v1379 = vrot.slane %v1021, 2
      %v1380 = vsel %vm398, %v1378, %v1379
      %v1381 = vrot.slane %v1022, 2
      %v1382 = vrot.slane %v1023, 2
      %v1383 = vsel %vm398, %v1381, %v1382
      %v1392 = vsel %vm703, %v975, %v1065
      %v1393 = vsel %vm703, %v977, %v1067
      %v1394 = vsel %vm703, %v979, %v1069
      %v1395 = vsel %vm703, %v981, %v1071
      %v1396 = vsel %vm703, %v983, %v1073
      %v1397 = vsel %vm703, %v985, %v1075
      %v1398 = vsel %vm703, %v987, %v1077
      %v1399 = vsel %vm703, %v989, %v1079
      %v1400 = vsel %vm712, %v1392, %v1113
      %v1401 = vsel %vm712, %v1393, %v1115
      %v1402 = vsel %vm712, %v1394, %v1117
      %v1403 = vsel %vm712, %v1395, %v1119
      %v1404 = vsel %vm712, %v1396, %v1121
      %v1405 = vsel %vm712, %v1397, %v1123
      %v1406 = vsel %vm712, %v1398, %v1125
      %v1407 = vsel %vm712, %v1399, %v1127
      %v1408 = vsel %vm721, %v1400, %v1145
      %v1409 = vsel %vm721, %v1401, %v1147
      %v1410 = vsel %vm721, %v1402, %v1149
      %v1411 = vsel %vm721, %v1403, %v1151
      %v1412 = vsel %vm721, %v1404, %v1153
      %v1413 = vsel %vm721, %v1405, %v1155
      %v1414 = vsel %vm721, %v1406, %v1157
      %v1415 = vsel %vm721, %v1407, %v1159
      %v1416 = vsel %vm730, %v1408, %v1201
      %v1417 = vsel %vm730, %v1409, %v1203
      %v1418 = vsel %vm730, %v1410, %v1205
      %v1419 = vsel %vm730, %v1411, %v1207
      %v1420 = vsel %vm730, %v1412, %v1209
      %v1421 = vsel %vm730, %v1413, %v1211
      %v1422 = vsel %vm730, %v1414, %v1213
      %v1423 = vsel %vm730, %v1415, %v1215
      %v1424 = vsel %vm739, %v1416, %v1249
      %v1425 = vsel %vm739, %v1417, %v1251
      %v1426 = vsel %vm739, %v1418, %v1253
      %v1427 = vsel %vm739, %v1419, %v1255
      %v1428 = vsel %vm739, %v1420, %v1257
      %v1429 = vsel %vm739, %v1421, %v1259
      %v1430 = vsel %vm739, %v1422, %v1261
      %v1431 = vsel %vm739, %v1423, %v1263
      %v1432 = vsel %vm748, %v1424, %v1281
      %v1433 = vsel %vm748, %v1425, %v1283
      %v1434 = vsel %vm748, %v1426, %v1285
      %v1435 = vsel %vm748, %v1427, %v1287
      %v1436 = vsel %vm748, %v1428, %v1289
      %v1437 = vsel %vm748, %v1429, %v1291
      %v1438 = vsel %vm748, %v1430, %v1293
      %v1439 = vsel %vm748, %v1431, %v1295
      %v1440 = vsel %vm757, %v1432, %v1337
      %v1441 = vsel %vm757, %v1433, %v1339
      %v1442 = vsel %vm757, %v1434, %v1341
      %v1443 = vsel %vm757, %v1435, %v1343
      %v1444 = vsel %vm757, %v1436, %v1345
      %v1445 = vsel %vm757, %v1437, %v1347
      %v1446 = vsel %vm757, %v1438, %v1349
      %v1447 = vsel %vm757, %v1439, %v1351
      %v1448 = vpack.c.bf16 %v1440, %v1440
      %v1449 = vpack.c.bf16 %v1362, %v1362
      %v1450 = vpack.c.bf16 %v1441, %v1441
      %v1451 = vpack.c.bf16 %v1365, %v1365
      %v1452 = vpack.c.bf16 %v1442, %v1442
      %v1453 = vpack.c.bf16 %v1368, %v1368
      %v1454 = vpack.c.bf16 %v1443, %v1443
      %v1455 = vpack.c.bf16 %v1371, %v1371
      %v1456 = vpack.c.bf16 %v1444, %v1444
      %v1457 = vpack.c.bf16 %v1374, %v1374
      %v1458 = vpack.c.bf16 %v1445, %v1445
      %v1459 = vpack.c.bf16 %v1377, %v1377
      %v1460 = vpack.c.bf16 %v1446, %v1446
      %v1461 = vpack.c.bf16 %v1380, %v1380
      %v1462 = vpack.c.bf16 %v1447, %v1447
      %v1463 = vpack.c.bf16 %v1383, %v1383
      %v1464 = vld [vmem:[%s297 + $0x1] sm:$0xff]
      %v1465 = vld [vmem:[%s297 + $0x11] sm:$0xff]
      %v1466 = vld [vmem:[%s297 + $0x21] sm:$0xff]
      %v1467 = vld [vmem:[%s297 + $0x31] sm:$0xff]
      %v1468 = vld [vmem:[%s297 + $0x41] sm:$0xff]
      %v1469 = vld [vmem:[%s297 + $0x51] sm:$0xff]
      %v1470 = vld [vmem:[%s297 + $0x61] sm:$0xff]
      %v1471 = vld [vmem:[%s297 + $0x71] sm:$0xff]
      %v1488 = vunpack.c.l.b16 %v1448
      %v1489 = vunpack.c.l.b16 %v1449
      %v1490 = vunpack.c.l.b16 %v1450
      %v1491 = vunpack.c.l.b16 %v1451
      %v1492 = vunpack.c.l.b16 %v1452
      %v1493 = vunpack.c.l.b16 %v1453
      %v1494 = vunpack.c.l.b16 %v1454
      %v1495 = vunpack.c.l.b16 %v1455
      %v1496 = vunpack.c.l.b16 %v1456
      %v1497 = vunpack.c.l.b16 %v1457
      %v1498 = vunpack.c.l.b16 %v1458
      %v1499 = vunpack.c.l.b16 %v1459
      %v1500 = vunpack.c.l.b16 %v1460
      %v1501 = vunpack.c.l.b16 %v1461
      %v1502 = vunpack.c.l.b16 %v1462
      %v1503 = vunpack.c.l.b16 %v1463
      %v1504 = vpack.c.b16 %v1490, %v1488
      %v1505 = vpack.c.b16 %v1491, %v1489
      %v1506 = vpack.c.b16 %v1494, %v1492
      %v1507 = vpack.c.b16 %v1495, %v1493
      %v1508 = vpack.c.b16 %v1498, %v1496
      %v1509 = vpack.c.b16 %v1499, %v1497
      %v1510 = vpack.c.b16 %v1502, %v1500
      %v1511 = vpack.c.b16 %v1503, %v1501
      %v1534 = vunpack.c.l.b16 %v259
      %v1535 = vunpack.c.l.b16 %v260
      %v1536 = vunpack.c.l.b16 %v261
      %v1537 = vunpack.c.l.b16 %v262
      %v1538 = vunpack.c.l.b16 %v263
      %v1539 = vunpack.c.l.b16 %v264
      %v1540 = vunpack.c.l.b16 %v265
      %v1541 = vunpack.c.l.b16 %v266
      %v1542 = vunpack.c.l.b16 %v267
      %v1543 = vunpack.c.l.b16 %v268
      %v1544 = vunpack.c.l.b16 %v269
      %v1545 = vunpack.c.l.b16 %v270
      %v1546 = vunpack.c.l.b16 %v271
      %v1547 = vunpack.c.l.b16 %v272
      %v1548 = vunpack.c.l.b16 %v273
      %v1549 = vunpack.c.l.b16 %v274
      %v1550 = vunpack.c.l.b16 %v275
      %v1551 = vunpack.c.l.b16 %v276
      %v1552 = vpack.c.b16 %v1535, %v1534
      %v1553 = vpack.c.b16 %v1537, %v1536
      %v1554 = vpack.c.b16 %v1539, %v1538
      %v1555 = vpack.c.b16 %v1541, %v1540
      %v1556 = vpack.c.b16 %v1543, %v1542
      %v1557 = vpack.c.b16 %v1545, %v1544
      %v1558 = vpack.c.b16 %v1547, %v1546
      %v1559 = vpack.c.b16 %v1549, %v1548
      %v1560 = vpack.c.b16 %v1551, %v1550
      %v1571 = vsel %vm703, %v1505, 0
      %v1574 = vsel %vm703, %v1507, 0
      %v1577 = vsel %vm703, %v1509, 0
      %v1580 = vsel %vm703, %v1511, 0
      %1582 = vmatprep.subr.bf16.mxu0 0
      %1583 = vmatpush1.bf16.msra.mxu0 %v1559
      %1584 = vmatprep.subr.bf16.mxu0 0
      %1585 = vmatpush1.bf16.msra.mxu0 %v1558
      %1586 = vmatprep.subr.bf16.mxu0 0
      %1587 = vmatpush1.bf16.msra.mxu0 %v1557
      %1588 = vmatprep.subr.bf16.mxu0 0
      %1589 = vmatpush1.bf16.msra.mxu0 %v1556
      %1590 = vmatprep.subr.bf16.mxu0 0
      %1591 = vmatpush1.bf16.msra.mxu0 %v1555
      %1592 = vmatprep.subr.bf16.mxu0 0
      %1593 = vmatpush1.bf16.msra.mxu0 %v1554
      %1594 = vmatprep.subr.bf16.mxu0 0
      %1595 = vmatpush1.bf16.msra.mxu0 %v1553
      %1596 = vmatprep.subr.bf16.mxu0 0
      %1597 = vmatpush1.bf16.msra.mxu0 %v1552
      %1598 = vmatprep.subr.bf16.mxu0 0
      %1599 = vmatpush2.bf16.msra.mxu0 0
      %1600 = vmatprep.subr.bf16.mxu0 0
      %1601 = vmatpush2.bf16.msra.mxu0 0
      %1602 = vmatprep.subr.bf16.mxu0 0
      %1603 = vmatpush2.bf16.msra.mxu0 0
      %1604 = vmatprep.subr.bf16.mxu0 0
      %1605 = vmatpush2.bf16.msra.mxu0 0
      %1606 = vmatprep.subr.bf16.mxu0 0
      %1607 = vmatpush2.bf16.msra.mxu0 0
      %1608 = vmatprep.subr.bf16.mxu0 0
      %1609 = vmatpush2.bf16.msra.mxu0 0
      %1610 = vmatprep.subr.bf16.mxu0 0
      %1611 = vmatpush2.bf16.msra.mxu0 0
      %1612 = vmatprep.subr.bf16.mxu0 0
      %1613 = vmatpush2.bf16.msra.mxu0 %v1560
      %1614 = vmatprep.mubr.bf16.mxu0 %v1571
      %1615 = vmatmul.mubr.bf16.gmra.mxu0 %v1504
      %v1616 = vpop.f32.mrf.mxu0
      %v1617 = vadd.f32 %v1464, %v1616
      %v1618 = vpop.f32.mrf.mxu0
      %v1619 = vpop.f32.mrf.mxu0
      %v1620 = vadd.f32 %v1465, %v1619
      %v1621 = vpop.f32.mrf.mxu0
      %1622 = vmatprep.mubr.bf16.mxu0 %v1574
      %1623 = vmatmul.mubr.bf16.gmra.mxu0 %v1506
      %v1624 = vpop.f32.mrf.mxu0
      %v1625 = vadd.f32 %v1466, %v1624
      %v1626 = vpop.f32.mrf.mxu0
      %v1627 = vpop.f32.mrf.mxu0
      %v1628 = vadd.f32 %v1467, %v1627
      %v1629 = vpop.f32.mrf.mxu0
      %1630 = vmatprep.mubr.bf16.mxu0 %v1577
      %1631 = vmatmul.mubr.bf16.gmra.mxu0 %v1508
      %v1632 = vpop.f32.mrf.mxu0
      %v1633 = vadd.f32 %v1468, %v1632
      %v1634 = vpop.f32.mrf.mxu0
      %v1635 = vpop.f32.mrf.mxu0
      %v1636 = vadd.f32 %v1469, %v1635
      %v1637 = vpop.f32.mrf.mxu0
      %1638 = vmatprep.mubr.bf16.mxu0 %v1580
      %1639 = vmatmul.mubr.bf16.gmra.mxu0 %v1510
      %v1640 = vpop.f32.mrf.mxu0
      %v1641 = vadd.f32 %v1470, %v1640
      %v1642 = vpop.f32.mrf.mxu0
      %v1643 = vpop.f32.mrf.mxu0
      %v1644 = vadd.f32 %v1471, %v1643
      %v1645 = vpop.f32.mrf.mxu0
      %1646 = vdwg.mxu0
      %1647 = vst.msk [vmem:[%s297 + $0x1] sm:$0xff] %vm703, %v1617
      %1648 = vst.msk [vmem:[%s297 + $0x11] sm:$0xff] %vm703, %v1620
      %1649 = vst.msk [vmem:[%s297 + $0x21] sm:$0xff] %vm703, %v1625
      %1650 = vst.msk [vmem:[%s297 + $0x31] sm:$0xff] %vm703, %v1628
      %1651 = vst.msk [vmem:[%s297 + $0x41] sm:$0xff] %vm703, %v1633
      %1652 = vst.msk [vmem:[%s297 + $0x51] sm:$0xff] %vm703, %v1636
      %1653 = vst.msk [vmem:[%s297 + $0x61] sm:$0xff] %vm703, %v1641
      %1654 = vst.msk [vmem:[%s297 + $0x71] sm:$0xff] %vm703, %v1644
      %p1655 = scmp.eq.s32.totalorder %s18, 1
      // Predicated region
      $region33: #{_lambda_.5} parent=27 // pred_check
        %p1656 = pneg %p1655
      $region34: #{_lambda_.5} parent=27 // pred_check_branch
        %1658 = sbr.rel (%p1656) target = $region36
      $region35: #{_lambda_.5} parent=27 // pred_region
        %s1659 = scalar_lea.vmem [#allocation2], 16
        %v1660 = vld [vmem:[%s1659 + $0x1] sm:$0xff]
        %v1661 = vld [vmem:[%s1659 + $0x11] sm:$0xff]
        %v1662 = vld [vmem:[%s1659 + $0x21] sm:$0xff]
        %v1663 = vld [vmem:[%s1659 + $0x31] sm:$0xff]
        %v1664 = vld [vmem:[%s1659 + $0x41] sm:$0xff]
        %v1665 = vld [vmem:[%s1659 + $0x51] sm:$0xff]
        %v1666 = vld [vmem:[%s1659 + $0x61] sm:$0xff]
        %v1667 = vld [vmem:[%s1659 + $0x71] sm:$0xff]
        %1668 = vst.msk [vmem:[%s175] sm:$0xff] %vm703, %v1660
        %1669 = vst.msk [vmem:[%s175 + $0x8] sm:$0xff] %vm703, %v1661
        %1670 = vst.msk [vmem:[%s175 + $0x10] sm:$0xff] %vm703, %v1662
        %1671 = vst.msk [vmem:[%s175 + $0x18] sm:$0xff] %vm703, %v1663
        %1672 = vst.msk [vmem:[%s175 + $0x20] sm:$0xff] %vm703, %v1664
        %1673 = vst.msk [vmem:[%s175 + $0x28] sm:$0xff] %vm703, %v1665
        %1674 = vst.msk [vmem:[%s175 + $0x30] sm:$0xff] %vm703, %v1666
        %1675 = vst.msk [vmem:[%s175 + $0x38] sm:$0xff] %vm703, %v1667
      $region36: #{_lambda_.5} parent=27 // pred_fallthru
        _
      %p1676 = scmp.lt.s32.totalorder %s17, 1
      %s1677 = scalar_select %p1676, %s17, 1
      %s1678 = smul.addr %s1677, 8
      %s1679 = smul.addr %s1678, 8
      %s1680 = scalar_lea.vmem %s2, %s1679
      // Predicated region
      $region37: #{_lambda_.5} parent=27 // pred_check
        %p1681 = pneg %p95
      $region38: #{_lambda_.5} parent=27 // pred_check_branch
        %1683 = sbr.rel (%p1681) target = $region40
      $region39: #{_lambda_.5} parent=27 // pred_region
        _
      $region40: #{_lambda_.5} parent=27 // pred_fallthru
        _
    $region28: #{_lambda_.5} parent=5 // pred_fallthru
      _
    %p1684 = scmp.le.s32.totalorder 2, %s8
    // Predicated region
    $region41: #{_lambda_.5} parent=5 // pred_check
      %p1685 = pneg %p1684
    $region42: #{_lambda_.5} parent=5 // pred_check_branch
      %1687 = sbr.rel (%p1685) target = $region44
    $region43: #{_lambda_.5} parent=5 // pred_region
      %s1688 = ssub.s32 %s8, 2
      // Predicated region
      $region45: #{_lambda_.5} parent=43 // pred_check
        %p1689 = pneg %p101
      $region46: #{_lambda_.5} parent=43 // pred_check_branch
        %1691 = sbr.rel (%p1689) target = $region48
      $region47: #{_lambda_.5} parent=43 // pred_region
        %p1692 = scmp.lt.s32.totalorder %s19, 1
        %s1693 = scalar_select %p1692, %s19, 1
        %s1694 = smul.addr %s1693, 8
        %s1695 = smul.addr %s1694, 8
        %s1696 = scalar_lea.vmem %s2, %s1695
      $region48: #{_lambda_.5} parent=43 // pred_fallthru
        _
    $region44: #{_lambda_.5} parent=5 // pred_fallthru
      _
  $region6: #{_lambda_.5} parent=0 // loop_footer
    %s12 = sadd.s32 1, %s8
  $region7: #{_lambda_.5} parent=0 // loop_footer_branch
    %7 = sbr.rel target = $region3
  $region8: #{_lambda_.5} parent=0 // loop_exit
    _

// kernel: _lambda_.7
$region0: #{_lambda_.7}
  #allocation0 [shape = 'u32[]', space=smem, size = 0x4, offset = 0x4, fixed_abs, tag = 'smem constant byte address 0x4 - core index']
  #allocation1 [shape = 'u32[144,128]{1,0:T(1,128)}', space=vmem, size = 0x12000, scoped, tag = 'internal scratch']
  #allocation2 [shape = 'f32[18,18,16]{2,1,0:T(8,128)}', space=vmem, size = 0x36000, scoped, tag = 'scratch operand']
  #allocation3 [shape = 'f32[18,18,16]{2,1,0:T(8,128)}', space=vmem, size = 0x36000, scoped, tag = 'scratch operand']
  %s0 = inlined_call_operand.vmem [shape: f32[2,16,16,16], index: 0, kind: input, shape index: {}]
  %s1 = inlined_call_operand.vmem [shape: bf16[144,16], index: 1, kind: input, shape index: {}]
  %s2 = inlined_call_operand.vmem [shape: bf16[144,3], index: 2, kind: input, shape index: {}]
  %s3 = inlined_call_operand.vmem [shape: f32[2,16,16,3], index: 3, kind: input, shape index: {}]
  %s4 = inlined_call_operand.vmem [shape: f32[2,16,16,3], index: 4, kind: output, shape index: {}]
  %s5 = sld [smem:[#allocation0]]
  $region63: #{_lambda_.7} parent=0
    _
  %s7 = ssub.s32 1, %s5
  %s8 = scalar_select 0, %s7, %s5
  loop: start=0, step=1, limit=4
  $region2: #{_lambda_.7} parent=0 // loop_pre_header
    _
  $region3: #{_lambda_.7} parent=0 // loop_header
    %s10 = sphi 0, %s14
    %p11 = scmp.ge.s32.totalorder %s10, 4
    %s20 = sphi 0, %s22
    %s23 = sphi 0, %s20
    %s24 = sphi 0, %s23
    %s40 = sphi 0, %s24
    %s44 = sphi 0, %s44
    %s46 = sphi 0, %s44
    %s47 = sphi 0, %s46
    %s61 = sphi 0, %s47
    %s65 = sphi 0, %s65
    %s67 = sphi 0, %s65
    %s68 = sphi 0, %s67
    %s82 = sphi 0, %s68
    %s88 = sphi 0, %s90
    %s91 = sphi 0, %s88
    %s92 = sphi 0, %s91
    %s108 = sphi 0, %s92
    %s114 = sphi 0, %s116
    %s117 = sphi 0, %s114
    %s118 = sphi 0, %s117
    %s134 = sphi 0, %s118
  $region4: #{_lambda_.7} parent=0 // loop_header_branch
    %13 = sbr.rel (%p11) target = $region8
  $region5: #{_lambda_.7} parent=0 // loop_body
    %s15 = ssub.s32 %s10, 1
    %s16 = ssub.s32 %s10, 2
    %s17 = sadd.s32 %s10, 1
    %s18 = ssub.s32 %s10, %s17
    %p19 = scmp.eq.s32.totalorder %s18, 0
    %s21 = sadd.s32 %s20, 1
    %s22 = scalar_select %p19, %s20, %s21
    %p25 = pneg %p19
    %p26 = scmp.eq.s32.totalorder %s10, 1
    %p27 = por %p25, %p26
    %p28 = scmp.ne.s32.totalorder %s20, %s23
    %p29 = scmp.eq.s32.totalorder %s10, 0
    %p30 = por %p28, %p29
    %p31 = scmp.ne.s32.totalorder %s20, %s23
    %p32 = scmp.eq.s32.totalorder %s15, 1
    %p33 = por %p31, %p32
    %p34 = scmp.ne.s32.totalorder %s23, %s24
    %p35 = scmp.eq.s32.totalorder %s15, 0
    %p36 = por %p34, %p35
    %p37 = scmp.ne.s32.totalorder %s23, %s24
    %p38 = scmp.eq.s32.totalorder %s16, 1
    %p39 = por %p37, %p38
    %p41 = scmp.ne.s32.totalorder %s24, %s40
    %p42 = scmp.eq.s32.totalorder %s16, 0
    %p43 = por %p41, %p42
    %s45 = sadd.s32 %s44, 1
    %p48 = scmp.eq.s32.totalorder %s10, 1
    %p49 = scmp.ne.s32.totalorder %s44, %s46
    %p50 = scmp.eq.s32.totalorder %s10, 0
    %p51 = por %p49, %p50
    %p52 = scmp.ne.s32.totalorder %s44, %s46
    %p53 = scmp.eq.s32.totalorder %s15, 1
    %p54 = por %p52, %p53
    %p55 = scmp.ne.s32.totalorder %s46, %s47
    %p56 = scmp.eq.s32.totalorder %s15, 0
    %p57 = por %p55, %p56
    %p58 = scmp.ne.s32.totalorder %s46, %s47
    %p59 = scmp.eq.s32.totalorder %s16, 1
    %p60 = por %p58, %p59
    %p62 = scmp.ne.s32.totalorder %s47, %s61
    %p63 = scmp.eq.s32.totalorder %s16, 0
    %p64 = por %p62, %p63
    %s66 = sadd.s32 %s65, 1
    %p69 = scmp.eq.s32.totalorder %s10, 1
    %p70 = scmp.ne.s32.totalorder %s65, %s67
    %p71 = scmp.eq.s32.totalorder %s10, 0
    %p72 = por %p70, %p71
    %p73 = scmp.ne.s32.totalorder %s65, %s67
    %p74 = scmp.eq.s32.totalorder %s15, 1
    %p75 = por %p73, %p74
    %p76 = scmp.ne.s32.totalorder %s67, %s68
    %p77 = scmp.eq.s32.totalorder %s15, 0
    %p78 = por %p76, %p77
    %p79 = scmp.ne.s32.totalorder %s67, %s68
    %p80 = scmp.eq.s32.totalorder %s16, 1
    %p81 = por %p79, %p80
    %p83 = scmp.ne.s32.totalorder %s68, %s82
    %p84 = scmp.eq.s32.totalorder %s16, 0
    %p85 = por %p83, %p84
    %s86 = ssub.s32 %s10, %s17
    %p87 = scmp.eq.s32.totalorder %s86, 0
    %s89 = sadd.s32 %s88, 1
    %s90 = scalar_select %p87, %s88, %s89
    %p93 = pneg %p87
    %p94 = scmp.eq.s32.totalorder %s10, 1
    %p95 = por %p93, %p94
    %p96 = scmp.ne.s32.totalorder %s88, %s91
    %p97 = scmp.eq.s32.totalorder %s10, 0
    %p98 = por %p96, %p97
    %p99 = scmp.ne.s32.totalorder %s88, %s91
    %p100 = scmp.eq.s32.totalorder %s15, 1
    %p101 = por %p99, %p100
    %p102 = scmp.ne.s32.totalorder %s91, %s92
    %p103 = scmp.eq.s32.totalorder %s15, 0
    %p104 = por %p102, %p103
    %p105 = scmp.ne.s32.totalorder %s91, %s92
    %p106 = scmp.eq.s32.totalorder %s16, 1
    %p107 = por %p105, %p106
    %p109 = scmp.ne.s32.totalorder %s92, %s108
    %p110 = scmp.eq.s32.totalorder %s16, 0
    %p111 = por %p109, %p110
    %s112 = ssub.s32 %s10, %s17
    %p113 = scmp.eq.s32.totalorder %s112, 0
    %s115 = sadd.s32 %s114, 1
    %s116 = scalar_select %p113, %s114, %s115
    %p119 = pneg %p113
    %p120 = scmp.eq.s32.totalorder %s10, 1
    %p121 = por %p119, %p120
    %p122 = scmp.ne.s32.totalorder %s114, %s117
    %p123 = scmp.eq.s32.totalorder %s10, 0
    %p124 = por %p122, %p123
    %p125 = scmp.ne.s32.totalorder %s114, %s117
    %p126 = scmp.eq.s32.totalorder %s15, 1
    %p127 = por %p125, %p126
    %p128 = scmp.ne.s32.totalorder %s117, %s118
    %p129 = scmp.eq.s32.totalorder %s15, 0
    %p130 = por %p128, %p129
    %p131 = scmp.ne.s32.totalorder %s117, %s118
    %p132 = scmp.eq.s32.totalorder %s16, 1
    %p133 = por %p131, %p132
    %p135 = scmp.ne.s32.totalorder %s118, %s134
    %p136 = scmp.eq.s32.totalorder %s16, 0
    %p137 = por %p135, %p136
    %p138 = scmp.le.s32.totalorder 1, %s10
    %p139 = scmp.lt.s32.totalorder %s10, 3
    %p140 = pnand %p138, %p139
    %p141 = pneg %p140
    // Predicated region
    $region9: #{_lambda_.7} parent=5 // pred_check
      _
    $region10: #{_lambda_.7} parent=5 // pred_check_branch
      %143 = sbr.rel (%p140) target = $region12
    $region11: #{_lambda_.7} parent=5 // pred_region
      %s144 = ssub.s32 %s10, 1
      // Predicated region
      $region13: #{_lambda_.7} parent=11 // pred_check
        %p145 = pneg %p57
      $region14: #{_lambda_.7} parent=11 // pred_check_branch
        %147 = sbr.rel (%p145) target = $region16
      $region15: #{_lambda_.7} parent=11 // pred_region
        _
      $region16: #{_lambda_.7} parent=11 // pred_fallthru
        _
      // Predicated region
      $region17: #{_lambda_.7} parent=11 // pred_check
        %p148 = pneg %p78
      $region18: #{_lambda_.7} parent=11 // pred_check_branch
        %150 = sbr.rel (%p148) target = $region20
      $region19: #{_lambda_.7} parent=11 // pred_region
        _
      $region20: #{_lambda_.7} parent=11 // pred_fallthru
        _
    $region12: #{_lambda_.7} parent=5 // pred_fallthru
      _
    %p151 = scmp.lt.s32.totalorder %s10, 2
    // Predicated region
    $region21: #{_lambda_.7} parent=5 // pred_check
      %p152 = pneg %p151
    $region22: #{_lambda_.7} parent=5 // pred_check_branch
      %154 = sbr.rel (%p152) target = $region24
    $region23: #{_lambda_.7} parent=5 // pred_region
      // Predicated region
      $region25: #{_lambda_.7} parent=23 // pred_check
        %p155 = pneg %p30
      $region26: #{_lambda_.7} parent=23 // pred_check_branch
        %157 = sbr.rel (%p155) target = $region28
      $region27: #{_lambda_.7} parent=23 // pred_region
        %p158 = scmp.lt.s32.totalorder %s10, 1
        %s159 = scalar_select %p158, %s10, 1
        %s160 = smul.addr %s159, 32
        %s161 = smul.addr %s160, 8
        %s162 = scalar_lea.vmem %s0, %s161
      $region28: #{_lambda_.7} parent=23 // pred_fallthru
        _
      // Predicated region
      $region29: #{_lambda_.7} parent=23 // pred_check
        %p163 = pneg %p98
      $region30: #{_lambda_.7} parent=23 // pred_check_branch
        %165 = sbr.rel (%p163) target = $region32
      $region31: #{_lambda_.7} parent=23 // pred_region
        %p166 = scmp.lt.s32.totalorder %s10, 1
        %s167 = scalar_select %p166, %s10, 1
        %s168 = smul.addr %s167, 32
        %s169 = smul.addr %s168, 8
        %s170 = scalar_lea.vmem %s3, %s169
      $region32: #{_lambda_.7} parent=23 // pred_fallthru
        _
    $region24: #{_lambda_.7} parent=5 // pred_fallthru
      _
    %p171 = scmp.le.s32.totalorder 1, %s10
    %p172 = scmp.lt.s32.totalorder %s10, 3
    %p173 = pnand %p171, %p172
    %p174 = pneg %p173
    // Predicated region
    $region33: #{_lambda_.7} parent=5 // pred_check
      _
    $region34: #{_lambda_.7} parent=5 // pred_check_branch
      %176 = sbr.rel (%p173) target = $region36
    $region35: #{_lambda_.7} parent=5 // pred_region
      %s177 = ssub.s32 %s10, 1
      %p178 = scmp.lt.s32.totalorder %s15, 1
      %s179 = scalar_select %p178, %s15, 1
      %s180 = smul.addr %s179, 32
      %s181 = smul.addr %s180, 8
      %s182 = scalar_lea.vmem %s0, %s181
      %p183 = pneg %p36
      %p184 = pneg %p33
      %p185 = pneg %p57
      %p186 = pneg %p54
      %p187 = pneg %p78
      %p188 = pneg %p75
      %p189 = scmp.lt.s32.totalorder %s15, 1
      %s190 = scalar_select %p189, %s15, 1
      %s191 = smul.addr %s190, 32
      %s192 = smul.addr %s191, 8
      %s193 = scalar_lea.vmem %s3, %s192
      %p194 = pneg %p104
      %p195 = pneg %p101
      %p196 = pneg %p130
      %p197 = pneg %p127
      %p198 = scmp.lt.s32.totalorder %s15, 1
      %s199 = scalar_select %p198, %s15, 1
      %s200 = smul.addr %s199, 32
      %s201 = smul.addr %s200, 8
      %s202 = scalar_lea.vmem %s4, %s201
      %p203 = scmp.lt.s32.totalorder %s15, 1
      %s204 = scalar_select %p203, %s15, 1
      %s205 = smul.addr %s204, 32
      %s206 = smul.addr %s205, 8
      %s207 = scalar_lea.vmem %s0, %s206
      %p208 = scmp.lt.s32.totalorder %s15, 1
      %s209 = scalar_select %p208, %s15, 1
      %s210 = smul.addr %s209, 32
      %s211 = smul.addr %s210, 8
      %s212 = scalar_lea.vmem %s3, %s211
      %p213 = scmp.lt.s32.totalorder %s15, 1
      %s214 = scalar_select %p213, %s15, 1
      %s215 = smul.addr %s214, 32
      %s216 = smul.addr %s215, 8
      %s217 = scalar_lea.vmem %s4, %s216
      %vm219 = vcmask 130048
      %220 = vst.msk [vmem:[#allocation2] sm:$0xff] %vm219, 0.0
      %221 = vst.msk [vmem:[#allocation2 + $0x8] sm:$0xff] %vm219, 0.0
      %vm222 = vcmask 123904
      %223 = vst.msk [vmem:[#allocation2 + $0x10] sm:$0x3] %vm222, 0.0
      %224 = vst.msk [vmem:[#allocation2 + $0x18] sm:$0xff] %vm219, 0.0
      %225 = vst.msk [vmem:[#allocation2 + $0x20] sm:$0xff] %vm219, 0.0
      %226 = vst.msk [vmem:[#allocation2 + $0x28] sm:$0x3] %vm222, 0.0
      %227 = vst.msk [vmem:[#allocation2 + $0x30] sm:$0xff] %vm219, 0.0
      %228 = vst.msk [vmem:[#allocation2 + $0x38] sm:$0xff] %vm219, 0.0
      %229 = vst.msk [vmem:[#allocation2 + $0x40] sm:$0x3] %vm222, 0.0
      %230 = vst.msk [vmem:[#allocation2 + $0x48] sm:$0xff] %vm219, 0.0
      %231 = vst.msk [vmem:[#allocation2 + $0x50] sm:$0xff] %vm219, 0.0
      %232 = vst.msk [vmem:[#allocation2 + $0x58] sm:$0x3] %vm222, 0.0
      %233 = vst.msk [vmem:[#allocation2 + $0x60] sm:$0xff] %vm219, 0.0
      %234 = vst.msk [vmem:[#allocation2 + $0x68] sm:$0xff] %vm219, 0.0
      %235 = vst.msk [vmem:[#allocation2 + $0x70] sm:$0x3] %vm222, 0.0
      %236 = vst.msk [vmem:[#allocation2 + $0x78] sm:$0xff] %vm219, 0.0
      %237 = vst.msk [vmem:[#allocation2 + $0x80] sm:$0xff] %vm219, 0.0
      %238 = vst.msk [vmem:[#allocation2 + $0x88] sm:$0x3] %vm222, 0.0
      %239 = vst.msk [vmem:[#allocation2 + $0x90] sm:$0xff] %vm219, 0.0
      %240 = vst.msk [vmem:[#allocation2 + $0x98] sm:$0xff] %vm219, 0.0
      %241 = vst.msk [vmem:[#allocation2 + $0xa0] sm:$0x3] %vm222, 0.0
      %242 = vst.msk [vmem:[#allocation2 + $0xa8] sm:$0xff] %vm219, 0.0
      %243 = vst.msk [vmem:[#allocation2 + $0xb0] sm:$0xff] %vm219, 0.0
      %244 = vst.msk [vmem:[#allocation2 + $0xb8] sm:$0x3] %vm222, 0.0
      %245 = vst.msk [vmem:[#allocation2 + $0xc0] sm:$0xff] %vm219, 0.0
      %246 = vst.msk [vmem:[#allocation2 + $0xc8] sm:$0xff] %vm219, 0.0
      %247 = vst.msk [vmem:[#allocation2 + $0xd0] sm:$0x3] %vm222, 0.0
      %248 = vst.msk [vmem:[#allocation2 + $0xd8] sm:$0xff] %vm219, 0.0
      %249 = vst.msk [vmem:[#allocation2 + $0xe0] sm:$0xff] %vm219, 0.0
      %250 = vst.msk [vmem:[#allocation2 + $0xe8] sm:$0x3] %vm222, 0.0
      %251 = vst.msk [vmem:[#allocation2 + $0xf0] sm:$0xff] %vm219, 0.0
      %252 = vst.msk [vmem:[#allocation2 + $0xf8] sm:$0xff] %vm219, 0.0
      %253 = vst.msk [vmem:[#allocation2 + $0x100] sm:$0x3] %vm222, 0.0
      %254 = vst.msk [vmem:[#allocation2 + $0x108] sm:$0xff] %vm219, 0.0
      %255 = vst.msk [vmem:[#allocation2 + $0x110] sm:$0xff] %vm219, 0.0
      %256 = vst.msk [vmem:[#allocation2 + $0x118] sm:$0x3] %vm222, 0.0
      %257 = vst.msk [vmem:[#allocation2 + $0x120] sm:$0xff] %vm219, 0.0
      %258 = vst.msk [vmem:[#allocation2 + $0x128] sm:$0xff] %vm219, 0.0
      %259 = vst.msk [vmem:[#allocation2 + $0x130] sm:$0x3] %vm222, 0.0
      %260 = vst.msk [vmem:[#allocation2 + $0x138] sm:$0xff] %vm219, 0.0
      %261 = vst.msk [vmem:[#allocation2 + $0x140] sm:$0xff] %vm219, 0.0
      %262 = vst.msk [vmem:[#allocation2 + $0x148] sm:$0x3] %vm222, 0.0
      %263 = vst.msk [vmem:[#allocation2 + $0x150] sm:$0xff] %vm219, 0.0
      %264 = vst.msk [vmem:[#allocation2 + $0x158] sm:$0xff] %vm219, 0.0
      %265 = vst.msk [vmem:[#allocation2 + $0x160] sm:$0x3] %vm222, 0.0
      %266 = vst.msk [vmem:[#allocation2 + $0x168] sm:$0xff] %vm219, 0.0
      %267 = vst.msk [vmem:[#allocation2 + $0x170] sm:$0xff] %vm219, 0.0
      %268 = vst.msk [vmem:[#allocation2 + $0x178] sm:$0x3] %vm222, 0.0
      %269 = vst.msk [vmem:[#allocation2 + $0x180] sm:$0xff] %vm219, 0.0
      %270 = vst.msk [vmem:[#allocation2 + $0x188] sm:$0xff] %vm219, 0.0
      %271 = vst.msk [vmem:[#allocation2 + $0x190] sm:$0x3] %vm222, 0.0
      %272 = vst.msk [vmem:[#allocation2 + $0x198] sm:$0xff] %vm219, 0.0
      %273 = vst.msk [vmem:[#allocation2 + $0x1a0] sm:$0xff] %vm219, 0.0
      %274 = vst.msk [vmem:[#allocation2 + $0x1a8] sm:$0x3] %vm222, 0.0
      %275 = vst.msk [vmem:[#allocation3] sm:$0xff] %vm219, 0.0
      %276 = vst.msk [vmem:[#allocation3 + $0x8] sm:$0xff] %vm219, 0.0
      %277 = vst.msk [vmem:[#allocation3 + $0x10] sm:$0x3] %vm222, 0.0
      %278 = vst.msk [vmem:[#allocation3 + $0x18] sm:$0xff] %vm219, 0.0
      %279 = vst.msk [vmem:[#allocation3 + $0x20] sm:$0xff] %vm219, 0.0
      %280 = vst.msk [vmem:[#allocation3 + $0x28] sm:$0x3] %vm222, 0.0
      %281 = vst.msk [vmem:[#allocation3 + $0x30] sm:$0xff] %vm219, 0.0
      %282 = vst.msk [vmem:[#allocation3 + $0x38] sm:$0xff] %vm219, 0.0
      %283 = vst.msk [vmem:[#allocation3 + $0x40] sm:$0x3] %vm222, 0.0
      %284 = vst.msk [vmem:[#allocation3 + $0x48] sm:$0xff] %vm219, 0.0
      %285 = vst.msk [vmem:[#allocation3 + $0x50] sm:$0xff] %vm219, 0.0
      %286 = vst.msk [vmem:[#allocation3 + $0x58] sm:$0x3] %vm222, 0.0
      %287 = vst.msk [vmem:[#allocation3 + $0x60] sm:$0xff] %vm219, 0.0
      %288 = vst.msk [vmem:[#allocation3 + $0x68] sm:$0xff] %vm219, 0.0
      %289 = vst.msk [vmem:[#allocation3 + $0x70] sm:$0x3] %vm222, 0.0
      %290 = vst.msk [vmem:[#allocation3 + $0x78] sm:$0xff] %vm219, 0.0
      %291 = vst.msk [vmem:[#allocation3 + $0x80] sm:$0xff] %vm219, 0.0
      %292 = vst.msk [vmem:[#allocation3 + $0x88] sm:$0x3] %vm222, 0.0
      %293 = vst.msk [vmem:[#allocation3 + $0x90] sm:$0xff] %vm219, 0.0
      %294 = vst.msk [vmem:[#allocation3 + $0x98] sm:$0xff] %vm219, 0.0
      %295 = vst.msk [vmem:[#allocation3 + $0xa0] sm:$0x3] %vm222, 0.0
      %296 = vst.msk [vmem:[#allocation3 + $0xa8] sm:$0xff] %vm219, 0.0
      %297 = vst.msk [vmem:[#allocation3 + $0xb0] sm:$0xff] %vm219, 0.0
      %298 = vst.msk [vmem:[#allocation3 + $0xb8] sm:$0x3] %vm222, 0.0
      %299 = vst.msk [vmem:[#allocation3 + $0xc0] sm:$0xff] %vm219, 0.0
      %300 = vst.msk [vmem:[#allocation3 + $0xc8] sm:$0xff] %vm219, 0.0
      %301 = vst.msk [vmem:[#allocation3 + $0xd0] sm:$0x3] %vm222, 0.0
      %302 = vst.msk [vmem:[#allocation3 + $0xd8] sm:$0xff] %vm219, 0.0
      %303 = vst.msk [vmem:[#allocation3 + $0xe0] sm:$0xff] %vm219, 0.0
      %304 = vst.msk [vmem:[#allocation3 + $0xe8] sm:$0x3] %vm222, 0.0
      %305 = vst.msk [vmem:[#allocation3 + $0xf0] sm:$0xff] %vm219, 0.0
      %306 = vst.msk [vmem:[#allocation3 + $0xf8] sm:$0xff] %vm219, 0.0
      %307 = vst.msk [vmem:[#allocation3 + $0x100] sm:$0x3] %vm222, 0.0
      %308 = vst.msk [vmem:[#allocation3 + $0x108] sm:$0xff] %vm219, 0.0
      %309 = vst.msk [vmem:[#allocation3 + $0x110] sm:$0xff] %vm219, 0.0
      %310 = vst.msk [vmem:[#allocation3 + $0x118] sm:$0x3] %vm222, 0.0
      %311 = vst.msk [vmem:[#allocation3 + $0x120] sm:$0xff] %vm219, 0.0
      %312 = vst.msk [vmem:[#allocation3 + $0x128] sm:$0xff] %vm219, 0.0
      %313 = vst.msk [vmem:[#allocation3 + $0x130] sm:$0x3] %vm222, 0.0
      %314 = vst.msk [vmem:[#allocation3 + $0x138] sm:$0xff] %vm219, 0.0
      %315 = vst.msk [vmem:[#allocation3 + $0x140] sm:$0xff] %vm219, 0.0
      %316 = vst.msk [vmem:[#allocation3 + $0x148] sm:$0x3] %vm222, 0.0
      %317 = vst.msk [vmem:[#allocation3 + $0x150] sm:$0xff] %vm219, 0.0
      %318 = vst.msk [vmem:[#allocation3 + $0x158] sm:$0xff] %vm219, 0.0
      %319 = vst.msk [vmem:[#allocation3 + $0x160] sm:$0x3] %vm222, 0.0
      %320 = vst.msk [vmem:[#allocation3 + $0x168] sm:$0xff] %vm219, 0.0
      %321 = vst.msk [vmem:[#allocation3 + $0x170] sm:$0xff] %vm219, 0.0
      %322 = vst.msk [vmem:[#allocation3 + $0x178] sm:$0x3] %vm222, 0.0
      %323 = vst.msk [vmem:[#allocation3 + $0x180] sm:$0xff] %vm219, 0.0
      %324 = vst.msk [vmem:[#allocation3 + $0x188] sm:$0xff] %vm219, 0.0
      %325 = vst.msk [vmem:[#allocation3 + $0x190] sm:$0x3] %vm222, 0.0
      %326 = vst.msk [vmem:[#allocation3 + $0x198] sm:$0xff] %vm219, 0.0
      %327 = vst.msk [vmem:[#allocation3 + $0x1a0] sm:$0xff] %vm219, 0.0
      %328 = vst.msk [vmem:[#allocation3 + $0x1a8] sm:$0x3] %vm222, 0.0
      %v329 = vld [vmem:[%s207] sm:$0xff]
      %v330 = vld [vmem:[%s207 + $0x8] sm:$0xff]
      %v331 = vld [vmem:[%s207 + $0x10] sm:$0xff]
      %v332 = vld [vmem:[%s207 + $0x18] sm:$0xff]
      %v333 = vld [vmem:[%s207 + $0x20] sm:$0xff]
      %v334 = vld [vmem:[%s207 + $0x28] sm:$0xff]
      %v335 = vld [vmem:[%s207 + $0x30] sm:$0xff]
      %v336 = vld [vmem:[%s207 + $0x38] sm:$0xff]
      %v337 = vld [vmem:[%s207 + $0x40] sm:$0xff]
      %v338 = vld [vmem:[%s207 + $0x48] sm:$0xff]
      %v339 = vld [vmem:[%s207 + $0x50] sm:$0xff]
      %v340 = vld [vmem:[%s207 + $0x58] sm:$0xff]
      %v341 = vld [vmem:[%s207 + $0x60] sm:$0xff]
      %v342 = vld [vmem:[%s207 + $0x68] sm:$0xff]
      %v343 = vld [vmem:[%s207 + $0x70] sm:$0xff]
      %v344 = vld [vmem:[%s207 + $0x78] sm:$0xff]
      %v345 = vld [vmem:[%s207 + $0x80] sm:$0xff]
      %v346 = vld [vmem:[%s207 + $0x88] sm:$0xff]
      %v347 = vld [vmem:[%s207 + $0x90] sm:$0xff]
      %v348 = vld [vmem:[%s207 + $0x98] sm:$0xff]
      %v349 = vld [vmem:[%s207 + $0xa0] sm:$0xff]
      %v350 = vld [vmem:[%s207 + $0xa8] sm:$0xff]
      %v351 = vld [vmem:[%s207 + $0xb0] sm:$0xff]
      %v352 = vld [vmem:[%s207 + $0xb8] sm:$0xff]
      %v353 = vld [vmem:[%s207 + $0xc0] sm:$0xff]
      %v354 = vld [vmem:[%s207 + $0xc8] sm:$0xff]
      %v355 = vld [vmem:[%s207 + $0xd0] sm:$0xff]
      %v356 = vld [vmem:[%s207 + $0xd8] sm:$0xff]
      %v357 = vld [vmem:[%s207 + $0xe0] sm:$0xff]
      %v358 = vld [vmem:[%s207 + $0xe8] sm:$0xff]
      %v359 = vld [vmem:[%s207 + $0xf0] sm:$0xff]
      %v360 = vld [vmem:[%s207 + $0xf8] sm:$0xff]
      %s361 = scalar_lea.vmem [#allocation2], 24
      %362 = vst.msk [vmem:[%s361 + $0x1] sm:$0xff] %vm219, %v329
      %363 = vst.msk [vmem:[%s361 + $0x9] sm:$0xff] %vm219, %v330
      %364 = vst.msk [vmem:[%s361 + $0x19] sm:$0xff] %vm219, %v331
      %365 = vst.msk [vmem:[%s361 + $0x21] sm:$0xff] %vm219, %v332
      %366 = vst.msk [vmem:[%s361 + $0x31] sm:$0xff] %vm219, %v333
      %367 = vst.msk [vmem:[%s361 + $0x39] sm:$0xff] %vm219, %v334
      %368 = vst.msk [vmem:[%s361 + $0x49] sm:$0xff] %vm219, %v335
      %369 = vst.msk [vmem:[%s361 + $0x51] sm:$0xff] %vm219, %v336
      %370 = vst.msk [vmem:[%s361 + $0x61] sm:$0xff] %vm219, %v337
      %371 = vst.msk [vmem:[%s361 + $0x69] sm:$0xff] %vm219, %v338
      %372 = vst.msk [vmem:[%s361 + $0x79] sm:$0xff] %vm219, %v339
      %373 = vst.msk [vmem:[%s361 + $0x81] sm:$0xff] %vm219, %v340
      %374 = vst.msk [vmem:[%s361 + $0x91] sm:$0xff] %vm219, %v341
      %375 = vst.msk [vmem:[%s361 + $0x99] sm:$0xff] %vm219, %v342
      %376 = vst.msk [vmem:[%s361 + $0xa9] sm:$0xff] %vm219, %v343
      %377 = vst.msk [vmem:[%s361 + $0xb1] sm:$0xff] %vm219, %v344
      %378 = vst.msk [vmem:[%s361 + $0xc1] sm:$0xff] %vm219, %v345
      %379 = vst.msk [vmem:[%s361 + $0xc9] sm:$0xff] %vm219, %v346
      %380 = vst.msk [vmem:[%s361 + $0xd9] sm:$0xff] %vm219, %v347
      %381 = vst.msk [vmem:[%s361 + $0xe1] sm:$0xff] %vm219, %v348
      %382 = vst.msk [vmem:[%s361 + $0xf1] sm:$0xff] %vm219, %v349
      %383 = vst.msk [vmem:[%s361 + $0xf9] sm:$0xff] %vm219, %v350
      %384 = vst.msk [vmem:[%s361 + $0x109] sm:$0xff] %vm219, %v351
      %385 = vst.msk [vmem:[%s361 + $0x111] sm:$0xff] %vm219, %v352
      %386 = vst.msk [vmem:[%s361 + $0x121] sm:$0xff] %vm219, %v353
      %387 = vst.msk [vmem:[%s361 + $0x129] sm:$0xff] %vm219, %v354
      %388 = vst.msk [vmem:[%s361 + $0x139] sm:$0xff] %vm219, %v355
      %389 = vst.msk [vmem:[%s361 + $0x141] sm:$0xff] %vm219, %v356
      %390 = vst.msk [vmem:[%s361 + $0x151] sm:$0xff] %vm219, %v357
      %391 = vst.msk [vmem:[%s361 + $0x159] sm:$0xff] %vm219, %v358
      %392 = vst.msk [vmem:[%s361 + $0x169] sm:$0xff] %vm219, %v359
      %393 = vst.msk [vmem:[%s361 + $0x171] sm:$0xff] %vm219, %v360
      %v394 = vld [vmem:[%s1] sm:$0xf]
      %v395 = vld [vmem:[%s1 + $0x4] sm:$0xf]
      %v396 = vld [vmem:[%s1 + $0x8] sm:$0xf]
      %v397 = vld [vmem:[%s1 + $0xc] sm:$0xf]
      %v398 = vld [vmem:[%s1 + $0x10] sm:$0xf]
      %v399 = vld [vmem:[%s1 + $0x14] sm:$0xf]
      %v400 = vld [vmem:[%s1 + $0x18] sm:$0xf]
      %v401 = vld [vmem:[%s1 + $0x1c] sm:$0xf]
      %v402 = vld [vmem:[%s1 + $0x20] sm:$0xf]
      %v403 = vld [vmem:[%s1 + $0x24] sm:$0xf]
      %v404 = vld [vmem:[%s1 + $0x28] sm:$0xf]
      %v405 = vld [vmem:[%s1 + $0x2c] sm:$0xf]
      %v406 = vld [vmem:[%s1 + $0x30] sm:$0xf]
      %v407 = vld [vmem:[%s1 + $0x34] sm:$0xf]
      %v408 = vld [vmem:[%s1 + $0x38] sm:$0xf]
      %v409 = vld [vmem:[%s1 + $0x3c] sm:$0xf]
      %v410 = vld [vmem:[%s1 + $0x40] sm:$0xf]
      %v411 = vld [vmem:[%s1 + $0x44] sm:$0xf]
      %v412 = vld [vmem:[%s2] sm:$0xf]
      %v413 = vld [vmem:[%s2 + $0x4] sm:$0xf]
      %v414 = vld [vmem:[%s2 + $0x8] sm:$0xf]
      %v415 = vld [vmem:[%s2 + $0xc] sm:$0xf]
      %v416 = vld [vmem:[%s2 + $0x10] sm:$0xf]
      %v417 = vld [vmem:[%s2 + $0x14] sm:$0xf]
      %v418 = vld [vmem:[%s2 + $0x18] sm:$0xf]
      %v419 = vld [vmem:[%s2 + $0x1c] sm:$0xf]
      %v420 = vld [vmem:[%s2 + $0x20] sm:$0xf]
      %v421 = vld [vmem:[%s2 + $0x24] sm:$0xf]
      %v422 = vld [vmem:[%s2 + $0x28] sm:$0xf]
      %v423 = vld [vmem:[%s2 + $0x2c] sm:$0xf]
      %v424 = vld [vmem:[%s2 + $0x30] sm:$0xf]
      %v425 = vld [vmem:[%s2 + $0x34] sm:$0xf]
      %v426 = vld [vmem:[%s2 + $0x38] sm:$0xf]
      %v427 = vld [vmem:[%s2 + $0x3c] sm:$0xf]
      %v428 = vld [vmem:[%s2 + $0x40] sm:$0xf]
      %v429 = vld [vmem:[%s2 + $0x44] sm:$0xf]
      loop: start=0, step=1, limit=2
      $region37: #{_lambda_.7} parent=35 // loop_pre_header
        _
      $region38: #{_lambda_.7} parent=35 // loop_header
        %s431 = sphi 0, %s435
        %p432 = scmp.ge.s32.totalorder %s431, 2
      $region39: #{_lambda_.7} parent=35 // loop_header_branch
        %434 = sbr.rel (%p432) target = $region43
      $region40: #{_lambda_.7} parent=35 // loop_body
        %s436 = smul.u32 %s431, 8
        %s437 = smul.u32 %s436, 24
        %s438 = scalar_lea.vmem [#allocation2], %s437
        %v439 = vld [vmem:[%s438] sm:$0xff]
        %v440 = vld [vmem:[%s438 + $0x8] sm:$0xff]
        %v441 = vld [vmem:[%s438 + $0x10] sm:$0x3]
        %v442 = vld [vmem:[%s438 + $0x18] sm:$0xff]
        %v443 = vld [vmem:[%s438 + $0x20] sm:$0xff]
        %v444 = vld [vmem:[%s438 + $0x28] sm:$0x3]
        %v445 = vld [vmem:[%s438 + $0x30] sm:$0xff]
        %v446 = vld [vmem:[%s438 + $0x38] sm:$0xff]
        %v447 = vld [vmem:[%s438 + $0x40] sm:$0x3]
        %v448 = vld [vmem:[%s438 + $0x48] sm:$0xff]
        %v449 = vld [vmem:[%s438 + $0x50] sm:$0xff]
        %v450 = vld [vmem:[%s438 + $0x58] sm:$0x3]
        %v451 = vld [vmem:[%s438 + $0x60] sm:$0xff]
        %v452 = vld [vmem:[%s438 + $0x68] sm:$0xff]
        %v453 = vld [vmem:[%s438 + $0x70] sm:$0x3]
        %v454 = vld [vmem:[%s438 + $0x78] sm:$0xff]
        %v455 = vld [vmem:[%s438 + $0x80] sm:$0xff]
        %v456 = vld [vmem:[%s438 + $0x88] sm:$0x3]
        %v457 = vld [vmem:[%s438 + $0x90] sm:$0xff]
        %v458 = vld [vmem:[%s438 + $0x98] sm:$0xff]
        %v459 = vld [vmem:[%s438 + $0xa0] sm:$0x3]
        %v460 = vld [vmem:[%s438 + $0xa8] sm:$0xff]
        %v461 = vld [vmem:[%s438 + $0xb0] sm:$0xff]
        %v462 = vld [vmem:[%s438 + $0xb8] sm:$0x3]
        %s463 = sadd.s32 %s436, 1
        %s464 = smul.u32 %s463, 24
        %s465 = scalar_lea.vmem [#allocation2], %s464
        %v466 = vld [vmem:[%s465] sm:$0xff]
        %v467 = vld [vmem:[%s465 + $0x8] sm:$0xff]
        %v468 = vld [vmem:[%s465 + $0x10] sm:$0x3]
        %v469 = vld [vmem:[%s465 + $0x18] sm:$0xff]
        %v470 = vld [vmem:[%s465 + $0x20] sm:$0xff]
        %v471 = vld [vmem:[%s465 + $0x28] sm:$0x3]
        %v472 = vld [vmem:[%s465 + $0x30] sm:$0xff]
        %v473 = vld [vmem:[%s465 + $0x38] sm:$0xff]
        %v474 = vld [vmem:[%s465 + $0x40] sm:$0x3]
        %v475 = vld [vmem:[%s465 + $0x48] sm:$0xff]
        %v476 = vld [vmem:[%s465 + $0x50] sm:$0xff]
        %v477 = vld [vmem:[%s465 + $0x58] sm:$0x3]
        %v478 = vld [vmem:[%s465 + $0x60] sm:$0xff]
        %v479 = vld [vmem:[%s465 + $0x68] sm:$0xff]
        %v480 = vld [vmem:[%s465 + $0x70] sm:$0x3]
        %v481 = vld [vmem:[%s465 + $0x78] sm:$0xff]
        %v482 = vld [vmem:[%s465 + $0x80] sm:$0xff]
        %v483 = vld [vmem:[%s465 + $0x88] sm:$0x3]
        %v484 = vld [vmem:[%s465 + $0x90] sm:$0xff]
        %v485 = vld [vmem:[%s465 + $0x98] sm:$0xff]
        %v486 = vld [vmem:[%s465 + $0xa0] sm:$0x3]
        %v487 = vld [vmem:[%s465 + $0xa8] sm:$0xff]
        %v488 = vld [vmem:[%s465 + $0xb0] sm:$0xff]
        %v489 = vld [vmem:[%s465 + $0xb8] sm:$0x3]
        %s490 = sadd.s32 %s436, 2
        %s491 = smul.u32 %s490, 24
        %s492 = scalar_lea.vmem [#allocation2], %s491
        %v493 = vld [vmem:[%s492] sm:$0xff]
        %v494 = vld [vmem:[%s492 + $0x8] sm:$0xff]
        %v495 = vld [vmem:[%s492 + $0x10] sm:$0x3]
        %v496 = vld [vmem:[%s492 + $0x18] sm:$0xff]
        %v497 = vld [vmem:[%s492 + $0x20] sm:$0xff]
        %v498 = vld [vmem:[%s492 + $0x28] sm:$0x3]
        %v499 = vld [vmem:[%s492 + $0x30] sm:$0xff]
        %v500 = vld [vmem:[%s492 + $0x38] sm:$0xff]
        %v501 = vld [vmem:[%s492 + $0x40] sm:$0x3]
        %v502 = vld [vmem:[%s492 + $0x48] sm:$0xff]
        %v503 = vld [vmem:[%s492 + $0x50] sm:$0xff]
        %v504 = vld [vmem:[%s492 + $0x58] sm:$0x3]
        %v505 = vld [vmem:[%s492 + $0x60] sm:$0xff]
        %v506 = vld [vmem:[%s492 + $0x68] sm:$0xff]
        %v507 = vld [vmem:[%s492 + $0x70] sm:$0x3]
        %v508 = vld [vmem:[%s492 + $0x78] sm:$0xff]
        %v509 = vld [vmem:[%s492 + $0x80] sm:$0xff]
        %v510 = vld [vmem:[%s492 + $0x88] sm:$0x3]
        %v511 = vld [vmem:[%s492 + $0x90] sm:$0xff]
        %v512 = vld [vmem:[%s492 + $0x98] sm:$0xff]
        %v513 = vld [vmem:[%s492 + $0xa0] sm:$0x3]
        %v514 = vld [vmem:[%s492 + $0xa8] sm:$0xff]
        %v515 = vld [vmem:[%s492 + $0xb0] sm:$0xff]
        %v516 = vld [vmem:[%s492 + $0xb8] sm:$0x3]
        %vm541 = vcmask 1046528
        %v542 = vrot.slane %v439, 1
        %v543 = vrot.slane %v440, 1
        %v544 = vsel %vm541, %v542, %v543
        %v545 = vrot.slane %v441, 1
        %v546 = vsel %vm541, %v543, %v545
        %v547 = vrot.slane %v442, 1
        %v548 = vrot.slane %v443, 1
        %v549 = vsel %vm541, %v547, %v548
        %v550 = vrot.slane %v444, 1
        %v551 = vsel %vm541, %v548, %v550
        %v552 = vrot.slane %v445, 1
        %v553 = vrot.slane %v446, 1
        %v554 = vsel %vm541, %v552, %v553
        %v555 = vrot.slane %v447, 1
        %v556 = vsel %vm541, %v553, %v555
        %v557 = vrot.slane %v448, 1
        %v558 = vrot.slane %v449, 1
        %v559 = vsel %vm541, %v557, %v558
        %v560 = vrot.slane %v450, 1
        %v561 = vsel %vm541, %v558, %v560
        %v562 = vrot.slane %v451, 1
        %v563 = vrot.slane %v452, 1
        %v564 = vsel %vm541, %v562, %v563
        %v565 = vrot.slane %v453, 1
        %v566 = vsel %vm541, %v563, %v565
        %v567 = vrot.slane %v454, 1
        %v568 = vrot.slane %v455, 1
        %v569 = vsel %vm541, %v567, %v568
        %v570 = vrot.slane %v456, 1
        %v571 = vsel %vm541, %v568, %v570
        %v572 = vrot.slane %v457, 1
        %v573 = vrot.slane %v458, 1
        %v574 = vsel %vm541, %v572, %v573
        %v575 = vrot.slane %v459, 1
        %v576 = vsel %vm541, %v573, %v575
        %v577 = vrot.slane %v460, 1
        %v578 = vrot.slane %v461, 1
        %v579 = vsel %vm541, %v577, %v578
        %v580 = vrot.slane %v462, 1
        %v581 = vsel %vm541, %v578, %v580
        %582 = vrot.lane.b32.xlu0 %v544, 16
        %v583 = vpop.permute.xlu0 %582
        %584 = vrot.lane.b32.xlu0 %v546, 16
        %v585 = vpop.permute.xlu0 %584
        %586 = vrot.lane.b32.xlu0 %v549, 16
        %v587 = vpop.permute.xlu0 %586
        %588 = vrot.lane.b32.xlu0 %v551, 16
        %v589 = vpop.permute.xlu0 %588
        %590 = vrot.lane.b32.xlu0 %v554, 16
        %v591 = vpop.permute.xlu0 %590
        %592 = vrot.lane.b32.xlu0 %v556, 16
        %v593 = vpop.permute.xlu0 %592
        %594 = vrot.lane.b32.xlu0 %v559, 16
        %v595 = vpop.permute.xlu0 %594
        %596 = vrot.lane.b32.xlu0 %v561, 16
        %v597 = vpop.permute.xlu0 %596
        %598 = vrot.lane.b32.xlu0 %v564, 16
        %v599 = vpop.permute.xlu0 %598
        %600 = vrot.lane.b32.xlu0 %v566, 16
        %v601 = vpop.permute.xlu0 %600
        %602 = vrot.lane.b32.xlu0 %v569, 16
        %v603 = vpop.permute.xlu0 %602
        %604 = vrot.lane.b32.xlu0 %v571, 16
        %v605 = vpop.permute.xlu0 %604
        %606 = vrot.lane.b32.xlu0 %v574, 16
        %v607 = vpop.permute.xlu0 %606
        %608 = vrot.lane.b32.xlu0 %v576, 16
        %v609 = vpop.permute.xlu0 %608
        %610 = vrot.lane.b32.xlu0 %v579, 16
        %v611 = vpop.permute.xlu0 %610
        %612 = vrot.lane.b32.xlu0 %v581, 16
        %v613 = vpop.permute.xlu0 %612
        %vm630 = vcmask 1045504
        %v631 = vrot.slane %v439, 2
        %v632 = vrot.slane %v440, 2
        %v633 = vsel %vm630, %v631, %v632
        %v634 = vrot.slane %v441, 2
        %v635 = vsel %vm630, %v632, %v634
        %v636 = vrot.slane %v442, 2
        %v637 = vrot.slane %v443, 2
        %v638 = vsel %vm630, %v636, %v637
        %v639 = vrot.slane %v444, 2
        %v640 = vsel %vm630, %v637, %v639
        %v641 = vrot.slane %v445, 2
        %v642 = vrot.slane %v446, 2
        %v643 = vsel %vm630, %v641, %v642
        %v644 = vrot.slane %v447, 2
        %v645 = vsel %vm630, %v642, %v644
        %v646 = vrot.slane %v448, 2
        %v647 = vrot.slane %v449, 2
        %v648 = vsel %vm630, %v646, %v647
        %v649 = vrot.slane %v450, 2
        %v650 = vsel %vm630, %v647, %v649
        %v651 = vrot.slane %v451, 2
        %v652 = vrot.slane %v452, 2
        %v653 = vsel %vm630, %v651, %v652
        %v654 = vrot.slane %v453, 2
        %v655 = vsel %vm630, %v652, %v654
        %v656 = vrot.slane %v454, 2
        %v657 = vrot.slane %v455, 2
        %v658 = vsel %vm630, %v656, %v657
        %v659 = vrot.slane %v456, 2
        %v660 = vsel %vm630, %v657, %v659
        %v661 = vrot.slane %v457, 2
        %v662 = vrot.slane %v458, 2
        %v663 = vsel %vm630, %v661, %v662
        %v664 = vrot.slane %v459, 2
        %v665 = vsel %vm630, %v662, %v664
        %v666 = vrot.slane %v460, 2
        %v667 = vrot.slane %v461, 2
        %v668 = vsel %vm630, %v666, %v667
        %v669 = vrot.slane %v462, 2
        %v670 = vsel %vm630, %v667, %v669
        %671 = vrot.lane.b32.xlu0 %v633, 32
        %v672 = vpop.permute.xlu0 %671
        %673 = vrot.lane.b32.xlu0 %v635, 32
        %v674 = vpop.permute.xlu0 %673
        %675 = vrot.lane.b32.xlu0 %v638, 32
        %v676 = vpop.permute.xlu0 %675
        %677 = vrot.lane.b32.xlu0 %v640, 32
        %v678 = vpop.permute.xlu0 %677
        %679 = vrot.lane.b32.xlu0 %v643, 32
        %v680 = vpop.permute.xlu0 %679
        %681 = vrot.lane.b32.xlu0 %v645, 32
        %v682 = vpop.permute.xlu0 %681
        %683 = vrot.lane.b32.xlu0 %v648, 32
        %v684 = vpop.permute.xlu0 %683
        %685 = vrot.lane.b32.xlu0 %v650, 32
        %v686 = vpop.permute.xlu0 %685
        %687 = vrot.lane.b32.xlu0 %v653, 32
        %v688 = vpop.permute.xlu0 %687
        %689 = vrot.lane.b32.xlu0 %v655, 32
        %v690 = vpop.permute.xlu0 %689
        %691 = vrot.lane.b32.xlu0 %v658, 32
        %v692 = vpop.permute.xlu0 %691
        %693 = vrot.lane.b32.xlu0 %v660, 32
        %v694 = vpop.permute.xlu0 %693
        %695 = vrot.lane.b32.xlu0 %v663, 32
        %v696 = vpop.permute.xlu0 %695
        %697 = vrot.lane.b32.xlu0 %v665, 32
        %v698 = vpop.permute.xlu0 %697
        %699 = vrot.lane.b32.xlu0 %v668, 32
        %v700 = vpop.permute.xlu0 %699
        %701 = vrot.lane.b32.xlu0 %v670, 32
        %v702 = vpop.permute.xlu0 %701
        %735 = vrot.lane.b32.xlu0 %v466, 48
        %v736 = vpop.permute.xlu0 %735
        %737 = vrot.lane.b32.xlu0 %v467, 48
        %v738 = vpop.permute.xlu0 %737
        %739 = vrot.lane.b32.xlu0 %v469, 48
        %v740 = vpop.permute.xlu0 %739
        %741 = vrot.lane.b32.xlu0 %v470, 48
        %v742 = vpop.permute.xlu0 %741
        %743 = vrot.lane.b32.xlu0 %v472, 48
        %v744 = vpop.permute.xlu0 %743
        %745 = vrot.lane.b32.xlu0 %v473, 48
        %v746 = vpop.permute.xlu0 %745
        %747 = vrot.lane.b32.xlu0 %v475, 48
        %v748 = vpop.permute.xlu0 %747
        %749 = vrot.lane.b32.xlu0 %v476, 48
        %v750 = vpop.permute.xlu0 %749
        %751 = vrot.lane.b32.xlu0 %v478, 48
        %v752 = vpop.permute.xlu0 %751
        %753 = vrot.lane.b32.xlu0 %v479, 48
        %v754 = vpop.permute.xlu0 %753
        %755 = vrot.lane.b32.xlu0 %v481, 48
        %v756 = vpop.permute.xlu0 %755
        %757 = vrot.lane.b32.xlu0 %v482, 48
        %v758 = vpop.permute.xlu0 %757
        %759 = vrot.lane.b32.xlu0 %v484, 48
        %v760 = vpop.permute.xlu0 %759
        %761 = vrot.lane.b32.xlu0 %v485, 48
        %v762 = vpop.permute.xlu0 %761
        %763 = vrot.lane.b32.xlu0 %v487, 48
        %v764 = vpop.permute.xlu0 %763
        %765 = vrot.lane.b32.xlu0 %v488, 48
        %v766 = vpop.permute.xlu0 %765
        %v791 = vrot.slane %v466, 1
        %v792 = vrot.slane %v467, 1
        %v793 = vsel %vm541, %v791, %v792
        %v794 = vrot.slane %v468, 1
        %v795 = vsel %vm541, %v792, %v794
        %v796 = vrot.slane %v469, 1
        %v797 = vrot.slane %v470, 1
        %v798 = vsel %vm541, %v796, %v797
        %v799 = vrot.slane %v471, 1
        %v800 = vsel %vm541, %v797, %v799
        %v801 = vrot.slane %v472, 1
        %v802 = vrot.slane %v473, 1
        %v803 = vsel %vm541, %v801, %v802
        %v804 = vrot.slane %v474, 1
        %v805 = vsel %vm541, %v802, %v804
        %v806 = vrot.slane %v475, 1
        %v807 = vrot.slane %v476, 1
        %v808 = vsel %vm541, %v806, %v807
        %v809 = vrot.slane %v477, 1
        %v810 = vsel %vm541, %v807, %v809
        %v811 = vrot.slane %v478, 1
        %v812 = vrot.slane %v479, 1
        %v813 = vsel %vm541, %v811, %v812
        %v814 = vrot.slane %v480, 1
        %v815 = vsel %vm541, %v812, %v814
        %v816 = vrot.slane %v481, 1
        %v817 = vrot.slane %v482, 1
        %v818 = vsel %vm541, %v816, %v817
        %v819 = vrot.slane %v483, 1
        %v820 = vsel %vm541, %v817, %v819
        %v821 = vrot.slane %v484, 1
        %v822 = vrot.slane %v485, 1
        %v823 = vsel %vm541, %v821, %v822
        %v824 = vrot.slane %v486, 1
        %v825 = vsel %vm541, %v822, %v824
        %v826 = vrot.slane %v487, 1
        %v827 = vrot.slane %v488, 1
        %v828 = vsel %vm541, %v826, %v827
        %v829 = vrot.slane %v489, 1
        %v830 = vsel %vm541, %v827, %v829
        %831 = vrot.lane.b32.xlu0 %v793, 64
        %v832 = vpop.permute.xlu0 %831
        %833 = vrot.lane.b32.xlu0 %v795, 64
        %v834 = vpop.permute.xlu0 %833
        %835 = vrot.lane.b32.xlu0 %v798, 64
        %v836 = vpop.permute.xlu0 %835
        %837 = vrot.lane.b32.xlu0 %v800, 64
        %v838 = vpop.permute.xlu0 %837
        %839 = vrot.lane.b32.xlu0 %v803, 64
        %v840 = vpop.permute.xlu0 %839
        %841 = vrot.lane.b32.xlu0 %v805, 64
        %v842 = vpop.permute.xlu0 %841
        %843 = vrot.lane.b32.xlu0 %v808, 64
        %v844 = vpop.permute.xlu0 %843
        %845 = vrot.lane.b32.xlu0 %v810, 64
        %v846 = vpop.permute.xlu0 %845
        %847 = vrot.lane.b32.xlu0 %v813, 64
        %v848 = vpop.permute.xlu0 %847
        %849 = vrot.lane.b32.xlu0 %v815, 64
        %v850 = vpop.permute.xlu0 %849
        %851 = vrot.lane.b32.xlu0 %v818, 64
        %v852 = vpop.permute.xlu0 %851
        %853 = vrot.lane.b32.xlu0 %v820, 64
        %v854 = vpop.permute.xlu0 %853
        %855 = vrot.lane.b32.xlu0 %v823, 64
        %v856 = vpop.permute.xlu0 %855
        %857 = vrot.lane.b32.xlu0 %v825, 64
        %v858 = vpop.permute.xlu0 %857
        %859 = vrot.lane.b32.xlu0 %v828, 64
        %v860 = vpop.permute.xlu0 %859
        %861 = vrot.lane.b32.xlu0 %v830, 64
        %v862 = vpop.permute.xlu0 %861
        %v879 = vrot.slane %v466, 2
        %v880 = vrot.slane %v467, 2
        %v881 = vsel %vm630, %v879, %v880
        %v882 = vrot.slane %v468, 2
        %v883 = vsel %vm630, %v880, %v882
        %v884 = vrot.slane %v469, 2
        %v885 = vrot.slane %v470, 2
        %v886 = vsel %vm630, %v884, %v885
        %v887 = vrot.slane %v471, 2
        %v888 = vsel %vm630, %v885, %v887
        %v889 = vrot.slane %v472, 2
        %v890 = vrot.slane %v473, 2
        %v891 = vsel %vm630, %v889, %v890
        %v892 = vrot.slane %v474, 2
        %v893 = vsel %vm630, %v890, %v892
        %v894 = vrot.slane %v475, 2
        %v895 = vrot.slane %v476, 2
        %v896 = vsel %vm630, %v894, %v895
        %v897 = vrot.slane %v477, 2
        %v898 = vsel %vm630, %v895, %v897
        %v899 = vrot.slane %v478, 2
        %v900 = vrot.slane %v479, 2
        %v901 = vsel %vm630, %v899, %v900
        %v902 = vrot.slane %v480, 2
        %v903 = vsel %vm630, %v900, %v902
        %v904 = vrot.slane %v481, 2
        %v905 = vrot.slane %v482, 2
        %v906 = vsel %vm630, %v904, %v905
        %v907 = vrot.slane %v483, 2
        %v908 = vsel %vm630, %v905, %v907
        %v909 = vrot.slane %v484, 2
        %v910 = vrot.slane %v485, 2
        %v911 = vsel %vm630, %v909, %v910
        %v912 = vrot.slane %v486, 2
        %v913 = vsel %vm630, %v910, %v912
        %v914 = vrot.slane %v487, 2
        %v915 = vrot.slane %v488, 2
        %v916 = vsel %vm630, %v914, %v915
        %v917 = vrot.slane %v489, 2
        %v918 = vsel %vm630, %v915, %v917
        %919 = vrot.lane.b32.xlu0 %v881, 80
        %v920 = vpop.permute.xlu0 %919
        %921 = vrot.lane.b32.xlu0 %v883, 80
        %v922 = vpop.permute.xlu0 %921
        %923 = vrot.lane.b32.xlu0 %v886, 80
        %v924 = vpop.permute.xlu0 %923
        %925 = vrot.lane.b32.xlu0 %v888, 80
        %v926 = vpop.permute.xlu0 %925
        %927 = vrot.lane.b32.xlu0 %v891, 80
        %v928 = vpop.permute.xlu0 %927
        %929 = vrot.lane.b32.xlu0 %v893, 80
        %v930 = vpop.permute.xlu0 %929
        %931 = vrot.lane.b32.xlu0 %v896, 80
        %v932 = vpop.permute.xlu0 %931
        %933 = vrot.lane.b32.xlu0 %v898, 80
        %v934 = vpop.permute.xlu0 %933
        %935 = vrot.lane.b32.xlu0 %v901, 80
        %v936 = vpop.permute.xlu0 %935
        %937 = vrot.lane.b32.xlu0 %v903, 80
        %v938 = vpop.permute.xlu0 %937
        %939 = vrot.lane.b32.xlu0 %v906, 80
        %v940 = vpop.permute.xlu0 %939
        %941 = vrot.lane.b32.xlu0 %v908, 80
        %v942 = vpop.permute.xlu0 %941
        %943 = vrot.lane.b32.xlu0 %v911, 80
        %v944 = vpop.permute.xlu0 %943
        %945 = vrot.lane.b32.xlu0 %v913, 80
        %v946 = vpop.permute.xlu0 %945
        %947 = vrot.lane.b32.xlu0 %v916, 80
        %v948 = vpop.permute.xlu0 %947
        %949 = vrot.lane.b32.xlu0 %v918, 80
        %v950 = vpop.permute.xlu0 %949
        %983 = vrot.lane.b32.xlu0 %v493, 96
        %v984 = vpop.permute.xlu0 %983
        %985 = vrot.lane.b32.xlu0 %v494, 96
        %v986 = vpop.permute.xlu0 %985
        %987 = vrot.lane.b32.xlu0 %v496, 96
        %v988 = vpop.permute.xlu0 %987
        %989 = vrot.lane.b32.xlu0 %v497, 96
        %v990 = vpop.permute.xlu0 %989
        %991 = vrot.lane.b32.xlu0 %v499, 96
        %v992 = vpop.permute.xlu0 %991
        %993 = vrot.lane.b32.xlu0 %v500, 96
        %v994 = vpop.permute.xlu0 %993
        %995 = vrot.lane.b32.xlu0 %v502, 96
        %v996 = vpop.permute.xlu0 %995
        %997 = vrot.lane.b32.xlu0 %v503, 96
        %v998 = vpop.permute.xlu0 %997
        %999 = vrot.lane.b32.xlu0 %v505, 96
        %v1000 = vpop.permute.xlu0 %999
        %1001 = vrot.lane.b32.xlu0 %v506, 96
        %v1002 = vpop.permute.xlu0 %1001
        %1003 = vrot.lane.b32.xlu0 %v508, 96
        %v1004 = vpop.permute.xlu0 %1003
        %1005 = vrot.lane.b32.xlu0 %v509, 96
        %v1006 = vpop.permute.xlu0 %1005
        %1007 = vrot.lane.b32.xlu0 %v511, 96
        %v1008 = vpop.permute.xlu0 %1007
        %1009 = vrot.lane.b32.xlu0 %v512, 96
        %v1010 = vpop.permute.xlu0 %1009
        %1011 = vrot.lane.b32.xlu0 %v514, 96
        %v1012 = vpop.permute.xlu0 %1011
        %1013 = vrot.lane.b32.xlu0 %v515, 96
        %v1014 = vpop.permute.xlu0 %1013
        %v1039 = vrot.slane %v493, 1
        %v1040 = vrot.slane %v494, 1
        %v1041 = vsel %vm541, %v1039, %v1040
        %v1042 = vrot.slane %v495, 1
        %v1043 = vsel %vm541, %v1040, %v1042
        %v1044 = vrot.slane %v496, 1
        %v1045 = vrot.slane %v497, 1
        %v1046 = vsel %vm541, %v1044, %v1045
        %v1047 = vrot.slane %v498, 1
        %v1048 = vsel %vm541, %v1045, %v1047
        %v1049 = vrot.slane %v499, 1
        %v1050 = vrot.slane %v500, 1
        %v1051 = vsel %vm541, %v1049, %v1050
        %v1052 = vrot.slane %v501, 1
        %v1053 = vsel %vm541, %v1050, %v1052
        %v1054 = vrot.slane %v502, 1
        %v1055 = vrot.slane %v503, 1
        %v1056 = vsel %vm541, %v1054, %v1055
        %v1057 = vrot.slane %v504, 1
        %v1058 = vsel %vm541, %v1055, %v1057
        %v1059 = vrot.slane %v505, 1
        %v1060 = vrot.slane %v506, 1
        %v1061 = vsel %vm541, %v1059, %v1060
        %v1062 = vrot.slane %v507, 1
        %v1063 = vsel %vm541, %v1060, %v1062
        %v1064 = vrot.slane %v508, 1
        %v1065 = vrot.slane %v509, 1
        %v1066 = vsel %vm541, %v1064, %v1065
        %v1067 = vrot.slane %v510, 1
        %v1068 = vsel %vm541, %v1065, %v1067
        %v1069 = vrot.slane %v511, 1
        %v1070 = vrot.slane %v512, 1
        %v1071 = vsel %vm541, %v1069, %v1070
        %v1072 = vrot.slane %v513, 1
        %v1073 = vsel %vm541, %v1070, %v1072
        %v1074 = vrot.slane %v514, 1
        %v1075 = vrot.slane %v515, 1
        %v1076 = vsel %vm541, %v1074, %v1075
        %v1077 = vrot.slane %v516, 1
        %v1078 = vsel %vm541, %v1075, %v1077
        %1079 = vrot.lane.b32.xlu0 %v1041, 112
        %v1080 = vpop.permute.xlu0 %1079
        %1081 = vrot.lane.b32.xlu0 %v1043, 112
        %v1082 = vpop.permute.xlu0 %1081
        %1083 = vrot.lane.b32.xlu0 %v1046, 112
        %v1084 = vpop.permute.xlu0 %1083
        %1085 = vrot.lane.b32.xlu0 %v1048, 112
        %v1086 = vpop.permute.xlu0 %1085
        %1087 = vrot.lane.b32.xlu0 %v1051, 112
        %v1088 = vpop.permute.xlu0 %1087
        %1089 = vrot.lane.b32.xlu0 %v1053, 112
        %v1090 = vpop.permute.xlu0 %1089
        %1091 = vrot.lane.b32.xlu0 %v1056, 112
        %v1092 = vpop.permute.xlu0 %1091
        %1093 = vrot.lane.b32.xlu0 %v1058, 112
        %v1094 = vpop.permute.xlu0 %1093
        %1095 = vrot.lane.b32.xlu0 %v1061, 112
        %v1096 = vpop.permute.xlu0 %1095
        %1097 = vrot.lane.b32.xlu0 %v1063, 112
        %v1098 = vpop.permute.xlu0 %1097
        %1099 = vrot.lane.b32.xlu0 %v1066, 112
        %v1100 = vpop.permute.xlu0 %1099
        %1101 = vrot.lane.b32.xlu0 %v1068, 112
        %v1102 = vpop.permute.xlu0 %1101
        %1103 = vrot.lane.b32.xlu0 %v1071, 112
        %v1104 = vpop.permute.xlu0 %1103
        %1105 = vrot.lane.b32.xlu0 %v1073, 112
        %v1106 = vpop.permute.xlu0 %1105
        %1107 = vrot.lane.b32.xlu0 %v1076, 112
        %v1108 = vpop.permute.xlu0 %1107
        %1109 = vrot.lane.b32.xlu0 %v1078, 112
        %v1110 = vpop.permute.xlu0 %1109
        %v1127 = vrot.slane %v493, 2
        %v1128 = vrot.slane %v494, 2
        %v1129 = vsel %vm630, %v1127, %v1128
        %v1130 = vrot.slane %v495, 2
        %v1131 = vsel %vm630, %v1128, %v1130
        %v1132 = vrot.slane %v496, 2
        %v1133 = vrot.slane %v497, 2
        %v1134 = vsel %vm630, %v1132, %v1133
        %v1135 = vrot.slane %v498, 2
        %v1136 = vsel %vm630, %v1133, %v1135
        %v1137 = vrot.slane %v499, 2
        %v1138 = vrot.slane %v500, 2
        %v1139 = vsel %vm630, %v1137, %v1138
        %v1140 = vrot.slane %v501, 2
        %v1141 = vsel %vm630, %v1138, %v1140
        %v1142 = vrot.slane %v502, 2
        %v1143 = vrot.slane %v503, 2
        %v1144 = vsel %vm630, %v1142, %v1143
        %v1145 = vrot.slane %v504, 2
        %v1146 = vsel %vm630, %v1143, %v1145
        %v1147 = vrot.slane %v505, 2
        %v1148 = vrot.slane %v506, 2
        %v1149 = vsel %vm630, %v1147, %v1148
        %v1150 = vrot.slane %v507, 2
        %v1151 = vsel %vm630, %v1148, %v1150
        %v1152 = vrot.slane %v508, 2
        %v1153 = vrot.slane %v509, 2
        %v1154 = vsel %vm630, %v1152, %v1153
        %v1155 = vrot.slane %v510, 2
        %v1156 = vsel %vm630, %v1153, %v1155
        %v1157 = vrot.slane %v511, 2
        %v1158 = vrot.slane %v512, 2
        %v1159 = vsel %vm630, %v1157, %v1158
        %v1160 = vrot.slane %v513, 2
        %v1161 = vsel %vm630, %v1158, %v1160
        %v1162 = vrot.slane %v514, 2
        %v1163 = vrot.slane %v515, 2
        %v1164 = vsel %vm630, %v1162, %v1163
        %v1165 = vrot.slane %v516, 2
        %v1166 = vsel %vm630, %v1163, %v1165
        %v1183 = vsel %vm219, %v439, %v583
        %v1184 = vsel %vm219, %v440, %v585
        %v1185 = vsel %vm219, %v442, %v587
        %v1186 = vsel %vm219, %v443, %v589
        %v1187 = vsel %vm219, %v445, %v591
        %v1188 = vsel %vm219, %v446, %v593
        %v1189 = vsel %vm219, %v448, %v595
        %v1190 = vsel %vm219, %v449, %v597
        %v1191 = vsel %vm219, %v451, %v599
        %v1192 = vsel %vm219, %v452, %v601
        %v1193 = vsel %vm219, %v454, %v603
        %v1194 = vsel %vm219, %v455, %v605
        %v1195 = vsel %vm219, %v457, %v607
        %v1196 = vsel %vm219, %v458, %v609
        %v1197 = vsel %vm219, %v460, %v611
        %v1198 = vsel %vm219, %v461, %v613
        %vm1199 = vcmask 261120
        %v1200 = vsel %vm1199, %v1183, %v672
        %v1201 = vsel %vm1199, %v1184, %v674
        %v1202 = vsel %vm1199, %v1185, %v676
        %v1203 = vsel %vm1199, %v1186, %v678
        %v1204 = vsel %vm1199, %v1187, %v680
        %v1205 = vsel %vm1199, %v1188, %v682
        %v1206 = vsel %vm1199, %v1189, %v684
        %v1207 = vsel %vm1199, %v1190, %v686
        %v1208 = vsel %vm1199, %v1191, %v688
        %v1209 = vsel %vm1199, %v1192, %v690
        %v1210 = vsel %vm1199, %v1193, %v692
        %v1211 = vsel %vm1199, %v1194, %v694
        %v1212 = vsel %vm1199, %v1195, %v696
        %v1213 = vsel %vm1199, %v1196, %v698
        %v1214 = vsel %vm1199, %v1197, %v700
        %v1215 = vsel %vm1199, %v1198, %v702
        %vm1216 = vcmask 392192
        %v1217 = vsel %vm1216, %v1200, %v736
        %v1218 = vsel %vm1216, %v1201, %v738
        %v1219 = vsel %vm1216, %v1202, %v740
        %v1220 = vsel %vm1216, %v1203, %v742
        %v1221 = vsel %vm1216, %v1204, %v744
        %v1222 = vsel %vm1216, %v1205, %v746
        %v1223 = vsel %vm1216, %v1206, %v748
        %v1224 = vsel %vm1216, %v1207, %v750
        %v1225 = vsel %vm1216, %v1208, %v752
        %v1226 = vsel %vm1216, %v1209, %v754
        %v1227 = vsel %vm1216, %v1210, %v756
        %v1228 = vsel %vm1216, %v1211, %v758
        %v1229 = vsel %vm1216, %v1212, %v760
        %v1230 = vsel %vm1216, %v1213, %v762
        %v1231 = vsel %vm1216, %v1214, %v764
        %v1232 = vsel %vm1216, %v1215, %v766
        %vm1233 = vcmask 523264
        %v1234 = vsel %vm1233, %v1217, %v832
        %v1235 = vsel %vm1233, %v1218, %v834
        %v1236 = vsel %vm1233, %v1219, %v836
        %v1237 = vsel %vm1233, %v1220, %v838
        %v1238 = vsel %vm1233, %v1221, %v840
        %v1239 = vsel %vm1233, %v1222, %v842
        %v1240 = vsel %vm1233, %v1223, %v844
        %v1241 = vsel %vm1233, %v1224, %v846
        %v1242 = vsel %vm1233, %v1225, %v848
        %v1243 = vsel %vm1233, %v1226, %v850
        %v1244 = vsel %vm1233, %v1227, %v852
        %v1245 = vsel %vm1233, %v1228, %v854
        %v1246 = vsel %vm1233, %v1229, %v856
        %v1247 = vsel %vm1233, %v1230, %v858
        %v1248 = vsel %vm1233, %v1231, %v860
        %v1249 = vsel %vm1233, %v1232, %v862
        %vm1250 = vcmask 654336
        %v1251 = vsel %vm1250, %v1234, %v920
        %v1252 = vsel %vm1250, %v1235, %v922
        %v1253 = vsel %vm1250, %v1236, %v924
        %v1254 = vsel %vm1250, %v1237, %v926
        %v1255 = vsel %vm1250, %v1238, %v928
        %v1256 = vsel %vm1250, %v1239, %v930
        %v1257 = vsel %vm1250, %v1240, %v932
        %v1258 = vsel %vm1250, %v1241, %v934
        %v1259 = vsel %vm1250, %v1242, %v936
        %v1260 = vsel %vm1250, %v1243, %v938
        %v1261 = vsel %vm1250, %v1244, %v940
        %v1262 = vsel %vm1250, %v1245, %v942
        %v1263 = vsel %vm1250, %v1246, %v944
        %v1264 = vsel %vm1250, %v1247, %v946
        %v1265 = vsel %vm1250, %v1248, %v948
        %v1266 = vsel %vm1250, %v1249, %v950
        %vm1267 = vcmask 785408
        %v1268 = vsel %vm1267, %v1251, %v984
        %v1269 = vsel %vm1267, %v1252, %v986
        %v1270 = vsel %vm1267, %v1253, %v988
        %v1271 = vsel %vm1267, %v1254, %v990
        %v1272 = vsel %vm1267, %v1255, %v992
        %v1273 = vsel %vm1267, %v1256, %v994
        %v1274 = vsel %vm1267, %v1257, %v996
        %v1275 = vsel %vm1267, %v1258, %v998
        %v1276 = vsel %vm1267, %v1259, %v1000
        %v1277 = vsel %vm1267, %v1260, %v1002
        %v1278 = vsel %vm1267, %v1261, %v1004
        %v1279 = vsel %vm1267, %v1262, %v1006
        %v1280 = vsel %vm1267, %v1263, %v1008
        %v1281 = vsel %vm1267, %v1264, %v1010
        %v1282 = vsel %vm1267, %v1265, %v1012
        %v1283 = vsel %vm1267, %v1266, %v1014
        %vm1284 = vcmask 916480
        %v1285 = vsel %vm1284, %v1268, %v1080
        %v1286 = vsel %vm1284, %v1269, %v1082
        %v1287 = vsel %vm1284, %v1270, %v1084
        %v1288 = vsel %vm1284, %v1271, %v1086
        %v1289 = vsel %vm1284, %v1272, %v1088
        %v1290 = vsel %vm1284, %v1273, %v1090
        %v1291 = vsel %vm1284, %v1274, %v1092
        %v1292 = vsel %vm1284, %v1275, %v1094
        %v1293 = vsel %vm1284, %v1276, %v1096
        %v1294 = vsel %vm1284, %v1277, %v1098
        %v1295 = vsel %vm1284, %v1278, %v1100
        %v1296 = vsel %vm1284, %v1279, %v1102
        %v1297 = vsel %vm1284, %v1280, %v1104
        %v1298 = vsel %vm1284, %v1281, %v1106
        %v1299 = vsel %vm1284, %v1282, %v1108
        %v1300 = vsel %vm1284, %v1283, %v1110
        %v1301 = vpack.c.bf16 %v1286, %v1285
        %v1302 = vpack.c.bf16 %v1131, %v1129
        %v1303 = vpack.c.bf16 %v1288, %v1287
        %v1304 = vpack.c.bf16 %v1136, %v1134
        %v1305 = vpack.c.bf16 %v1290, %v1289
        %v1306 = vpack.c.bf16 %v1141, %v1139
        %v1307 = vpack.c.bf16 %v1292, %v1291
        %v1308 = vpack.c.bf16 %v1146, %v1144
        %v1309 = vpack.c.bf16 %v1294, %v1293
        %v1310 = vpack.c.bf16 %v1151, %v1149
        %v1311 = vpack.c.bf16 %v1296, %v1295
        %v1312 = vpack.c.bf16 %v1156, %v1154
        %v1313 = vpack.c.bf16 %v1298, %v1297
        %v1314 = vpack.c.bf16 %v1161, %v1159
        %v1315 = vpack.c.bf16 %v1300, %v1299
        %v1316 = vpack.c.bf16 %v1166, %v1164
        %v1335 = vunpack.c.l.b16 %v394
        %v1336 = vunpack.c.l.b16 %v395
        %v1337 = vunpack.c.l.b16 %v396
        %v1338 = vunpack.c.l.b16 %v397
        %v1339 = vunpack.c.l.b16 %v398
        %v1340 = vunpack.c.l.b16 %v399
        %v1341 = vunpack.c.l.b16 %v400
        %v1342 = vunpack.c.l.b16 %v401
        %v1343 = vunpack.c.l.b16 %v402
        %v1344 = vunpack.c.l.b16 %v403
        %v1345 = vunpack.c.l.b16 %v404
        %v1346 = vunpack.c.l.b16 %v405
        %v1347 = vunpack.c.l.b16 %v406
        %v1348 = vunpack.c.l.b16 %v407
        %v1349 = vunpack.c.l.b16 %v408
        %v1350 = vunpack.c.l.b16 %v409
        %v1351 = vunpack.c.l.b16 %v410
        %v1352 = vunpack.c.l.b16 %v411
        %v1353 = vpack.c.b16 %v1336, %v1335
        %v1354 = vpack.c.b16 %v1338, %v1337
        %v1355 = vpack.c.b16 %v1340, %v1339
        %v1356 = vpack.c.b16 %v1342, %v1341
        %v1357 = vpack.c.b16 %v1344, %v1343
        %v1358 = vpack.c.b16 %v1346, %v1345
        %v1359 = vpack.c.b16 %v1348, %v1347
        %v1360 = vpack.c.b16 %v1350, %v1349
        %v1361 = vpack.c.b16 %v1352, %v1351
        %v1372 = vsel %vm219, %v1302, 0
        %v1375 = vsel %vm219, %v1304, 0
        %v1378 = vsel %vm219, %v1306, 0
        %v1381 = vsel %vm219, %v1308, 0
        %v1384 = vsel %vm219, %v1310, 0
        %v1387 = vsel %vm219, %v1312, 0
        %v1390 = vsel %vm219, %v1314, 0
        %v1393 = vsel %vm219, %v1316, 0
        %1395 = vmatprep.subr.bf16.mxu0 0
        %1396 = vmatpush1.bf16.msra.mxu0 %v1360
        %1397 = vmatprep.subr.bf16.mxu0 0
        %1398 = vmatpush1.bf16.msra.mxu0 %v1359
        %1399 = vmatprep.subr.bf16.mxu0 0
        %1400 = vmatpush1.bf16.msra.mxu0 %v1358
        %1401 = vmatprep.subr.bf16.mxu0 0
        %1402 = vmatpush1.bf16.msra.mxu0 %v1357
        %1403 = vmatprep.subr.bf16.mxu0 0
        %1404 = vmatpush1.bf16.msra.mxu0 %v1356
        %1405 = vmatprep.subr.bf16.mxu0 0
        %1406 = vmatpush1.bf16.msra.mxu0 %v1355
        %1407 = vmatprep.subr.bf16.mxu0 0
        %1408 = vmatpush1.bf16.msra.mxu0 %v1354
        %1409 = vmatprep.subr.bf16.mxu0 0
        %1410 = vmatpush1.bf16.msra.mxu0 %v1353
        %1411 = vmatprep.subr.bf16.mxu0 0
        %1412 = vmatpush2.bf16.msra.mxu0 0
        %1413 = vmatprep.subr.bf16.mxu0 0
        %1414 = vmatpush2.bf16.msra.mxu0 0
        %1415 = vmatprep.subr.bf16.mxu0 0
        %1416 = vmatpush2.bf16.msra.mxu0 0
        %1417 = vmatprep.subr.bf16.mxu0 0
        %1418 = vmatpush2.bf16.msra.mxu0 0
        %1419 = vmatprep.subr.bf16.mxu0 0
        %1420 = vmatpush2.bf16.msra.mxu0 0
        %1421 = vmatprep.subr.bf16.mxu0 0
        %1422 = vmatpush2.bf16.msra.mxu0 0
        %1423 = vmatprep.subr.bf16.mxu0 0
        %1424 = vmatpush2.bf16.msra.mxu0 0
        %1425 = vmatprep.subr.bf16.mxu0 0
        %1426 = vmatpush2.bf16.msra.mxu0 %v1361
        %1427 = vmatprep.mubr.bf16.mxu0 %v1372
        %1428 = vmatmul.mubr.bf16.gmra.mxu0 %v1301
        %v1429 = vpop.f32.mrf.mxu0
        %v1430 = vadd.f32 0.0, %v1429
        %v1431 = vpop.f32.mrf.mxu0
        %v1432 = vpop.f32.mrf.mxu0
        %v1433 = vadd.f32 0.0, %v1432
        %v1434 = vpop.f32.mrf.mxu0
        %1435 = vmatprep.mubr.bf16.mxu0 %v1375
        %1436 = vmatmul.mubr.bf16.gmra.mxu0 %v1303
        %v1437 = vpop.f32.mrf.mxu0
        %v1438 = vadd.f32 0.0, %v1437
        %v1439 = vpop.f32.mrf.mxu0
        %v1440 = vpop.f32.mrf.mxu0
        %v1441 = vadd.f32 0.0, %v1440
        %v1442 = vpop.f32.mrf.mxu0
        %1443 = vmatprep.mubr.bf16.mxu0 %v1378
        %1444 = vmatmul.mubr.bf16.gmra.mxu0 %v1305
        %v1445 = vpop.f32.mrf.mxu0
        %v1446 = vadd.f32 0.0, %v1445
        %v1447 = vpop.f32.mrf.mxu0
        %v1448 = vpop.f32.mrf.mxu0
        %v1449 = vadd.f32 0.0, %v1448
        %v1450 = vpop.f32.mrf.mxu0
        %1451 = vmatprep.mubr.bf16.mxu0 %v1381
        %1452 = vmatmul.mubr.bf16.gmra.mxu0 %v1307
        %v1453 = vpop.f32.mrf.mxu0
        %v1454 = vadd.f32 0.0, %v1453
        %v1455 = vpop.f32.mrf.mxu0
        %v1456 = vpop.f32.mrf.mxu0
        %v1457 = vadd.f32 0.0, %v1456
        %v1458 = vpop.f32.mrf.mxu0
        %1459 = vmatprep.mubr.bf16.mxu0 %v1384
        %1460 = vmatmul.mubr.bf16.gmra.mxu0 %v1309
        %v1461 = vpop.f32.mrf.mxu0
        %v1462 = vadd.f32 0.0, %v1461
        %v1463 = vpop.f32.mrf.mxu0
        %v1464 = vpop.f32.mrf.mxu0
        %v1465 = vadd.f32 0.0, %v1464
        %v1466 = vpop.f32.mrf.mxu0
        %1467 = vmatprep.mubr.bf16.mxu0 %v1387
        %1468 = vmatmul.mubr.bf16.gmra.mxu0 %v1311
        %v1469 = vpop.f32.mrf.mxu0
        %v1470 = vadd.f32 0.0, %v1469
        %v1471 = vpop.f32.mrf.mxu0
        %v1472 = vpop.f32.mrf.mxu0
        %v1473 = vadd.f32 0.0, %v1472
        %v1474 = vpop.f32.mrf.mxu0
        %1475 = vmatprep.mubr.bf16.mxu0 %v1390
        %1476 = vmatmul.mubr.bf16.gmra.mxu0 %v1313
        %v1477 = vpop.f32.mrf.mxu0
        %v1478 = vadd.f32 0.0, %v1477
        %v1479 = vpop.f32.mrf.mxu0
        %v1480 = vpop.f32.mrf.mxu0
        %v1481 = vadd.f32 0.0, %v1480
        %v1482 = vpop.f32.mrf.mxu0
        %1483 = vmatprep.mubr.bf16.mxu0 %v1393
        %1484 = vmatmul.mubr.bf16.gmra.mxu0 %v1315
        %v1485 = vpop.f32.mrf.mxu0
        %v1486 = vadd.f32 0.0, %v1485
        %v1487 = vpop.f32.mrf.mxu0
        %v1488 = vpop.f32.mrf.mxu0
        %v1489 = vadd.f32 0.0, %v1488
        %v1490 = vpop.f32.mrf.mxu0
        %1491 = vdwg.mxu0
        %v1492 = vmax.f32 %v1430, 0.0
        %v1493 = vmax.f32 %v1433, 0.0
        %v1494 = vmax.f32 %v1438, 0.0
        %v1495 = vmax.f32 %v1441, 0.0
        %v1496 = vmax.f32 %v1446, 0.0
        %v1497 = vmax.f32 %v1449, 0.0
        %v1498 = vmax.f32 %v1454, 0.0
        %v1499 = vmax.f32 %v1457, 0.0
        %v1500 = vmax.f32 %v1462, 0.0
        %v1501 = vmax.f32 %v1465, 0.0
        %v1502 = vmax.f32 %v1470, 0.0
        %v1503 = vmax.f32 %v1473, 0.0
        %v1504 = vmax.f32 %v1478, 0.0
        %v1505 = vmax.f32 %v1481, 0.0
        %v1506 = vmax.f32 %v1486, 0.0
        %v1507 = vmax.f32 %v1489, 0.0
        %s1508 = scalar_lea.vmem [#allocation3], %s464
        %1509 = vst.msk [vmem:[%s1508 + $0x1] sm:$0xff] %vm219, %v1492
        %1510 = vst.msk [vmem:[%s1508 + $0x9] sm:$0xff] %vm219, %v1493
        %1511 = vst.msk [vmem:[%s1508 + $0x19] sm:$0xff] %vm219, %v1494
        %1512 = vst.msk [vmem:[%s1508 + $0x21] sm:$0xff] %vm219, %v1495
        %1513 = vst.msk [vmem:[%s1508 + $0x31] sm:$0xff] %vm219, %v1496
        %1514 = vst.msk [vmem:[%s1508 + $0x39] sm:$0xff] %vm219, %v1497
        %1515 = vst.msk [vmem:[%s1508 + $0x49] sm:$0xff] %vm219, %v1498
        %1516 = vst.msk [vmem:[%s1508 + $0x51] sm:$0xff] %vm219, %v1499
        %1517 = vst.msk [vmem:[%s1508 + $0x61] sm:$0xff] %vm219, %v1500
        %1518 = vst.msk [vmem:[%s1508 + $0x69] sm:$0xff] %vm219, %v1501
        %1519 = vst.msk [vmem:[%s1508 + $0x79] sm:$0xff] %vm219, %v1502
        %1520 = vst.msk [vmem:[%s1508 + $0x81] sm:$0xff] %vm219, %v1503
        %1521 = vst.msk [vmem:[%s1508 + $0x91] sm:$0xff] %vm219, %v1504
        %1522 = vst.msk [vmem:[%s1508 + $0x99] sm:$0xff] %vm219, %v1505
        %1523 = vst.msk [vmem:[%s1508 + $0xa9] sm:$0xff] %vm219, %v1506
        %1524 = vst.msk [vmem:[%s1508 + $0xb1] sm:$0xff] %vm219, %v1507
      $region41: #{_lambda_.7} parent=35 // loop_footer
        %s435 = sadd.s32 1, %s431
      $region42: #{_lambda_.7} parent=35 // loop_footer_branch
        %430 = sbr.rel target = $region38
      $region43: #{_lambda_.7} parent=35 // loop_exit
        _
      loop: start=0, step=1, limit=2
      $region44: #{_lambda_.7} parent=35 // loop_pre_header
        _
      $region45: #{_lambda_.7} parent=35 // loop_header
        %s1526 = sphi 0, %s1530
        %p1527 = scmp.ge.s32.totalorder %s1526, 2
      $region46: #{_lambda_.7} parent=35 // loop_header_branch
        %1529 = sbr.rel (%p1527) target = $region50
      $region47: #{_lambda_.7} parent=35 // loop_body
        %s1531 = smul.u32 %s1526, 8
        %s1532 = smul.u32 %s1531, 24
        %s1533 = scalar_lea.vmem [#allocation3], %s1532
        %v1534 = vld [vmem:[%s1533] sm:$0xff]
        %v1535 = vld [vmem:[%s1533 + $0x8] sm:$0xff]
        %v1536 = vld [vmem:[%s1533 + $0x10] sm:$0x3]
        %v1537 = vld [vmem:[%s1533 + $0x18] sm:$0xff]
        %v1538 = vld [vmem:[%s1533 + $0x20] sm:$0xff]
        %v1539 = vld [vmem:[%s1533 + $0x28] sm:$0x3]
        %v1540 = vld [vmem:[%s1533 + $0x30] sm:$0xff]
        %v1541 = vld [vmem:[%s1533 + $0x38] sm:$0xff]
        %v1542 = vld [vmem:[%s1533 + $0x40] sm:$0x3]
        %v1543 = vld [vmem:[%s1533 + $0x48] sm:$0xff]
        %v1544 = vld [vmem:[%s1533 + $0x50] sm:$0xff]
        %v1545 = vld [vmem:[%s1533 + $0x58] sm:$0x3]
        %v1546 = vld [vmem:[%s1533 + $0x60] sm:$0xff]
        %v1547 = vld [vmem:[%s1533 + $0x68] sm:$0xff]
        %v1548 = vld [vmem:[%s1533 + $0x70] sm:$0x3]
        %v1549 = vld [vmem:[%s1533 + $0x78] sm:$0xff]
        %v1550 = vld [vmem:[%s1533 + $0x80] sm:$0xff]
        %v1551 = vld [vmem:[%s1533 + $0x88] sm:$0x3]
        %v1552 = vld [vmem:[%s1533 + $0x90] sm:$0xff]
        %v1553 = vld [vmem:[%s1533 + $0x98] sm:$0xff]
        %v1554 = vld [vmem:[%s1533 + $0xa0] sm:$0x3]
        %v1555 = vld [vmem:[%s1533 + $0xa8] sm:$0xff]
        %v1556 = vld [vmem:[%s1533 + $0xb0] sm:$0xff]
        %v1557 = vld [vmem:[%s1533 + $0xb8] sm:$0x3]
        %s1558 = sadd.s32 %s1531, 1
        %s1559 = smul.u32 %s1558, 24
        %s1560 = scalar_lea.vmem [#allocation3], %s1559
        %v1561 = vld [vmem:[%s1560] sm:$0xff]
        %v1562 = vld [vmem:[%s1560 + $0x8] sm:$0xff]
        %v1563 = vld [vmem:[%s1560 + $0x10] sm:$0x3]
        %v1564 = vld [vmem:[%s1560 + $0x18] sm:$0xff]
        %v1565 = vld [vmem:[%s1560 + $0x20] sm:$0xff]
        %v1566 = vld [vmem:[%s1560 + $0x28] sm:$0x3]
        %v1567 = vld [vmem:[%s1560 + $0x30] sm:$0xff]
        %v1568 = vld [vmem:[%s1560 + $0x38] sm:$0xff]
        %v1569 = vld [vmem:[%s1560 + $0x40] sm:$0x3]
        %v1570 = vld [vmem:[%s1560 + $0x48] sm:$0xff]
        %v1571 = vld [vmem:[%s1560 + $0x50] sm:$0xff]
        %v1572 = vld [vmem:[%s1560 + $0x58] sm:$0x3]
        %v1573 = vld [vmem:[%s1560 + $0x60] sm:$0xff]
        %v1574 = vld [vmem:[%s1560 + $0x68] sm:$0xff]
        %v1575 = vld [vmem:[%s1560 + $0x70] sm:$0x3]
        %v1576 = vld [vmem:[%s1560 + $0x78] sm:$0xff]
        %v1577 = vld [vmem:[%s1560 + $0x80] sm:$0xff]
        %v1578 = vld [vmem:[%s1560 + $0x88] sm:$0x3]
        %v1579 = vld [vmem:[%s1560 + $0x90] sm:$0xff]
        %v1580 = vld [vmem:[%s1560 + $0x98] sm:$0xff]
        %v1581 = vld [vmem:[%s1560 + $0xa0] sm:$0x3]
        %v1582 = vld [vmem:[%s1560 + $0xa8] sm:$0xff]
        %v1583 = vld [vmem:[%s1560 + $0xb0] sm:$0xff]
        %v1584 = vld [vmem:[%s1560 + $0xb8] sm:$0x3]
        %s1585 = sadd.s32 %s1531, 2
        %s1586 = smul.u32 %s1585, 24
        %s1587 = scalar_lea.vmem [#allocation3], %s1586
        %v1588 = vld [vmem:[%s1587] sm:$0xff]
        %v1589 = vld [vmem:[%s1587 + $0x8] sm:$0xff]
        %v1590 = vld [vmem:[%s1587 + $0x10] sm:$0x3]
        %v1591 = vld [vmem:[%s1587 + $0x18] sm:$0xff]
        %v1592 = vld [vmem:[%s1587 + $0x20] sm:$0xff]
        %v1593 = vld [vmem:[%s1587 + $0x28] sm:$0x3]
        %v1594 = vld [vmem:[%s1587 + $0x30] sm:$0xff]
        %v1595 = vld [vmem:[%s1587 + $0x38] sm:$0xff]
        %v1596 = vld [vmem:[%s1587 + $0x40] sm:$0x3]
        %v1597 = vld [vmem:[%s1587 + $0x48] sm:$0xff]
        %v1598 = vld [vmem:[%s1587 + $0x50] sm:$0xff]
        %v1599 = vld [vmem:[%s1587 + $0x58] sm:$0x3]
        %v1600 = vld [vmem:[%s1587 + $0x60] sm:$0xff]
        %v1601 = vld [vmem:[%s1587 + $0x68] sm:$0xff]
        %v1602 = vld [vmem:[%s1587 + $0x70] sm:$0x3]
        %v1603 = vld [vmem:[%s1587 + $0x78] sm:$0xff]
        %v1604 = vld [vmem:[%s1587 + $0x80] sm:$0xff]
        %v1605 = vld [vmem:[%s1587 + $0x88] sm:$0x3]
        %v1606 = vld [vmem:[%s1587 + $0x90] sm:$0xff]
        %v1607 = vld [vmem:[%s1587 + $0x98] sm:$0xff]
        %v1608 = vld [vmem:[%s1587 + $0xa0] sm:$0x3]
        %v1609 = vld [vmem:[%s1587 + $0xa8] sm:$0xff]
        %v1610 = vld [vmem:[%s1587 + $0xb0] sm:$0xff]
        %v1611 = vld [vmem:[%s1587 + $0xb8] sm:$0x3]
        %vm1636 = vcmask 1046528
        %v1637 = vrot.slane %v1534, 1
        %v1638 = vrot.slane %v1535, 1
        %v1639 = vsel %vm1636, %v1637, %v1638
        %v1640 = vrot.slane %v1536, 1
        %v1641 = vsel %vm1636, %v1638, %v1640
        %v1642 = vrot.slane %v1537, 1
        %v1643 = vrot.slane %v1538, 1
        %v1644 = vsel %vm1636, %v1642, %v1643
        %v1645 = vrot.slane %v1539, 1
        %v1646 = vsel %vm1636, %v1643, %v1645
        %v1647 = vrot.slane %v1540, 1
        %v1648 = vrot.slane %v1541, 1
        %v1649 = vsel %vm1636, %v1647, %v1648
        %v1650 = vrot.slane %v1542, 1
        %v1651 = vsel %vm1636, %v1648, %v1650
        %v1652 = vrot.slane %v1543, 1
        %v1653 = vrot.slane %v1544, 1
        %v1654 = vsel %vm1636, %v1652, %v1653
        %v1655 = vrot.slane %v1545, 1
        %v1656 = vsel %vm1636, %v1653, %v1655
        %v1657 = vrot.slane %v1546, 1
        %v1658 = vrot.slane %v1547, 1
        %v1659 = vsel %vm1636, %v1657, %v1658
        %v1660 = vrot.slane %v1548, 1
        %v1661 = vsel %vm1636, %v1658, %v1660
        %v1662 = vrot.slane %v1549, 1
        %v1663 = vrot.slane %v1550, 1
        %v1664 = vsel %vm1636, %v1662, %v1663
        %v1665 = vrot.slane %v1551, 1
        %v1666 = vsel %vm1636, %v1663, %v1665
        %v1667 = vrot.slane %v1552, 1
        %v1668 = vrot.slane %v1553, 1
        %v1669 = vsel %vm1636, %v1667, %v1668
        %v1670 = vrot.slane %v1554, 1
        %v1671 = vsel %vm1636, %v1668, %v1670
        %v1672 = vrot.slane %v1555, 1
        %v1673 = vrot.slane %v1556, 1
        %v1674 = vsel %vm1636, %v1672, %v1673
        %v1675 = vrot.slane %v1557, 1
        %v1676 = vsel %vm1636, %v1673, %v1675
        %1677 = vrot.lane.b32.xlu0 %v1639, 16
        %v1678 = vpop.permute.xlu0 %1677
        %1679 = vrot.lane.b32.xlu0 %v1641, 16
        %v1680 = vpop.permute.xlu0 %1679
        %1681 = vrot.lane.b32.xlu0 %v1644, 16
        %v1682 = vpop.permute.xlu0 %1681
        %1683 = vrot.lane.b32.xlu0 %v1646, 16
        %v1684 = vpop.permute.xlu0 %1683
        %1685 = vrot.lane.b32.xlu0 %v1649, 16
        %v1686 = vpop.permute.xlu0 %1685
        %1687 = vrot.lane.b32.xlu0 %v1651, 16
        %v1688 = vpop.permute.xlu0 %1687
        %1689 = vrot.lane.b32.xlu0 %v1654, 16
        %v1690 = vpop.permute.xlu0 %1689
        %1691 = vrot.lane.b32.xlu0 %v1656, 16
        %v1692 = vpop.permute.xlu0 %1691
        %1693 = vrot.lane.b32.xlu0 %v1659, 16
        %v1694 = vpop.permute.xlu0 %1693
        %1695 = vrot.lane.b32.xlu0 %v1661, 16
        %v1696 = vpop.permute.xlu0 %1695
        %1697 = vrot.lane.b32.xlu0 %v1664, 16
        %v1698 = vpop.permute.xlu0 %1697
        %1699 = vrot.lane.b32.xlu0 %v1666, 16
        %v1700 = vpop.permute.xlu0 %1699
        %1701 = vrot.lane.b32.xlu0 %v1669, 16
        %v1702 = vpop.permute.xlu0 %1701
        %1703 = vrot.lane.b32.xlu0 %v1671, 16
        %v1704 = vpop.permute.xlu0 %1703
        %1705 = vrot.lane.b32.xlu0 %v1674, 16
        %v1706 = vpop.permute.xlu0 %1705
        %1707 = vrot.lane.b32.xlu0 %v1676, 16
        %v1708 = vpop.permute.xlu0 %1707
        %vm1725 = vcmask 1045504
        %v1726 = vrot.slane %v1534, 2
        %v1727 = vrot.slane %v1535, 2
        %v1728 = vsel %vm1725, %v1726, %v1727
        %v1729 = vrot.slane %v1536, 2
        %v1730 = vsel %vm1725, %v1727, %v1729
        %v1731 = vrot.slane %v1537, 2
        %v1732 = vrot.slane %v1538, 2
        %v1733 = vsel %vm1725, %v1731, %v1732
        %v1734 = vrot.slane %v1539, 2
        %v1735 = vsel %vm1725, %v1732, %v1734
        %v1736 = vrot.slane %v1540, 2
        %v1737 = vrot.slane %v1541, 2
        %v1738 = vsel %vm1725, %v1736, %v1737
        %v1739 = vrot.slane %v1542, 2
        %v1740 = vsel %vm1725, %v1737, %v1739
        %v1741 = vrot.slane %v1543, 2
        %v1742 = vrot.slane %v1544, 2
        %v1743 = vsel %vm1725, %v1741, %v1742
        %v1744 = vrot.slane %v1545, 2
        %v1745 = vsel %vm1725, %v1742, %v1744
        %v1746 = vrot.slane %v1546, 2
        %v1747 = vrot.slane %v1547, 2
        %v1748 = vsel %vm1725, %v1746, %v1747
        %v1749 = vrot.slane %v1548, 2
        %v1750 = vsel %vm1725, %v1747, %v1749
        %v1751 = vrot.slane %v1549, 2
        %v1752 = vrot.slane %v1550, 2
        %v1753 = vsel %vm1725, %v1751, %v1752
        %v1754 = vrot.slane %v1551, 2
        %v1755 = vsel %vm1725, %v1752, %v1754
        %v1756 = vrot.slane %v1552, 2
        %v1757 = vrot.slane %v1553, 2
        %v1758 = vsel %vm1725, %v1756, %v1757
        %v1759 = vrot.slane %v1554, 2
        %v1760 = vsel %vm1725, %v1757, %v1759
        %v1761 = vrot.slane %v1555, 2
        %v1762 = vrot.slane %v1556, 2
        %v1763 = vsel %vm1725, %v1761, %v1762
        %v1764 = vrot.slane %v1557, 2
        %v1765 = vsel %vm1725, %v1762, %v1764
        %1766 = vrot.lane.b32.xlu0 %v1728, 32
        %v1767 = vpop.permute.xlu0 %1766
        %1768 = vrot.lane.b32.xlu0 %v1730, 32
        %v1769 = vpop.permute.xlu0 %1768
        %1770 = vrot.lane.b32.xlu0 %v1733, 32
        %v1771 = vpop.permute.xlu0 %1770
        %1772 = vrot.lane.b32.xlu0 %v1735, 32
        %v1773 = vpop.permute.xlu0 %1772
        %1774 = vrot.lane.b32.xlu0 %v1738, 32
        %v1775 = vpop.permute.xlu0 %1774
        %1776 = vrot.lane.b32.xlu0 %v1740, 32
        %v1777 = vpop.permute.xlu0 %1776
        %1778 = vrot.lane.b32.xlu0 %v1743, 32
        %v1779 = vpop.permute.xlu0 %1778
        %1780 = vrot.lane.b32.xlu0 %v1745, 32
        %v1781 = vpop.permute.xlu0 %1780
        %1782 = vrot.lane.b32.xlu0 %v1748, 32
        %v1783 = vpop.permute.xlu0 %1782
        %1784 = vrot.lane.b32.xlu0 %v1750, 32
        %v1785 = vpop.permute.xlu0 %1784
        %1786 = vrot.lane.b32.xlu0 %v1753, 32
        %v1787 = vpop.permute.xlu0 %1786
        %1788 = vrot.lane.b32.xlu0 %v1755, 32
        %v1789 = vpop.permute.xlu0 %1788
        %1790 = vrot.lane.b32.xlu0 %v1758, 32
        %v1791 = vpop.permute.xlu0 %1790
        %1792 = vrot.lane.b32.xlu0 %v1760, 32
        %v1793 = vpop.permute.xlu0 %1792
        %1794 = vrot.lane.b32.xlu0 %v1763, 32
        %v1795 = vpop.permute.xlu0 %1794
        %1796 = vrot.lane.b32.xlu0 %v1765, 32
        %v1797 = vpop.permute.xlu0 %1796
        %1830 = vrot.lane.b32.xlu0 %v1561, 48
        %v1831 = vpop.permute.xlu0 %1830
        %1832 = vrot.lane.b32.xlu0 %v1562, 48
        %v1833 = vpop.permute.xlu0 %1832
        %1834 = vrot.lane.b32.xlu0 %v1564, 48
        %v1835 = vpop.permute.xlu0 %1834
        %1836 = vrot.lane.b32.xlu0 %v1565, 48
        %v1837 = vpop.permute.xlu0 %1836
        %1838 = vrot.lane.b32.xlu0 %v1567, 48
        %v1839 = vpop.permute.xlu0 %1838
        %1840 = vrot.lane.b32.xlu0 %v1568, 48
        %v1841 = vpop.permute.xlu0 %1840
        %1842 = vrot.lane.b32.xlu0 %v1570, 48
        %v1843 = vpop.permute.xlu0 %1842
        %1844 = vrot.lane.b32.xlu0 %v1571, 48
        %v1845 = vpop.permute.xlu0 %1844
        %1846 = vrot.lane.b32.xlu0 %v1573, 48
        %v1847 = vpop.permute.xlu0 %1846
        %1848 = vrot.lane.b32.xlu0 %v1574, 48
        %v1849 = vpop.permute.xlu0 %1848
        %1850 = vrot.lane.b32.xlu0 %v1576, 48
        %v1851 = vpop.permute.xlu0 %1850
        %1852 = vrot.lane.b32.xlu0 %v1577, 48
        %v1853 = vpop.permute.xlu0 %1852
        %1854 = vrot.lane.b32.xlu0 %v1579, 48
        %v1855 = vpop.permute.xlu0 %1854
        %1856 = vrot.lane.b32.xlu0 %v1580, 48
        %v1857 = vpop.permute.xlu0 %1856
        %1858 = vrot.lane.b32.xlu0 %v1582, 48
        %v1859 = vpop.permute.xlu0 %1858
        %1860 = vrot.lane.b32.xlu0 %v1583, 48
        %v1861 = vpop.permute.xlu0 %1860
        %v1886 = vrot.slane %v1561, 1
        %v1887 = vrot.slane %v1562, 1
        %v1888 = vsel %vm1636, %v1886, %v1887
        %v1889 = vrot.slane %v1563, 1
        %v1890 = vsel %vm1636, %v1887, %v1889
        %v1891 = vrot.slane %v1564, 1
        %v1892 = vrot.slane %v1565, 1
        %v1893 = vsel %vm1636, %v1891, %v1892
        %v1894 = vrot.slane %v1566, 1
        %v1895 = vsel %vm1636, %v1892, %v1894
        %v1896 = vrot.slane %v1567, 1
        %v1897 = vrot.slane %v1568, 1
        %v1898 = vsel %vm1636, %v1896, %v1897
        %v1899 = vrot.slane %v1569, 1
        %v1900 = vsel %vm1636, %v1897, %v1899
        %v1901 = vrot.slane %v1570, 1
        %v1902 = vrot.slane %v1571, 1
        %v1903 = vsel %vm1636, %v1901, %v1902
        %v1904 = vrot.slane %v1572, 1
        %v1905 = vsel %vm1636, %v1902, %v1904
        %v1906 = vrot.slane %v1573, 1
        %v1907 = vrot.slane %v1574, 1
        %v1908 = vsel %vm1636, %v1906, %v1907
        %v1909 = vrot.slane %v1575, 1
        %v1910 = vsel %vm1636, %v1907, %v1909
        %v1911 = vrot.slane %v1576, 1
        %v1912 = vrot.slane %v1577, 1
        %v1913 = vsel %vm1636, %v1911, %v1912
        %v1914 = vrot.slane %v1578, 1
        %v1915 = vsel %vm1636, %v1912, %v1914
        %v1916 = vrot.slane %v1579, 1
        %v1917 = vrot.slane %v1580, 1
        %v1918 = vsel %vm1636, %v1916, %v1917
        %v1919 = vrot.slane %v1581, 1
        %v1920 = vsel %vm1636, %v1917, %v1919
        %v1921 = vrot.slane %v1582, 1
        %v1922 = vrot.slane %v1583, 1
        %v1923 = vsel %vm1636, %v1921, %v1922
        %v1924 = vrot.slane %v1584, 1
        %v1925 = vsel %vm1636, %v1922, %v1924
        %1926 = vrot.lane.b32.xlu0 %v1888, 64
        %v1927 = vpop.permute.xlu0 %1926
        %1928 = vrot.lane.b32.xlu0 %v1890, 64
        %v1929 = vpop.permute.xlu0 %1928
        %1930 = vrot.lane.b32.xlu0 %v1893, 64
        %v1931 = vpop.permute.xlu0 %1930
        %1932 = vrot.lane.b32.xlu0 %v1895, 64
        %v1933 = vpop.permute.xlu0 %1932
        %1934 = vrot.lane.b32.xlu0 %v1898, 64
        %v1935 = vpop.permute.xlu0 %1934
        %1936 = vrot.lane.b32.xlu0 %v1900, 64
        %v1937 = vpop.permute.xlu0 %1936
        %1938 = vrot.lane.b32.xlu0 %v1903, 64
        %v1939 = vpop.permute.xlu0 %1938
        %1940 = vrot.lane.b32.xlu0 %v1905, 64
        %v1941 = vpop.permute.xlu0 %1940
        %1942 = vrot.lane.b32.xlu0 %v1908, 64
        %v1943 = vpop.permute.xlu0 %1942
        %1944 = vrot.lane.b32.xlu0 %v1910, 64
        %v1945 = vpop.permute.xlu0 %1944
        %1946 = vrot.lane.b32.xlu0 %v1913, 64
        %v1947 = vpop.permute.xlu0 %1946
        %1948 = vrot.lane.b32.xlu0 %v1915, 64
        %v1949 = vpop.permute.xlu0 %1948
        %1950 = vrot.lane.b32.xlu0 %v1918, 64
        %v1951 = vpop.permute.xlu0 %1950
        %1952 = vrot.lane.b32.xlu0 %v1920, 64
        %v1953 = vpop.permute.xlu0 %1952
        %1954 = vrot.lane.b32.xlu0 %v1923, 64
        %v1955 = vpop.permute.xlu0 %1954
        %1956 = vrot.lane.b32.xlu0 %v1925, 64
        %v1957 = vpop.permute.xlu0 %1956
        %v1974 = vrot.slane %v1561, 2
        %v1975 = vrot.slane %v1562, 2
        %v1976 = vsel %vm1725, %v1974, %v1975
        %v1977 = vrot.slane %v1563, 2
        %v1978 = vsel %vm1725, %v1975, %v1977
        %v1979 = vrot.slane %v1564, 2
        %v1980 = vrot.slane %v1565, 2
        %v1981 = vsel %vm1725, %v1979, %v1980
        %v1982 = vrot.slane %v1566, 2
        %v1983 = vsel %vm1725, %v1980, %v1982
        %v1984 = vrot.slane %v1567, 2
        %v1985 = vrot.slane %v1568, 2
        %v1986 = vsel %vm1725, %v1984, %v1985
        %v1987 = vrot.slane %v1569, 2
        %v1988 = vsel %vm1725, %v1985, %v1987
        %v1989 = vrot.slane %v1570, 2
        %v1990 = vrot.slane %v1571, 2
        %v1991 = vsel %vm1725, %v1989, %v1990
        %v1992 = vrot.slane %v1572, 2
        %v1993 = vsel %vm1725, %v1990, %v1992
        %v1994 = vrot.slane %v1573, 2
        %v1995 = vrot.slane %v1574, 2
        %v1996 = vsel %vm1725, %v1994, %v1995
        %v1997 = vrot.slane %v1575, 2
        %v1998 = vsel %vm1725, %v1995, %v1997
        %v1999 = vrot.slane %v1576, 2
        %v2000 = vrot.slane %v1577, 2
        %v2001 = vsel %vm1725, %v1999, %v2000
        %v2002 = vrot.slane %v1578, 2
        %v2003 = vsel %vm1725, %v2000, %v2002
        %v2004 = vrot.slane %v1579, 2
        %v2005 = vrot.slane %v1580, 2
        %v2006 = vsel %vm1725, %v2004, %v2005
        %v2007 = vrot.slane %v1581, 2
        %v2008 = vsel %vm1725, %v2005, %v2007
        %v2009 = vrot.slane %v1582, 2
        %v2010 = vrot.slane %v1583, 2
        %v2011 = vsel %vm1725, %v2009, %v2010
        %v2012 = vrot.slane %v1584, 2
        %v2013 = vsel %vm1725, %v2010, %v2012
        %2014 = vrot.lane.b32.xlu0 %v1976, 80
        %v2015 = vpop.permute.xlu0 %2014
        %2016 = vrot.lane.b32.xlu0 %v1978, 80
        %v2017 = vpop.permute.xlu0 %2016
        %2018 = vrot.lane.b32.xlu0 %v1981, 80
        %v2019 = vpop.permute.xlu0 %2018
        %2020 = vrot.lane.b32.xlu0 %v1983, 80
        %v2021 = vpop.permute.xlu0 %2020
        %2022 = vrot.lane.b32.xlu0 %v1986, 80
        %v2023 = vpop.permute.xlu0 %2022
        %2024 = vrot.lane.b32.xlu0 %v1988, 80
        %v2025 = vpop.permute.xlu0 %2024
        %2026 = vrot.lane.b32.xlu0 %v1991, 80
        %v2027 = vpop.permute.xlu0 %2026
        %2028 = vrot.lane.b32.xlu0 %v1993, 80
        %v2029 = vpop.permute.xlu0 %2028
        %2030 = vrot.lane.b32.xlu0 %v1996, 80
        %v2031 = vpop.permute.xlu0 %2030
        %2032 = vrot.lane.b32.xlu0 %v1998, 80
        %v2033 = vpop.permute.xlu0 %2032
        %2034 = vrot.lane.b32.xlu0 %v2001, 80
        %v2035 = vpop.permute.xlu0 %2034
        %2036 = vrot.lane.b32.xlu0 %v2003, 80
        %v2037 = vpop.permute.xlu0 %2036
        %2038 = vrot.lane.b32.xlu0 %v2006, 80
        %v2039 = vpop.permute.xlu0 %2038
        %2040 = vrot.lane.b32.xlu0 %v2008, 80
        %v2041 = vpop.permute.xlu0 %2040
        %2042 = vrot.lane.b32.xlu0 %v2011, 80
        %v2043 = vpop.permute.xlu0 %2042
        %2044 = vrot.lane.b32.xlu0 %v2013, 80
        %v2045 = vpop.permute.xlu0 %2044
        %2078 = vrot.lane.b32.xlu0 %v1588, 96
        %v2079 = vpop.permute.xlu0 %2078
        %2080 = vrot.lane.b32.xlu0 %v1589, 96
        %v2081 = vpop.permute.xlu0 %2080
        %2082 = vrot.lane.b32.xlu0 %v1591, 96
        %v2083 = vpop.permute.xlu0 %2082
        %2084 = vrot.lane.b32.xlu0 %v1592, 96
        %v2085 = vpop.permute.xlu0 %2084
        %2086 = vrot.lane.b32.xlu0 %v1594, 96
        %v2087 = vpop.permute.xlu0 %2086
        %2088 = vrot.lane.b32.xlu0 %v1595, 96
        %v2089 = vpop.permute.xlu0 %2088
        %2090 = vrot.lane.b32.xlu0 %v1597, 96
        %v2091 = vpop.permute.xlu0 %2090
        %2092 = vrot.lane.b32.xlu0 %v1598, 96
        %v2093 = vpop.permute.xlu0 %2092
        %2094 = vrot.lane.b32.xlu0 %v1600, 96
        %v2095 = vpop.permute.xlu0 %2094
        %2096 = vrot.lane.b32.xlu0 %v1601, 96
        %v2097 = vpop.permute.xlu0 %2096
        %2098 = vrot.lane.b32.xlu0 %v1603, 96
        %v2099 = vpop.permute.xlu0 %2098
        %2100 = vrot.lane.b32.xlu0 %v1604, 96
        %v2101 = vpop.permute.xlu0 %2100
        %2102 = vrot.lane.b32.xlu0 %v1606, 96
        %v2103 = vpop.permute.xlu0 %2102
        %2104 = vrot.lane.b32.xlu0 %v1607, 96
        %v2105 = vpop.permute.xlu0 %2104
        %2106 = vrot.lane.b32.xlu0 %v1609, 96
        %v2107 = vpop.permute.xlu0 %2106
        %2108 = vrot.lane.b32.xlu0 %v1610, 96
        %v2109 = vpop.permute.xlu0 %2108
        %v2134 = vrot.slane %v1588, 1
        %v2135 = vrot.slane %v1589, 1
        %v2136 = vsel %vm1636, %v2134, %v2135
        %v2137 = vrot.slane %v1590, 1
        %v2138 = vsel %vm1636, %v2135, %v2137
        %v2139 = vrot.slane %v1591, 1
        %v2140 = vrot.slane %v1592, 1
        %v2141 = vsel %vm1636, %v2139, %v2140
        %v2142 = vrot.slane %v1593, 1
        %v2143 = vsel %vm1636, %v2140, %v2142
        %v2144 = vrot.slane %v1594, 1
        %v2145 = vrot.slane %v1595, 1
        %v2146 = vsel %vm1636, %v2144, %v2145
        %v2147 = vrot.slane %v1596, 1
        %v2148 = vsel %vm1636, %v2145, %v2147
        %v2149 = vrot.slane %v1597, 1
        %v2150 = vrot.slane %v1598, 1
        %v2151 = vsel %vm1636, %v2149, %v2150
        %v2152 = vrot.slane %v1599, 1
        %v2153 = vsel %vm1636, %v2150, %v2152
        %v2154 = vrot.slane %v1600, 1
        %v2155 = vrot.slane %v1601, 1
        %v2156 = vsel %vm1636, %v2154, %v2155
        %v2157 = vrot.slane %v1602, 1
        %v2158 = vsel %vm1636, %v2155, %v2157
        %v2159 = vrot.slane %v1603, 1
        %v2160 = vrot.slane %v1604, 1
        %v2161 = vsel %vm1636, %v2159, %v2160
        %v2162 = vrot.slane %v1605, 1
        %v2163 = vsel %vm1636, %v2160, %v2162
        %v2164 = vrot.slane %v1606, 1
        %v2165 = vrot.slane %v1607, 1
        %v2166 = vsel %vm1636, %v2164, %v2165
        %v2167 = vrot.slane %v1608, 1
        %v2168 = vsel %vm1636, %v2165, %v2167
        %v2169 = vrot.slane %v1609, 1
        %v2170 = vrot.slane %v1610, 1
        %v2171 = vsel %vm1636, %v2169, %v2170
        %v2172 = vrot.slane %v1611, 1
        %v2173 = vsel %vm1636, %v2170, %v2172
        %2174 = vrot.lane.b32.xlu0 %v2136, 112
        %v2175 = vpop.permute.xlu0 %2174
        %2176 = vrot.lane.b32.xlu0 %v2138, 112
        %v2177 = vpop.permute.xlu0 %2176
        %2178 = vrot.lane.b32.xlu0 %v2141, 112
        %v2179 = vpop.permute.xlu0 %2178
        %2180 = vrot.lane.b32.xlu0 %v2143, 112
        %v2181 = vpop.permute.xlu0 %2180
        %2182 = vrot.lane.b32.xlu0 %v2146, 112
        %v2183 = vpop.permute.xlu0 %2182
        %2184 = vrot.lane.b32.xlu0 %v2148, 112
        %v2185 = vpop.permute.xlu0 %2184
        %2186 = vrot.lane.b32.xlu0 %v2151, 112
        %v2187 = vpop.permute.xlu0 %2186
        %2188 = vrot.lane.b32.xlu0 %v2153, 112
        %v2189 = vpop.permute.xlu0 %2188
        %2190 = vrot.lane.b32.xlu0 %v2156, 112
        %v2191 = vpop.permute.xlu0 %2190
        %2192 = vrot.lane.b32.xlu0 %v2158, 112
        %v2193 = vpop.permute.xlu0 %2192
        %2194 = vrot.lane.b32.xlu0 %v2161, 112
        %v2195 = vpop.permute.xlu0 %2194
        %2196 = vrot.lane.b32.xlu0 %v2163, 112
        %v2197 = vpop.permute.xlu0 %2196
        %2198 = vrot.lane.b32.xlu0 %v2166, 112
        %v2199 = vpop.permute.xlu0 %2198
        %2200 = vrot.lane.b32.xlu0 %v2168, 112
        %v2201 = vpop.permute.xlu0 %2200
        %2202 = vrot.lane.b32.xlu0 %v2171, 112
        %v2203 = vpop.permute.xlu0 %2202
        %2204 = vrot.lane.b32.xlu0 %v2173, 112
        %v2205 = vpop.permute.xlu0 %2204
        %v2222 = vrot.slane %v1588, 2
        %v2223 = vrot.slane %v1589, 2
        %v2224 = vsel %vm1725, %v2222, %v2223
        %v2225 = vrot.slane %v1590, 2
        %v2226 = vsel %vm1725, %v2223, %v2225
        %v2227 = vrot.slane %v1591, 2
        %v2228 = vrot.slane %v1592, 2
        %v2229 = vsel %vm1725, %v2227, %v2228
        %v2230 = vrot.slane %v1593, 2
        %v2231 = vsel %vm1725, %v2228, %v2230
        %v2232 = vrot.slane %v1594, 2
        %v2233 = vrot.slane %v1595, 2
        %v2234 = vsel %vm1725, %v2232, %v2233
        %v2235 = vrot.slane %v1596, 2
        %v2236 = vsel %vm1725, %v2233, %v2235
        %v2237 = vrot.slane %v1597, 2
        %v2238 = vrot.slane %v1598, 2
        %v2239 = vsel %vm1725, %v2237, %v2238
        %v2240 = vrot.slane %v1599, 2
        %v2241 = vsel %vm1725, %v2238, %v2240
        %v2242 = vrot.slane %v1600, 2
        %v2243 = vrot.slane %v1601, 2
        %v2244 = vsel %vm1725, %v2242, %v2243
        %v2245 = vrot.slane %v1602, 2
        %v2246 = vsel %vm1725, %v2243, %v2245
        %v2247 = vrot.slane %v1603, 2
        %v2248 = vrot.slane %v1604, 2
        %v2249 = vsel %vm1725, %v2247, %v2248
        %v2250 = vrot.slane %v1605, 2
        %v2251 = vsel %vm1725, %v2248, %v2250
        %v2252 = vrot.slane %v1606, 2
        %v2253 = vrot.slane %v1607, 2
        %v2254 = vsel %vm1725, %v2252, %v2253
        %v2255 = vrot.slane %v1608, 2
        %v2256 = vsel %vm1725, %v2253, %v2255
        %v2257 = vrot.slane %v1609, 2
        %v2258 = vrot.slane %v1610, 2
        %v2259 = vsel %vm1725, %v2257, %v2258
        %v2260 = vrot.slane %v1611, 2
        %v2261 = vsel %vm1725, %v2258, %v2260
        %v2278 = vsel %vm219, %v1534, %v1678
        %v2279 = vsel %vm219, %v1535, %v1680
        %v2280 = vsel %vm219, %v1537, %v1682
        %v2281 = vsel %vm219, %v1538, %v1684
        %v2282 = vsel %vm219, %v1540, %v1686
        %v2283 = vsel %vm219, %v1541, %v1688
        %v2284 = vsel %vm219, %v1543, %v1690
        %v2285 = vsel %vm219, %v1544, %v1692
        %v2286 = vsel %vm219, %v1546, %v1694
        %v2287 = vsel %vm219, %v1547, %v1696
        %v2288 = vsel %vm219, %v1549, %v1698
        %v2289 = vsel %vm219, %v1550, %v1700
        %v2290 = vsel %vm219, %v1552, %v1702
        %v2291 = vsel %vm219, %v1553, %v1704
        %v2292 = vsel %vm219, %v1555, %v1706
        %v2293 = vsel %vm219, %v1556, %v1708
        %vm2294 = vcmask 261120
        %v2295 = vsel %vm2294, %v2278, %v1767
        %v2296 = vsel %vm2294, %v2279, %v1769
        %v2297 = vsel %vm2294, %v2280, %v1771
        %v2298 = vsel %vm2294, %v2281, %v1773
        %v2299 = vsel %vm2294, %v2282, %v1775
        %v2300 = vsel %vm2294, %v2283, %v1777
        %v2301 = vsel %vm2294, %v2284, %v1779
        %v2302 = vsel %vm2294, %v2285, %v1781
        %v2303 = vsel %vm2294, %v2286, %v1783
        %v2304 = vsel %vm2294, %v2287, %v1785
        %v2305 = vsel %vm2294, %v2288, %v1787
        %v2306 = vsel %vm2294, %v2289, %v1789
        %v2307 = vsel %vm2294, %v2290, %v1791
        %v2308 = vsel %vm2294, %v2291, %v1793
        %v2309 = vsel %vm2294, %v2292, %v1795
        %v2310 = vsel %vm2294, %v2293, %v1797
        %vm2311 = vcmask 392192
        %v2312 = vsel %vm2311, %v2295, %v1831
        %v2313 = vsel %vm2311, %v2296, %v1833
        %v2314 = vsel %vm2311, %v2297, %v1835
        %v2315 = vsel %vm2311, %v2298, %v1837
        %v2316 = vsel %vm2311, %v2299, %v1839
        %v2317 = vsel %vm2311, %v2300, %v1841
        %v2318 = vsel %vm2311, %v2301, %v1843
        %v2319 = vsel %vm2311, %v2302, %v1845
        %v2320 = vsel %vm2311, %v2303, %v1847
        %v2321 = vsel %vm2311, %v2304, %v1849
        %v2322 = vsel %vm2311, %v2305, %v1851
        %v2323 = vsel %vm2311, %v2306, %v1853
        %v2324 = vsel %vm2311, %v2307, %v1855
        %v2325 = vsel %vm2311, %v2308, %v1857
        %v2326 = vsel %vm2311, %v2309, %v1859
        %v2327 = vsel %vm2311, %v2310, %v1861
        %vm2328 = vcmask 523264
        %v2329 = vsel %vm2328, %v2312, %v1927
        %v2330 = vsel %vm2328, %v2313, %v1929
        %v2331 = vsel %vm2328, %v2314, %v1931
        %v2332 = vsel %vm2328, %v2315, %v1933
        %v2333 = vsel %vm2328, %v2316, %v1935
        %v2334 = vsel %vm2328, %v2317, %v1937
        %v2335 = vsel %vm2328, %v2318, %v1939
        %v2336 = vsel %vm2328, %v2319, %v1941
        %v2337 = vsel %vm2328, %v2320, %v1943
        %v2338 = vsel %vm2328, %v2321, %v1945
        %v2339 = vsel %vm2328, %v2322, %v1947
        %v2340 = vsel %vm2328, %v2323, %v1949
        %v2341 = vsel %vm2328, %v2324, %v1951
        %v2342 = vsel %vm2328, %v2325, %v1953
        %v2343 = vsel %vm2328, %v2326, %v1955
        %v2344 = vsel %vm2328, %v2327, %v1957
        %vm2345 = vcmask 654336
        %v2346 = vsel %vm2345, %v2329, %v2015
        %v2347 = vsel %vm2345, %v2330, %v2017
        %v2348 = vsel %vm2345, %v2331, %v2019
        %v2349 = vsel %vm2345, %v2332, %v2021
        %v2350 = vsel %vm2345, %v2333, %v2023
        %v2351 = vsel %vm2345, %v2334, %v2025
        %v2352 = vsel %vm2345, %v2335, %v2027
        %v2353 = vsel %vm2345, %v2336, %v2029
        %v2354 = vsel %vm2345, %v2337, %v2031
        %v2355 = vsel %vm2345, %v2338, %v2033
        %v2356 = vsel %vm2345, %v2339, %v2035
        %v2357 = vsel %vm2345, %v2340, %v2037
        %v2358 = vsel %vm2345, %v2341, %v2039
        %v2359 = vsel %vm2345, %v2342, %v2041
        %v2360 = vsel %vm2345, %v2343, %v2043
        %v2361 = vsel %vm2345, %v2344, %v2045
        %vm2362 = vcmask 785408
        %v2363 = vsel %vm2362, %v2346, %v2079
        %v2364 = vsel %vm2362, %v2347, %v2081
        %v2365 = vsel %vm2362, %v2348, %v2083
        %v2366 = vsel %vm2362, %v2349, %v2085
        %v2367 = vsel %vm2362, %v2350, %v2087
        %v2368 = vsel %vm2362, %v2351, %v2089
        %v2369 = vsel %vm2362, %v2352, %v2091
        %v2370 = vsel %vm2362, %v2353, %v2093
        %v2371 = vsel %vm2362, %v2354, %v2095
        %v2372 = vsel %vm2362, %v2355, %v2097
        %v2373 = vsel %vm2362, %v2356, %v2099
        %v2374 = vsel %vm2362, %v2357, %v2101
        %v2375 = vsel %vm2362, %v2358, %v2103
        %v2376 = vsel %vm2362, %v2359, %v2105
        %v2377 = vsel %vm2362, %v2360, %v2107
        %v2378 = vsel %vm2362, %v2361, %v2109
        %vm2379 = vcmask 916480
        %v2380 = vsel %vm2379, %v2363, %v2175
        %v2381 = vsel %vm2379, %v2364, %v2177
        %v2382 = vsel %vm2379, %v2365, %v2179
        %v2383 = vsel %vm2379, %v2366, %v2181
        %v2384 = vsel %vm2379, %v2367, %v2183
        %v2385 = vsel %vm2379, %v2368, %v2185
        %v2386 = vsel %vm2379, %v2369, %v2187
        %v2387 = vsel %vm2379, %v2370, %v2189
        %v2388 = vsel %vm2379, %v2371, %v2191
        %v2389 = vsel %vm2379, %v2372, %v2193
        %v2390 = vsel %vm2379, %v2373, %v2195
        %v2391 = vsel %vm2379, %v2374, %v2197
        %v2392 = vsel %vm2379, %v2375, %v2199
        %v2393 = vsel %vm2379, %v2376, %v2201
        %v2394 = vsel %vm2379, %v2377, %v2203
        %v2395 = vsel %vm2379, %v2378, %v2205
        %v2396 = vpack.c.bf16 %v2381, %v2380
        %v2397 = vpack.c.bf16 %v2226, %v2224
        %v2398 = vpack.c.bf16 %v2383, %v2382
        %v2399 = vpack.c.bf16 %v2231, %v2229
        %v2400 = vpack.c.bf16 %v2385, %v2384
        %v2401 = vpack.c.bf16 %v2236, %v2234
        %v2402 = vpack.c.bf16 %v2387, %v2386
        %v2403 = vpack.c.bf16 %v2241, %v2239
        %v2404 = vpack.c.bf16 %v2389, %v2388
        %v2405 = vpack.c.bf16 %v2246, %v2244
        %v2406 = vpack.c.bf16 %v2391, %v2390
        %v2407 = vpack.c.bf16 %v2251, %v2249
        %v2408 = vpack.c.bf16 %v2393, %v2392
        %v2409 = vpack.c.bf16 %v2256, %v2254
        %v2410 = vpack.c.bf16 %v2395, %v2394
        %v2411 = vpack.c.bf16 %v2261, %v2259
        %s2412 = smul.u32 %s1531, 16
        %s2413 = scalar_lea.vmem %s212, %s2412
        %v2414 = vld [vmem:[%s2413] sm:$0xff]
        %v2415 = vld [vmem:[%s2413 + $0x8] sm:$0xff]
        %v2416 = vld [vmem:[%s2413 + $0x10] sm:$0xff]
        %v2417 = vld [vmem:[%s2413 + $0x18] sm:$0xff]
        %v2418 = vld [vmem:[%s2413 + $0x20] sm:$0xff]
        %v2419 = vld [vmem:[%s2413 + $0x28] sm:$0xff]
        %v2420 = vld [vmem:[%s2413 + $0x30] sm:$0xff]
        %v2421 = vld [vmem:[%s2413 + $0x38] sm:$0xff]
        %v2422 = vld [vmem:[%s2413 + $0x40] sm:$0xff]
        %v2423 = vld [vmem:[%s2413 + $0x48] sm:$0xff]
        %v2424 = vld [vmem:[%s2413 + $0x50] sm:$0xff]
        %v2425 = vld [vmem:[%s2413 + $0x58] sm:$0xff]
        %v2426 = vld [vmem:[%s2413 + $0x60] sm:$0xff]
        %v2427 = vld [vmem:[%s2413 + $0x68] sm:$0xff]
        %v2428 = vld [vmem:[%s2413 + $0x70] sm:$0xff]
        %v2429 = vld [vmem:[%s2413 + $0x78] sm:$0xff]
        %v2448 = vunpack.c.l.b16 %v412
        %v2449 = vunpack.c.l.b16 %v413
        %v2450 = vunpack.c.l.b16 %v414
        %v2451 = vunpack.c.l.b16 %v415
        %v2452 = vunpack.c.l.b16 %v416
        %v2453 = vunpack.c.l.b16 %v417
        %v2454 = vunpack.c.l.b16 %v418
        %v2455 = vunpack.c.l.b16 %v419
        %v2456 = vunpack.c.l.b16 %v420
        %v2457 = vunpack.c.l.b16 %v421
        %v2458 = vunpack.c.l.b16 %v422
        %v2459 = vunpack.c.l.b16 %v423
        %v2460 = vunpack.c.l.b16 %v424
        %v2461 = vunpack.c.l.b16 %v425
        %v2462 = vunpack.c.l.b16 %v426
        %v2463 = vunpack.c.l.b16 %v427
        %v2464 = vunpack.c.l.b16 %v428
        %v2465 = vunpack.c.l.b16 %v429
        %v2466 = vpack.c.b16 %v2449, %v2448
        %v2467 = vpack.c.b16 %v2451, %v2450
        %v2468 = vpack.c.b16 %v2453, %v2452
        %v2469 = vpack.c.b16 %v2455, %v2454
        %v2470 = vpack.c.b16 %v2457, %v2456
        %v2471 = vpack.c.b16 %v2459, %v2458
        %v2472 = vpack.c.b16 %v2461, %v2460
        %v2473 = vpack.c.b16 %v2463, %v2462
        %v2474 = vpack.c.b16 %v2465, %v2464
        %v2485 = vsel %vm219, %v2397, 0
        %v2488 = vsel %vm219, %v2399, 0
        %v2491 = vsel %vm219, %v2401, 0
        %v2494 = vsel %vm219, %v2403, 0
        %v2497 = vsel %vm219, %v2405, 0
        %v2500 = vsel %vm219, %v2407, 0
        %v2503 = vsel %vm219, %v2409, 0
        %v2506 = vsel %vm219, %v2411, 0
        %2508 = vmatprep.subr.bf16.mxu0 0
        %2509 = vmatpush1.bf16.msra.mxu0 %v2473
        %2510 = vmatprep.subr.bf16.mxu0 0
        %2511 = vmatpush1.bf16.msra.mxu0 %v2472
        %2512 = vmatprep.subr.bf16.mxu0 0
        %2513 = vmatpush1.bf16.msra.mxu0 %v2471
        %2514 = vmatprep.subr.bf16.mxu0 0
        %2515 = vmatpush1.bf16.msra.mxu0 %v2470
        %2516 = vmatprep.subr.bf16.mxu0 0
        %2517 = vmatpush1.bf16.msra.mxu0 %v2469
        %2518 = vmatprep.subr.bf16.mxu0 0
        %2519 = vmatpush1.bf16.msra.mxu0 %v2468
        %2520 = vmatprep.subr.bf16.mxu0 0
        %2521 = vmatpush1.bf16.msra.mxu0 %v2467
        %2522 = vmatprep.subr.bf16.mxu0 0
        %2523 = vmatpush1.bf16.msra.mxu0 %v2466
        %2524 = vmatprep.subr.bf16.mxu0 0
        %2525 = vmatpush2.bf16.msra.mxu0 0
        %2526 = vmatprep.subr.bf16.mxu0 0
        %2527 = vmatpush2.bf16.msra.mxu0 0
        %2528 = vmatprep.subr.bf16.mxu0 0
        %2529 = vmatpush2.bf16.msra.mxu0 0
        %2530 = vmatprep.subr.bf16.mxu0 0
        %2531 = vmatpush2.bf16.msra.mxu0 0
        %2532 = vmatprep.subr.bf16.mxu0 0
        %2533 = vmatpush2.bf16.msra.mxu0 0
        %2534 = vmatprep.subr.bf16.mxu0 0
        %2535 = vmatpush2.bf16.msra.mxu0 0
        %2536 = vmatprep.subr.bf16.mxu0 0
        %2537 = vmatpush2.bf16.msra.mxu0 0
        %2538 = vmatprep.subr.bf16.mxu0 0
        %2539 = vmatpush2.bf16.msra.mxu0 %v2474
        %2540 = vmatprep.mubr.bf16.mxu0 %v2485
        %2541 = vmatmul.mubr.bf16.gmra.mxu0 %v2396
        %v2542 = vpop.f32.mrf.mxu0
        %v2543 = vadd.f32 %v2414, %v2542
        %v2544 = vpop.f32.mrf.mxu0
        %v2545 = vpop.f32.mrf.mxu0
        %v2546 = vadd.f32 %v2415, %v2545
        %v2547 = vpop.f32.mrf.mxu0
        %2548 = vmatprep.mubr.bf16.mxu0 %v2488
        %2549 = vmatmul.mubr.bf16.gmra.mxu0 %v2398
        %v2550 = vpop.f32.mrf.mxu0
        %v2551 = vadd.f32 %v2416, %v2550
        %v2552 = vpop.f32.mrf.mxu0
        %v2553 = vpop.f32.mrf.mxu0
        %v2554 = vadd.f32 %v2417, %v2553
        %v2555 = vpop.f32.mrf.mxu0
        %2556 = vmatprep.mubr.bf16.mxu0 %v2491
        %2557 = vmatmul.mubr.bf16.gmra.mxu0 %v2400
        %v2558 = vpop.f32.mrf.mxu0
        %v2559 = vadd.f32 %v2418, %v2558
        %v2560 = vpop.f32.mrf.mxu0
        %v2561 = vpop.f32.mrf.mxu0
        %v2562 = vadd.f32 %v2419, %v2561
        %v2563 = vpop.f32.mrf.mxu0
        %2564 = vmatprep.mubr.bf16.mxu0 %v2494
        %2565 = vmatmul.mubr.bf16.gmra.mxu0 %v2402
        %v2566 = vpop.f32.mrf.mxu0
        %v2567 = vadd.f32 %v2420, %v2566
        %v2568 = vpop.f32.mrf.mxu0
        %v2569 = vpop.f32.mrf.mxu0
        %v2570 = vadd.f32 %v2421, %v2569
        %v2571 = vpop.f32.mrf.mxu0
        %2572 = vmatprep.mubr.bf16.mxu0 %v2497
        %2573 = vmatmul.mubr.bf16.gmra.mxu0 %v2404
        %v2574 = vpop.f32.mrf.mxu0
        %v2575 = vadd.f32 %v2422, %v2574
        %v2576 = vpop.f32.mrf.mxu0
        %v2577 = vpop.f32.mrf.mxu0
        %v2578 = vadd.f32 %v2423, %v2577
        %v2579 = vpop.f32.mrf.mxu0
        %2580 = vmatprep.mubr.bf16.mxu0 %v2500
        %2581 = vmatmul.mubr.bf16.gmra.mxu0 %v2406
        %v2582 = vpop.f32.mrf.mxu0
        %v2583 = vadd.f32 %v2424, %v2582
        %v2584 = vpop.f32.mrf.mxu0
        %v2585 = vpop.f32.mrf.mxu0
        %v2586 = vadd.f32 %v2425, %v2585
        %v2587 = vpop.f32.mrf.mxu0
        %2588 = vmatprep.mubr.bf16.mxu0 %v2503
        %2589 = vmatmul.mubr.bf16.gmra.mxu0 %v2408
        %v2590 = vpop.f32.mrf.mxu0
        %v2591 = vadd.f32 %v2426, %v2590
        %v2592 = vpop.f32.mrf.mxu0
        %v2593 = vpop.f32.mrf.mxu0
        %v2594 = vadd.f32 %v2427, %v2593
        %v2595 = vpop.f32.mrf.mxu0
        %2596 = vmatprep.mubr.bf16.mxu0 %v2506
        %2597 = vmatmul.mubr.bf16.gmra.mxu0 %v2410
        %v2598 = vpop.f32.mrf.mxu0
        %v2599 = vadd.f32 %v2428, %v2598
        %v2600 = vpop.f32.mrf.mxu0
        %v2601 = vpop.f32.mrf.mxu0
        %v2602 = vadd.f32 %v2429, %v2601
        %v2603 = vpop.f32.mrf.mxu0
        %2604 = vdwg.mxu0
        %s2605 = scalar_lea.vmem %s217, %s2412
        %vm2606 = vcmask 23552
        %2607 = vst.msk [vmem:[%s2605] sm:$0xff] %vm2606, %v2543
        %2608 = vst.msk [vmem:[%s2605 + $0x8] sm:$0xff] %vm2606, %v2546
        %2609 = vst.msk [vmem:[%s2605 + $0x10] sm:$0xff] %vm2606, %v2551
        %2610 = vst.msk [vmem:[%s2605 + $0x18] sm:$0xff] %vm2606, %v2554
        %2611 = vst.msk [vmem:[%s2605 + $0x20] sm:$0xff] %vm2606, %v2559
        %2612 = vst.msk [vmem:[%s2605 + $0x28] sm:$0xff] %vm2606, %v2562
        %2613 = vst.msk [vmem:[%s2605 + $0x30] sm:$0xff] %vm2606, %v2567
        %2614 = vst.msk [vmem:[%s2605 + $0x38] sm:$0xff] %vm2606, %v2570
        %2615 = vst.msk [vmem:[%s2605 + $0x40] sm:$0xff] %vm2606, %v2575
        %2616 = vst.msk [vmem:[%s2605 + $0x48] sm:$0xff] %vm2606, %v2578
        %2617 = vst.msk [vmem:[%s2605 + $0x50] sm:$0xff] %vm2606, %v2583
        %2618 = vst.msk [vmem:[%s2605 + $0x58] sm:$0xff] %vm2606, %v2586
        %2619 = vst.msk [vmem:[%s2605 + $0x60] sm:$0xff] %vm2606, %v2591
        %2620 = vst.msk [vmem:[%s2605 + $0x68] sm:$0xff] %vm2606, %v2594
        %2621 = vst.msk [vmem:[%s2605 + $0x70] sm:$0xff] %vm2606, %v2599
        %2622 = vst.msk [vmem:[%s2605 + $0x78] sm:$0xff] %vm2606, %v2602
      $region48: #{_lambda_.7} parent=35 // loop_footer
        %s1530 = sadd.s32 1, %s1526
      $region49: #{_lambda_.7} parent=35 // loop_footer_branch
        %1525 = sbr.rel target = $region45
      $region50: #{_lambda_.7} parent=35 // loop_exit
        _
      %p2623 = scmp.lt.s32.totalorder %s15, 1
      %s2624 = scalar_select %p2623, %s15, 1
      %s2625 = smul.addr %s2624, 32
      %s2626 = smul.addr %s2625, 8
      %s2627 = scalar_lea.vmem %s4, %s2626
      // Predicated region
      $region51: #{_lambda_.7} parent=35 // pred_check
        %p2628 = pneg %p127
      $region52: #{_lambda_.7} parent=35 // pred_check_branch
        %2630 = sbr.rel (%p2628) target = $region54
      $region53: #{_lambda_.7} parent=35 // pred_region
        _
      $region54: #{_lambda_.7} parent=35 // pred_fallthru
        _
    $region36: #{_lambda_.7} parent=5 // pred_fallthru
      _
    %p2631 = scmp.le.s32.totalorder 2, %s10
    // Predicated region
    $region55: #{_lambda_.7} parent=5 // pred_check
      %p2632 = pneg %p2631
    $region56: #{_lambda_.7} parent=5 // pred_check_branch
      %2634 = sbr.rel (%p2632) target = $region58
    $region57: #{_lambda_.7} parent=5 // pred_region
      %s2635 = ssub.s32 %s10, 2
      // Predicated region
      $region59: #{_lambda_.7} parent=57 // pred_check
        %p2636 = pneg %p133
      $region60: #{_lambda_.7} parent=57 // pred_check_branch
        %2638 = sbr.rel (%p2636) target = $region62
      $region61: #{_lambda_.7} parent=57 // pred_region
        %p2639 = scmp.lt.s32.totalorder %s16, 1
        %s2640 = scalar_select %p2639, %s16, 1
        %s2641 = smul.addr %s2640, 32
        %s2642 = smul.addr %s2641, 8
        %s2643 = scalar_lea.vmem %s4, %s2642
      $region62: #{_lambda_.7} parent=57 // pred_fallthru
        _
    $region58: #{_lambda_.7} parent=5 // pred_fallthru
      _
  $region6: #{_lambda_.7} parent=0 // loop_footer
    %s14 = sadd.s32 1, %s10
  $region7: #{_lambda_.7} parent=0 // loop_footer_branch
    %9 = sbr.rel target = $region3
  $region8: #{_lambda_.7} parent=0 // loop_exit
    _

</llo_original>
